<compile_context>
chip_gen: v6e
topology: v6e:2x2x1
jax: 0.10.0
libtpu: 0.0.40
codegen_flags: <defaults>
</compile_context>

<pallas_src>
import math
import functools

import jax
import jax.numpy as jnp
import numpy as np
from jax import lax
from jax.experimental import pallas as pl
from jax.experimental.pallas import tpu as pltpu


def mha_kernel(xq_ref, xkv_ref,
               wq_ref, bq_ref, wkv_ref, bkv_ref, wo_ref, bo_ref,
               o_ref, q_scr, kv_scr, acc_scr,
               *, n_heads, block_b, n_q, n_kv, kv_chunk):
    d = wq_ref.shape[0]
    d_head = d // n_heads
    n_chunks = n_kv // kv_chunk

    # ---- fused projections: bf16 x bf16 -> f32 accumulate, staged bf16 in VMEM --
    # Weights arrive pre-transposed; 1/sqrt(d_head) is folded into W_q / b_q.
    q_scr[...] = (jnp.dot(xq_ref[...], wq_ref[...],
                          preferred_element_type=jnp.float32)
                  + bq_ref[...]).astype(q_scr.dtype)          # (Bb*Nq, d) bf16
    kv_scr[...] = (jnp.dot(xkv_ref[...], wkv_ref[...],
                           preferred_element_type=jnp.float32)
                   + bkv_ref[...]).astype(kv_scr.dtype)       # (Bb*Nkv, 2d) = [K|V]

    acc_scr[...] = jnp.zeros_like(acc_scr)                    # f32 output accumulator

    def head_body(idx, carry):
        b = idx // n_heads
        h = idx % n_heads
        q_row, kv_row, lo = b * n_q, b * n_kv, h * d_head
        if not isinstance(idx, int):                          # dynamic loop index
            q_row = pl.multiple_of(q_row, n_q)
            kv_row = pl.multiple_of(kv_row, n_kv)
            lo = pl.multiple_of(lo, d_head)

        qh = q_scr[pl.ds(q_row, n_q), pl.ds(lo, d_head)]      # (Nq, dh) bf16, pre-scaled

        if n_chunks == 1:
            # Small n_kv: direct softmax on the full (Nq, Nkv) tile.
            kh = kv_scr[pl.ds(kv_row, n_kv), pl.ds(lo, d_head)]
            vh = kv_scr[pl.ds(kv_row, n_kv), pl.ds(d + lo, d_head)]
            s = lax.dot_general(qh, kh, (((1,), (1,)), ((), ())),
                                preferred_element_type=jnp.float32)
            m = jnp.max(s, axis=-1, keepdims=True)
            p = jnp.exp(s - m)
            l = jnp.sum(p, axis=-1, keepdims=True)
            ctx = jnp.dot(p.astype(kv_scr.dtype), vh,
                          preferred_element_type=jnp.float32)  # (Nq, dh) f32
        else:
            # Large n_kv: KV-chunked online softmax (never materializes (Nq, Nkv)).
            def kv_body(c, mla):
                m, l, acc = mla
                start = kv_row + c * kv_chunk
                kh = kv_scr[pl.ds(start, kv_chunk), pl.ds(lo, d_head)]
                vh = kv_scr[pl.ds(start, kv_chunk), pl.ds(d + lo, d_head)]
                s = lax.dot_general(qh, kh, (((1,), (1,)), ((), ())),
                                    preferred_element_type=jnp.float32)
                m_new = jnp.maximum(m, jnp.max(s, axis=-1, keepdims=True))
                alpha = jnp.exp(m - m_new)
                p = jnp.exp(s - m_new)
                l = alpha * l + jnp.sum(p, axis=-1, keepdims=True)
                acc = alpha * acc + jnp.dot(p.astype(kv_scr.dtype), vh,
                                            preferred_element_type=jnp.float32)
                return m_new, l, acc

            init = (jnp.full((n_q, 1), -jnp.inf, jnp.float32),
                    jnp.zeros((n_q, 1), jnp.float32),
                    jnp.zeros((n_q, d_head), jnp.float32))
            _, l, ctx = lax.fori_loop(0, n_chunks, kv_body, init)

        # TODO(synk): attention-matrix dropout omitted (eval mode / p == 0).
        # Normalize after P@V (Nq*dh elems) with the EUP reciprocal (free slot).
        ctx = ctx * pl.reciprocal(l, approx=True)

        # Fused output projection: lane-dense (Nq, d) accumulate instead of a
        # lane-narrow (width d_head) ctx store + separate ctx @ W_out matmul.
        wo_h = wo_ref[pl.ds(lo, d_head), :]                    # (dh, d) bf16 row slice
        acc_scr[pl.ds(q_row, n_q), :] += jnp.dot(
            ctx.astype(wo_ref.dtype), wo_h, preferred_element_type=jnp.float32)
        return carry

    total = block_b * n_heads
    if total <= 8:
        for idx in range(total):                               # static unroll
            head_body(idx, 0)
    else:
        lax.fori_loop(0, total, head_body, 0, unroll=min(4, max(1, n_heads)))

    o_ref[...] = (acc_scr[...] + bo_ref[...]).astype(o_ref.dtype)


def _pick_kv_chunk(n_kv, cap):
    if n_kv <= cap:
        return n_kv
    divs = [c for c in range(2, cap + 1) if n_kv % c == 0]
    if not divs:
        return n_kv                                            # prime n_kv: no tiling
    mult8 = [c for c in divs if c % 8 == 0]
    return max(mult8) if mult8 else max(divs)


def multihead_attention(x_q, x_kv, params, n_heads,
                        vmem_budget_bytes=32 << 20, kv_chunk_cap=1024):
    B, n_q, D = x_q.shape
    Bk, n_kv, Dk = x_kv.shape
    assert Bk == B and Dk == D and D % n_heads == 0
    d_head = D // n_heads
    scale = 1.0 / math.sqrt(d_head)                            # b = sqrt(d_head_key)

    wq, bq = params["W_q"]
    wk, bk = params["W_k"]
    wv, bv = params["W_v"]
    if params.get("W_out") is not None:
        wo, bo = params["W_out"]
    else:                                                      # torch: W_out is None iff n_heads == 1
        wo, bo = jnp.eye(D, dtype=jnp.float32), jnp.zeros((D,), jnp.float32)

    bf16, f32 = jnp.bfloat16, jnp.float32
    # Host-side layout plumbing (free): pre-transpose to x @ W form, fold the
    # softmax scale into W_q / b_q, fuse K/V into one (D, 2D) projection, and
    # cast MXU operands to bf16 (f32 accumulation in-kernel).
    wq_t = (wq.T * scale).astype(bf16)                         # (D, D)
    bq_s = (bq * scale).reshape(1, D).astype(f32)
    wkv_t = jnp.concatenate([wk.T, wv.T], axis=1).astype(bf16)  # (D, 2D)
    bkv = jnp.concatenate([bk, bv]).reshape(1, 2 * D).astype(f32)
    wo_t = wo.T.astype(bf16)                                   # (D, D)
    bo2 = bo.reshape(1, D).astype(f32)

    kv_chunk = _pick_kv_chunk(n_kv, kv_chunk_cap)

    # ---- VMEM model (weights, double-buffered I/O, scratch, live score tiles) ---
    def usage_bytes(bb):
        w = 4 * D * D * 2 + 8 * D * 4                          # bf16 weights (1x) + f32 biases
        io = (bb * n_q * D + bb * n_kv * D) * 2 * 2            # bf16 inputs, double-buffered
        io += bb * n_q * D * 4 * 2                             # f32 output, double-buffered
        scr = bb * n_q * D * 2 + bb * n_kv * 2 * D * 2 + bb * n_q * D * 4
        live = 4 * n_q * min(n_kv, kv_chunk) * 4 + 4 * n_q * D * 4
        return w + io + scr + live

    divisors = [d for d in range(1, B + 1) if B % d == 0]
    aligned = [d for d in divisors
               if d == B or ((d * n_q) % 8 == 0 and (d * n_kv) % 8 == 0)]
    feasible = [d for d in aligned if usage_bytes(d) <= vmem_budget_bytes]
    if feasible:
        multi = [d for d in feasible if B // d >= 2]           # keep >=2 grid steps (v7x: 2 TCs)
        block_b = max(multi) if multi else max(feasible)
    else:
        block_b = min(aligned)                                 # smallest valid footprint
    grid = (B // block_b,)
    vmem_limit = int(min(max(2 * usage_bytes(block_b), 32 << 20), 64 << 20))

    # 2-D bf16 slabs: (B*N, D) so blocks are plain row windows, no cross-lane reshape.
    xq2 = x_q.reshape(B * n_q, D).astype(bf16)
    xkv2 = x_kv.reshape(B * n_kv, D).astype(bf16)

    kernel = functools.partial(mha_kernel, n_heads=n_heads, block_b=block_b,
                               n_q=n_q, n_kv=n_kv, kv_chunk=kv_chunk)

    def build(use_buffered):
        def wspec(shape):
            if use_buffered:   # grid-invariant weights: single-buffered
                return pl.BlockSpec(shape, lambda i: (0, 0),
                                    pipeline_mode=pl.Buffered(1))
            return pl.BlockSpec(shape, lambda i: (0, 0))

        return pl.pallas_call(
            kernel,
            out_shape=jax.ShapeDtypeStruct((B * n_q, D), x_q.dtype),
            grid_spec=pltpu.PrefetchScalarGridSpec(
                num_scalar_prefetch=0,
                grid=grid,
                in_specs=[
                    pl.BlockSpec((block_b * n_q, D), lambda i: (i, 0)),    # x_q slab
                    pl.BlockSpec((block_b * n_kv, D), lambda i: (i, 0)),   # x_kv slab
                    wspec((D, D)), wspec((1, D)),          # W_q^T (scaled), b_q (scaled)
                    wspec((D, 2 * D)), wspec((1, 2 * D)),  # [W_k | W_v]^T, [b_k | b_v]
                    wspec((D, D)), wspec((1, D)),          # W_out^T, b_out
                ],
                out_specs=pl.BlockSpec((block_b * n_q, D), lambda i: (i, 0)),
                scratch_shapes=[
                    pltpu.VMEM((block_b * n_q, D), bf16),          # Q staging
                    pltpu.VMEM((block_b * n_kv, 2 * D), bf16),     # [K|V] staging
                    pltpu.VMEM((block_b * n_q, D), f32),           # output accumulator
                ],
            ),
            compiler_params=pltpu.CompilerParams(
                dimension_semantics=("parallel",),
                vmem_limit_bytes=vmem_limit),
        )

    args = (xq2, xkv2, wq_t, bq_s, wkv_t, bkv, wo_t, bo2)
    try:
        out2 = build(True)(*args)
    except Exception:
        out2 = build(False)(*args)      # fallback if pipeline_mode/Buffered(1) unsupported

    return out2.reshape(B, n_q, D)


def reference_mha(x_q, x_kv, params, n_heads):
    """Pure-JAX f32 replica of the PyTorch forward (no dropout)."""
    wq, bq = params["W_q"]
    wk, bk = params["W_k"]
    wv, bv = params["W_v"]
    wo, bo = params["W_out"]
    q = x_q @ wq.T + bq
    k = x_kv @ wk.T + bk
    v = x_kv @ wv.T + bv
    B, Nq, D = q.shape
    dh = D // n_heads

    def reshape(t):
        B_, N_, _ = t.shape
        return t.reshape(B_, N_, n_heads, dh).transpose(0, 2, 1, 3).reshape(B_ * n_heads, N_, dh)

    qh, kh, vh = reshape(q), reshape(k), reshape(v)
    a = qh @ kh.transpose(0, 2, 1) / math.sqrt(dh)
    attn = jax.nn.softmax(a, axis=-1)
    x = attn @ vh
    x = x.reshape(B, n_heads, Nq, dh).transpose(0, 2, 1, 3).reshape(B, Nq, D)
    return x @ wo.T + bo


if __name__ == "__main__":
    B, Nq, Nkv, D, H = 2, 8, 16, 32, 4  # d_head = 8, dropout = 0.0 (→ None in torch)

    key = jax.random.PRNGKey(0)
    kq, kk, kv_, ko, kx1, kx2 = jax.random.split(key, 6)

    def xavier_uniform(k, shape, gain):
        fan_in, fan_out = shape[1], shape[0]
        bound = gain * math.sqrt(6.0 / (fan_in + fan_out))
        return jax.random.uniform(k, shape, jnp.float32, -bound, bound)

    g = 1.0 / math.sqrt(2.0)  # xavier gain used in the module
    params = {
        "W_q": (xavier_uniform(kq, (D, D), g), jnp.zeros((D,), jnp.float32)),
        "W_k": (xavier_uniform(kk, (D, D), g), jnp.zeros((D,), jnp.float32)),
        "W_v": (xavier_uniform(kv_, (D, D), g), jnp.zeros((D,), jnp.float32)),
        "W_out": (xavier_uniform(ko, (D, D), 1.0), jnp.zeros((D,), jnp.float32)),
    }

    x_q = jax.random.normal(kx1, (B, Nq, D), jnp.float32)
    x_kv = jax.random.normal(kx2, (B, Nkv, D), jnp.float32)

    out = multihead_attention(x_q, x_kv, params, n_heads=H)
    out = jax.block_until_ready(out)

    ref = reference_mha(x_q, x_kv, params, n_heads=H)
    # bf16 MXU operands (f32 accumulation) → loosen tolerance vs. the f32 reference.
    np.testing.assert_allclose(np.asarray(out), np.asarray(ref), rtol=3e-2, atol=3e-2)

    print("KERNEL_OK")
</pallas_src>

<mosaic_0001>
module attributes {stable_mosaic.version = 11 : i64} {
  func.func @mha_kernel(%arg0: i32, %arg1: memref<8x32xbf16, #tpu.memory_space<vmem>>, %arg2: memref<16x32xbf16, #tpu.memory_space<vmem>>, %arg3: memref<32x32xbf16, #tpu.memory_space<vmem>>, %arg4: memref<1x32xf32, #tpu.memory_space<vmem>>, %arg5: memref<32x64xbf16, #tpu.memory_space<vmem>>, %arg6: memref<1x64xf32, #tpu.memory_space<vmem>>, %arg7: memref<32x32xbf16, #tpu.memory_space<vmem>>, %arg8: memref<1x32xf32, #tpu.memory_space<vmem>>, %arg9: memref<8x32xf32, #tpu.memory_space<vmem>>, %arg10: memref<8x32xbf16, #tpu.memory_space<vmem>>, %arg11: memref<16x64xbf16, #tpu.memory_space<vmem>>, %arg12: memref<8x32xf32, #tpu.memory_space<vmem>>) attributes {dimension_semantics = [#tpu.dimension_semantics<parallel>], iteration_bounds = array<i64: 2>, scalar_prefetch = 0 : i64, scratch_operands = 3 : i64, tpu.core_type = #tpu.core_type<tc>, window_params = [{transform_indices = @transform_0, window_bounds = array<i64: 8, 32>}, {transform_indices = @transform_1, window_bounds = array<i64: 16, 32>}, {pipeline_mode = #tpu.pipeline_mode<synchronous>, transform_indices = @transform_2, window_bounds = array<i64: 32, 32>}, {pipeline_mode = #tpu.pipeline_mode<synchronous>, transform_indices = @transform_3, window_bounds = array<i64: 1, 32>}, {pipeline_mode = #tpu.pipeline_mode<synchronous>, transform_indices = @transform_4, window_bounds = array<i64: 32, 64>}, {pipeline_mode = #tpu.pipeline_mode<synchronous>, transform_indices = @transform_5, window_bounds = array<i64: 1, 64>}, {pipeline_mode = #tpu.pipeline_mode<synchronous>, transform_indices = @transform_6, window_bounds = array<i64: 32, 32>}, {pipeline_mode = #tpu.pipeline_mode<synchronous>, transform_indices = @transform_7, window_bounds = array<i64: 1, 32>}, {transform_indices = @transform_8, window_bounds = array<i64: 8, 32>}]} {
    %c0 = arith.constant 0 : index
    %c0_0 = arith.constant 0 : index
    %0 = vector.load %arg1[%c0, %c0_0] : memref<8x32xbf16, #tpu.memory_space<vmem>>, vector<8x32xbf16>
    %c0_1 = arith.constant 0 : index
    %c0_2 = arith.constant 0 : index
    %1 = vector.load %arg3[%c0_1, %c0_2] : memref<32x32xbf16, #tpu.memory_space<vmem>>, vector<32x32xbf16>
    %cst = arith.constant dense<0.000000e+00> : vector<8x32xf32>
    %2 = tpu.matmul %0, %1, %cst {dimension_numbers = #tpu.dot_dimension_numbers<[1], [0], [0], [1], [0, 0, 1, 1], [], []>} : vector<8x32xbf16>, vector<32x32xbf16>, vector<8x32xf32> -> vector<8x32xf32>
    %c0_3 = arith.constant 0 : index
    %c0_4 = arith.constant 0 : index
    %3 = vector.load %arg4[%c0_3, %c0_4] : memref<1x32xf32, #tpu.memory_space<vmem>>, vector<1x32xf32>
    %4 = vector.broadcast %3 : vector<1x32xf32> to vector<8x32xf32>
    %5 = arith.addf %2, %4 : vector<8x32xf32>
    %6 = arith.truncf %5 : vector<8x32xf32> to vector<8x32xbf16>
    %c0_5 = arith.constant 0 : index
    %c0_6 = arith.constant 0 : index
    %7 = vector.load %arg10[%c0_5, %c0_6] : memref<8x32xbf16, #tpu.memory_space<vmem>>, vector<8x32xbf16>
    tpu.vector_store %arg10[%c0_5, %c0_6], %6 {strides = array<i32>} : memref<8x32xbf16, #tpu.memory_space<vmem>>, vector<8x32xbf16>,
    %c0_7 = arith.constant 0 : index
    %c0_8 = arith.constant 0 : index
    %8 = vector.load %arg2[%c0_7, %c0_8] : memref<16x32xbf16, #tpu.memory_space<vmem>>, vector<16x32xbf16>
    %c0_9 = arith.constant 0 : index
    %c0_10 = arith.constant 0 : index
    %9 = vector.load %arg5[%c0_9, %c0_10] : memref<32x64xbf16, #tpu.memory_space<vmem>>, vector<32x64xbf16>
    %cst_11 = arith.constant dense<0.000000e+00> : vector<16x64xf32>
    %10 = tpu.matmul %8, %9, %cst_11 {dimension_numbers = #tpu.dot_dimension_numbers<[1], [0], [0], [1], [0, 0, 1, 1], [], []>} : vector<16x32xbf16>, vector<32x64xbf16>, vector<16x64xf32> -> vector<16x64xf32>
    %c0_12 = arith.constant 0 : index
    %c0_13 = arith.constant 0 : index
    %11 = vector.load %arg6[%c0_12, %c0_13] : memref<1x64xf32, #tpu.memory_space<vmem>>, vector<1x64xf32>
    %12 = vector.broadcast %11 : vector<1x64xf32> to vector<16x64xf32>
    %13 = arith.addf %10, %12 : vector<16x64xf32>
    %14 = arith.truncf %13 : vector<16x64xf32> to vector<16x64xbf16>
    %c0_14 = arith.constant 0 : index
    %c0_15 = arith.constant 0 : index
    %15 = vector.load %arg11[%c0_14, %c0_15] : memref<16x64xbf16, #tpu.memory_space<vmem>>, vector<16x64xbf16>
    tpu.vector_store %arg11[%c0_14, %c0_15], %14 {strides = array<i32>} : memref<16x64xbf16, #tpu.memory_space<vmem>>, vector<16x64xbf16>,
    %cst_16 = arith.constant 0.000000e+00 : f32
    %16 = vector.broadcast %cst_16 : f32 to vector<8x32xf32>
    %c0_17 = arith.constant 0 : index
    %c0_18 = arith.constant 0 : index
    %17 = vector.load %arg12[%c0_17, %c0_18] : memref<8x32xf32, #tpu.memory_space<vmem>>, vector<8x32xf32>
    tpu.vector_store %arg12[%c0_17, %c0_18], %16 {strides = array<i32>} : memref<8x32xf32, #tpu.memory_space<vmem>>, vector<8x32xf32>,
    %c0_19 = arith.constant 0 : index
    %c0_20 = arith.constant 0 : index
    %18 = vector.load %arg10[%c0_19, %c0_20] : memref<8x32xbf16, #tpu.memory_space<vmem>>, vector<8x8xbf16>
    %c0_21 = arith.constant 0 : index
    %c0_22 = arith.constant 0 : index
    %19 = vector.load %arg11[%c0_21, %c0_22] : memref<16x64xbf16, #tpu.memory_space<vmem>>, vector<16x8xbf16>
    %c0_23 = arith.constant 0 : index
    %c32 = arith.constant 32 : index
    %20 = vector.load %arg11[%c0_23, %c32] : memref<16x64xbf16, #tpu.memory_space<vmem>>, vector<16x8xbf16>
    %cst_24 = arith.constant dense<0.000000e+00> : vector<8x16xf32>
    %21 = tpu.matmul %18, %19, %cst_24 {dimension_numbers = #tpu.dot_dimension_numbers<[1], [1], [0], [0], [0, 0, 1, 0], [], []>} : vector<8x8xbf16>, vector<16x8xbf16>, vector<8x16xf32> -> vector<8x16xf32>
    %cst_25 = arith.constant dense<0xFF800000> : vector<8xf32>
    %22 = vector.multi_reduction <maximumf>, %21, %cst_25 [1] : vector<8x16xf32> to vector<8xf32>
    %23 = vector.shape_cast %22 : vector<8xf32> to vector<8x1xf32>
    %24 = vector.broadcast %23 : vector<8x1xf32> to vector<8x16xf32>
    %25 = arith.subf %21, %24 : vector<8x16xf32>
    %26 = math.exp %25 : vector<8x16xf32>
    %cst_26 = arith.constant dense<0.000000e+00> : vector<8xf32>
    %27 = vector.multi_reduction <add>, %26, %cst_26 [1] : vector<8x16xf32> to vector<8xf32>
    %28 = vector.shape_cast %27 : vector<8xf32> to vector<8x1xf32>
    %29 = arith.truncf %26 : vector<8x16xf32> to vector<8x16xbf16>
    %cst_27 = arith.constant dense<0.000000e+00> : vector<8x8xf32>
    %30 = tpu.matmul %29, %20, %cst_27 {dimension_numbers = #tpu.dot_dimension_numbers<[1], [0], [0], [1], [0, 0, 1, 1], [], []>} : vector<8x16xbf16>, vector<16x8xbf16>, vector<8x8xf32> -> vector<8x8xf32>
    %31 = tpu.reciprocal %28 {approx = true} : vector<8x1xf32> -> vector<8x1xf32>
    %32 = vector.broadcast %31 : vector<8x1xf32> to vector<8x8xf32>
    %33 = arith.mulf %30, %32 : vector<8x8xf32>
    %c0_28 = arith.constant 0 : index
    %c0_29 = arith.constant 0 : index
    %34 = vector.load %arg7[%c0_28, %c0_29] : memref<32x32xbf16, #tpu.memory_space<vmem>>, vector<8x32xbf16>
    %c0_30 = arith.constant 0 : index
    %c0_31 = arith.constant 0 : index
    %35 = vector.load %arg12[%c0_30, %c0_31] : memref<8x32xf32, #tpu.memory_space<vmem>>, vector<8x32xf32>
    %36 = arith.truncf %33 : vector<8x8xf32> to vector<8x8xbf16>
    %cst_32 = arith.constant dense<0.000000e+00> : vector<8x32xf32>
    %37 = tpu.matmul %36, %34, %cst_32 {dimension_numbers = #tpu.dot_dimension_numbers<[1], [0], [0], [1], [0, 0, 1, 1], [], []>} : vector<8x8xbf16>, vector<8x32xbf16>, vector<8x32xf32> -> vector<8x32xf32>
    %38 = arith.addf %35, %37 : vector<8x32xf32>
    %c0_33 = arith.constant 0 : index
    %c0_34 = arith.constant 0 : index
    %39 = vector.load %arg12[%c0_33, %c0_34] : memref<8x32xf32, #tpu.memory_space<vmem>>, vector<8x32xf32>
    tpu.vector_store %arg12[%c0_33, %c0_34], %38 {strides = array<i32>} : memref<8x32xf32, #tpu.memory_space<vmem>>, vector<8x32xf32>,
    %c0_35 = arith.constant 0 : index
    %c8 = arith.constant 8 : index
    %40 = vector.load %arg10[%c0_35, %c8] : memref<8x32xbf16, #tpu.memory_space<vmem>>, vector<8x8xbf16>
    %c0_36 = arith.constant 0 : index
    %c8_37 = arith.constant 8 : index
    %41 = vector.load %arg11[%c0_36, %c8_37] : memref<16x64xbf16, #tpu.memory_space<vmem>>, vector<16x8xbf16>
    %c0_38 = arith.constant 0 : index
    %c40 = arith.constant 40 : index
    %42 = vector.load %arg11[%c0_38, %c40] : memref<16x64xbf16, #tpu.memory_space<vmem>>, vector<16x8xbf16>
    %cst_39 = arith.constant dense<0.000000e+00> : vector<8x16xf32>
    %43 = tpu.matmul %40, %41, %cst_39 {dimension_numbers = #tpu.dot_dimension_numbers<[1], [1], [0], [0], [0, 0, 1, 0], [], []>} : vector<8x8xbf16>, vector<16x8xbf16>, vector<8x16xf32> -> vector<8x16xf32>
    %cst_40 = arith.constant dense<0xFF800000> : vector<8xf32>
    %44 = vector.multi_reduction <maximumf>, %43, %cst_40 [1] : vector<8x16xf32> to vector<8xf32>
    %45 = vector.shape_cast %44 : vector<8xf32> to vector<8x1xf32>
    %46 = vector.broadcast %45 : vector<8x1xf32> to vector<8x16xf32>
    %47 = arith.subf %43, %46 : vector<8x16xf32>
    %48 = math.exp %47 : vector<8x16xf32>
    %cst_41 = arith.constant dense<0.000000e+00> : vector<8xf32>
    %49 = vector.multi_reduction <add>, %48, %cst_41 [1] : vector<8x16xf32> to vector<8xf32>
    %50 = vector.shape_cast %49 : vector<8xf32> to vector<8x1xf32>
    %51 = arith.truncf %48 : vector<8x16xf32> to vector<8x16xbf16>
    %cst_42 = arith.constant dense<0.000000e+00> : vector<8x8xf32>
    %52 = tpu.matmul %51, %42, %cst_42 {dimension_numbers = #tpu.dot_dimension_numbers<[1], [0], [0], [1], [0, 0, 1, 1], [], []>} : vector<8x16xbf16>, vector<16x8xbf16>, vector<8x8xf32> -> vector<8x8xf32>
    %53 = tpu.reciprocal %50 {approx = true} : vector<8x1xf32> -> vector<8x1xf32>
    %54 = vector.broadcast %53 : vector<8x1xf32> to vector<8x8xf32>
    %55 = arith.mulf %52, %54 : vector<8x8xf32>
    %c8_43 = arith.constant 8 : index
    %c0_44 = arith.constant 0 : index
    %56 = vector.load %arg7[%c8_43, %c0_44] : memref<32x32xbf16, #tpu.memory_space<vmem>>, vector<8x32xbf16>
    %c0_45 = arith.constant 0 : index
    %c0_46 = arith.constant 0 : index
    %57 = vector.load %arg12[%c0_45, %c0_46] : memref<8x32xf32, #tpu.memory_space<vmem>>, vector<8x32xf32>
    %58 = arith.truncf %55 : vector<8x8xf32> to vector<8x8xbf16>
    %cst_47 = arith.constant dense<0.000000e+00> : vector<8x32xf32>
    %59 = tpu.matmul %58, %56, %cst_47 {dimension_numbers = #tpu.dot_dimension_numbers<[1], [0], [0], [1], [0, 0, 1, 1], [], []>} : vector<8x8xbf16>, vector<8x32xbf16>, vector<8x32xf32> -> vector<8x32xf32>
    %60 = arith.addf %57, %59 : vector<8x32xf32>
    %c0_48 = arith.constant 0 : index
    %c0_49 = arith.constant 0 : index
    %61 = vector.load %arg12[%c0_48, %c0_49] : memref<8x32xf32, #tpu.memory_space<vmem>>, vector<8x32xf32>
    tpu.vector_store %arg12[%c0_48, %c0_49], %60 {strides = array<i32>} : memref<8x32xf32, #tpu.memory_space<vmem>>, vector<8x32xf32>,
    %c0_50 = arith.constant 0 : index
    %c16 = arith.constant 16 : index
    %62 = vector.load %arg10[%c0_50, %c16] : memref<8x32xbf16, #tpu.memory_space<vmem>>, vector<8x8xbf16>
    %c0_51 = arith.constant 0 : index
    %c16_52 = arith.constant 16 : index
    %63 = vector.load %arg11[%c0_51, %c16_52] : memref<16x64xbf16, #tpu.memory_space<vmem>>, vector<16x8xbf16>
    %c0_53 = arith.constant 0 : index
    %c48 = arith.constant 48 : index
    %64 = vector.load %arg11[%c0_53, %c48] : memref<16x64xbf16, #tpu.memory_space<vmem>>, vector<16x8xbf16>
    %cst_54 = arith.constant dense<0.000000e+00> : vector<8x16xf32>
    %65 = tpu.matmul %62, %63, %cst_54 {dimension_numbers = #tpu.dot_dimension_numbers<[1], [1], [0], [0], [0, 0, 1, 0], [], []>} : vector<8x8xbf16>, vector<16x8xbf16>, vector<8x16xf32> -> vector<8x16xf32>
    %cst_55 = arith.constant dense<0xFF800000> : vector<8xf32>
    %66 = vector.multi_reduction <maximumf>, %65, %cst_55 [1] : vector<8x16xf32> to vector<8xf32>
    %67 = vector.shape_cast %66 : vector<8xf32> to vector<8x1xf32>
    %68 = vector.broadcast %67 : vector<8x1xf32> to vector<8x16xf32>
    %69 = arith.subf %65, %68 : vector<8x16xf32>
    %70 = math.exp %69 : vector<8x16xf32>
    %cst_56 = arith.constant dense<0.000000e+00> : vector<8xf32>
    %71 = vector.multi_reduction <add>, %70, %cst_56 [1] : vector<8x16xf32> to vector<8xf32>
    %72 = vector.shape_cast %71 : vector<8xf32> to vector<8x1xf32>
    %73 = arith.truncf %70 : vector<8x16xf32> to vector<8x16xbf16>
    %cst_57 = arith.constant dense<0.000000e+00> : vector<8x8xf32>
    %74 = tpu.matmul %73, %64, %cst_57 {dimension_numbers = #tpu.dot_dimension_numbers<[1], [0], [0], [1], [0, 0, 1, 1], [], []>} : vector<8x16xbf16>, vector<16x8xbf16>, vector<8x8xf32> -> vector<8x8xf32>
    %75 = tpu.reciprocal %72 {approx = true} : vector<8x1xf32> -> vector<8x1xf32>
    %76 = vector.broadcast %75 : vector<8x1xf32> to vector<8x8xf32>
    %77 = arith.mulf %74, %76 : vector<8x8xf32>
    %c16_58 = arith.constant 16 : index
    %c0_59 = arith.constant 0 : index
    %78 = vector.load %arg7[%c16_58, %c0_59] : memref<32x32xbf16, #tpu.memory_space<vmem>>, vector<8x32xbf16>
    %c0_60 = arith.constant 0 : index
    %c0_61 = arith.constant 0 : index
    %79 = vector.load %arg12[%c0_60, %c0_61] : memref<8x32xf32, #tpu.memory_space<vmem>>, vector<8x32xf32>
    %80 = arith.truncf %77 : vector<8x8xf32> to vector<8x8xbf16>
    %cst_62 = arith.constant dense<0.000000e+00> : vector<8x32xf32>
    %81 = tpu.matmul %80, %78, %cst_62 {dimension_numbers = #tpu.dot_dimension_numbers<[1], [0], [0], [1], [0, 0, 1, 1], [], []>} : vector<8x8xbf16>, vector<8x32xbf16>, vector<8x32xf32> -> vector<8x32xf32>
    %82 = arith.addf %79, %81 : vector<8x32xf32>
    %c0_63 = arith.constant 0 : index
    %c0_64 = arith.constant 0 : index
    %83 = vector.load %arg12[%c0_63, %c0_64] : memref<8x32xf32, #tpu.memory_space<vmem>>, vector<8x32xf32>
    tpu.vector_store %arg12[%c0_63, %c0_64], %82 {strides = array<i32>} : memref<8x32xf32, #tpu.memory_space<vmem>>, vector<8x32xf32>,
    %c0_65 = arith.constant 0 : index
    %c24 = arith.constant 24 : index
    %84 = vector.load %arg10[%c0_65, %c24] : memref<8x32xbf16, #tpu.memory_space<vmem>>, vector<8x8xbf16>
    %c0_66 = arith.constant 0 : index
    %c24_67 = arith.constant 24 : index
    %85 = vector.load %arg11[%c0_66, %c24_67] : memref<16x64xbf16, #tpu.memory_space<vmem>>, vector<16x8xbf16>
    %c0_68 = arith.constant 0 : index
    %c56 = arith.constant 56 : index
    %86 = vector.load %arg11[%c0_68, %c56] : memref<16x64xbf16, #tpu.memory_space<vmem>>, vector<16x8xbf16>
    %cst_69 = arith.constant dense<0.000000e+00> : vector<8x16xf32>
    %87 = tpu.matmul %84, %85, %cst_69 {dimension_numbers = #tpu.dot_dimension_numbers<[1], [1], [0], [0], [0, 0, 1, 0], [], []>} : vector<8x8xbf16>, vector<16x8xbf16>, vector<8x16xf32> -> vector<8x16xf32>
    %cst_70 = arith.constant dense<0xFF800000> : vector<8xf32>
    %88 = vector.multi_reduction <maximumf>, %87, %cst_70 [1] : vector<8x16xf32> to vector<8xf32>
    %89 = vector.shape_cast %88 : vector<8xf32> to vector<8x1xf32>
    %90 = vector.broadcast %89 : vector<8x1xf32> to vector<8x16xf32>
    %91 = arith.subf %87, %90 : vector<8x16xf32>
    %92 = math.exp %91 : vector<8x16xf32>
    %cst_71 = arith.constant dense<0.000000e+00> : vector<8xf32>
    %93 = vector.multi_reduction <add>, %92, %cst_71 [1] : vector<8x16xf32> to vector<8xf32>
    %94 = vector.shape_cast %93 : vector<8xf32> to vector<8x1xf32>
    %95 = arith.truncf %92 : vector<8x16xf32> to vector<8x16xbf16>
    %cst_72 = arith.constant dense<0.000000e+00> : vector<8x8xf32>
    %96 = tpu.matmul %95, %86, %cst_72 {dimension_numbers = #tpu.dot_dimension_numbers<[1], [0], [0], [1], [0, 0, 1, 1], [], []>} : vector<8x16xbf16>, vector<16x8xbf16>, vector<8x8xf32> -> vector<8x8xf32>
    %97 = tpu.reciprocal %94 {approx = true} : vector<8x1xf32> -> vector<8x1xf32>
    %98 = vector.broadcast %97 : vector<8x1xf32> to vector<8x8xf32>
    %99 = arith.mulf %96, %98 : vector<8x8xf32>
    %c24_73 = arith.constant 24 : index
    %c0_74 = arith.constant 0 : index
    %100 = vector.load %arg7[%c24_73, %c0_74] : memref<32x32xbf16, #tpu.memory_space<vmem>>, vector<8x32xbf16>
    %c0_75 = arith.constant 0 : index
    %c0_76 = arith.constant 0 : index
    %101 = vector.load %arg12[%c0_75, %c0_76] : memref<8x32xf32, #tpu.memory_space<vmem>>, vector<8x32xf32>
    %102 = arith.truncf %99 : vector<8x8xf32> to vector<8x8xbf16>
    %cst_77 = arith.constant dense<0.000000e+00> : vector<8x32xf32>
    %103 = tpu.matmul %102, %100, %cst_77 {dimension_numbers = #tpu.dot_dimension_numbers<[1], [0], [0], [1], [0, 0, 1, 1], [], []>} : vector<8x8xbf16>, vector<8x32xbf16>, vector<8x32xf32> -> vector<8x32xf32>
    %104 = arith.addf %101, %103 : vector<8x32xf32>
    %c0_78 = arith.constant 0 : index
    %c0_79 = arith.constant 0 : index
    %105 = vector.load %arg12[%c0_78, %c0_79] : memref<8x32xf32, #tpu.memory_space<vmem>>, vector<8x32xf32>
    tpu.vector_store %arg12[%c0_78, %c0_79], %104 {strides = array<i32>} : memref<8x32xf32, #tpu.memory_space<vmem>>, vector<8x32xf32>,
    %c0_80 = arith.constant 0 : index
    %c0_81 = arith.constant 0 : index
    %106 = vector.load %arg12[%c0_80, %c0_81] : memref<8x32xf32, #tpu.memory_space<vmem>>, vector<8x32xf32>
    %c0_82 = arith.constant 0 : index
    %c0_83 = arith.constant 0 : index
    %107 = vector.load %arg8[%c0_82, %c0_83] : memref<1x32xf32, #tpu.memory_space<vmem>>, vector<1x32xf32>
    %108 = vector.broadcast %107 : vector<1x32xf32> to vector<8x32xf32>
    %109 = arith.addf %106, %108 : vector<8x32xf32>
    %c0_84 = arith.constant 0 : index
    %c0_85 = arith.constant 0 : index
    %110 = vector.load %arg9[%c0_84, %c0_85] : memref<8x32xf32, #tpu.memory_space<vmem>>, vector<8x32xf32>
    tpu.vector_store %arg9[%c0_84, %c0_85], %109 {strides = array<i32>} : memref<8x32xf32, #tpu.memory_space<vmem>>, vector<8x32xf32>,
    return
  }
  func.func @transform_0(%arg0: i32) -> (i32, i32) {
    %c0_i32 = arith.constant 0 : i32
    %c0_i32_0 = arith.constant 0 : i32
    return %arg0, %c0_i32 : i32, i32
  }
  func.func @transform_1(%arg0: i32) -> (i32, i32) {
    %c0_i32 = arith.constant 0 : i32
    %c0_i32_0 = arith.constant 0 : i32
    return %arg0, %c0_i32 : i32, i32
  }
  func.func @transform_2(%arg0: i32) -> (i32, i32) {
    %c0_i32 = arith.constant 0 : i32
    %c0_i32_0 = arith.constant 0 : i32
    %c0_i32_1 = arith.constant 0 : i32
    return %c0_i32, %c0_i32_0 : i32, i32
  }
  func.func @transform_3(%arg0: i32) -> (i32, i32) {
    %c0_i32 = arith.constant 0 : i32
    %c0_i32_0 = arith.constant 0 : i32
    %c0_i32_1 = arith.constant 0 : i32
    return %c0_i32, %c0_i32_0 : i32, i32
  }
  func.func @transform_4(%arg0: i32) -> (i32, i32) {
    %c0_i32 = arith.constant 0 : i32
    %c0_i32_0 = arith.constant 0 : i32
    %c0_i32_1 = arith.constant 0 : i32
    return %c0_i32, %c0_i32_0 : i32, i32
  }
  func.func @transform_5(%arg0: i32) -> (i32, i32) {
    %c0_i32 = arith.constant 0 : i32
    %c0_i32_0 = arith.constant 0 : i32
    %c0_i32_1 = arith.constant 0 : i32
    return %c0_i32, %c0_i32_0 : i32, i32
  }
  func.func @transform_6(%arg0: i32) -> (i32, i32) {
    %c0_i32 = arith.constant 0 : i32
    %c0_i32_0 = arith.constant 0 : i32
    %c0_i32_1 = arith.constant 0 : i32
    return %c0_i32, %c0_i32_0 : i32, i32
  }
  func.func @transform_7(%arg0: i32) -> (i32, i32) {
    %c0_i32 = arith.constant 0 : i32
    %c0_i32_0 = arith.constant 0 : i32
    %c0_i32_1 = arith.constant 0 : i32
    return %c0_i32, %c0_i32_0 : i32, i32
  }
  func.func @transform_8(%arg0: i32) -> (i32, i32) {
    %c0_i32 = arith.constant 0 : i32
    %c0_i32_0 = arith.constant 0 : i32
    return %arg0, %c0_i32 : i32, i32
  }
}

module attributes {stable_mosaic.version = 11 : i64} {
  func.func @mha_kernel(%arg0: i32, %arg1: memref<8x32xbf16, #tpu.memory_space<vmem>>, %arg2: memref<16x32xbf16, #tpu.memory_space<vmem>>, %arg3: memref<32x32xbf16, #tpu.memory_space<vmem>>, %arg4: memref<1x32xf32, #tpu.memory_space<vmem>>, %arg5: memref<32x64xbf16, #tpu.memory_space<vmem>>, %arg6: memref<1x64xf32, #tpu.memory_space<vmem>>, %arg7: memref<32x32xbf16, #tpu.memory_space<vmem>>, %arg8: memref<1x32xf32, #tpu.memory_space<vmem>>, %arg9: memref<8x32xf32, #tpu.memory_space<vmem>>, %arg10: memref<8x32xbf16, #tpu.memory_space<vmem>>, %arg11: memref<16x64xbf16, #tpu.memory_space<vmem>>, %arg12: memref<8x32xf32, #tpu.memory_space<vmem>>) attributes {dimension_semantics = [#tpu.dimension_semantics<parallel>], iteration_bounds = array<i64: 2>, scalar_prefetch = 0 : i64, scratch_operands = 3 : i64, tpu.core_type = #tpu.core_type<tc>, window_params = [{transform_indices = @transform_0, window_bounds = array<i64: 8, 32>}, {transform_indices = @transform_1, window_bounds = array<i64: 16, 32>}, {pipeline_mode = #tpu.pipeline_mode<synchronous>, transform_indices = @transform_2, window_bounds = array<i64: 32, 32>}, {pipeline_mode = #tpu.pipeline_mode<synchronous>, transform_indices = @transform_3, window_bounds = array<i64: 1, 32>}, {pipeline_mode = #tpu.pipeline_mode<synchronous>, transform_indices = @transform_4, window_bounds = array<i64: 32, 64>}, {pipeline_mode = #tpu.pipeline_mode<synchronous>, transform_indices = @transform_5, window_bounds = array<i64: 1, 64>}, {pipeline_mode = #tpu.pipeline_mode<synchronous>, transform_indices = @transform_6, window_bounds = array<i64: 32, 32>}, {pipeline_mode = #tpu.pipeline_mode<synchronous>, transform_indices = @transform_7, window_bounds = array<i64: 1, 32>}, {transform_indices = @transform_8, window_bounds = array<i64: 8, 32>}]} {
    %c0 = arith.constant 0 : index
    %c0_0 = arith.constant 0 : index
    %0 = vector.load %arg1[%c0, %c0_0] : memref<8x32xbf16, #tpu.memory_space<vmem>>, vector<8x32xbf16>
    %c0_1 = arith.constant 0 : index
    %c0_2 = arith.constant 0 : index
    %1 = vector.load %arg3[%c0_1, %c0_2] : memref<32x32xbf16, #tpu.memory_space<vmem>>, vector<32x32xbf16>
    %cst = arith.constant dense<0.000000e+00> : vector<8x32xf32>
    %2 = tpu.matmul %0, %1, %cst {dimension_numbers = #tpu.dot_dimension_numbers<[1], [0], [0], [1], [0, 0, 1, 1], [], []>} : vector<8x32xbf16>, vector<32x32xbf16>, vector<8x32xf32> -> vector<8x32xf32>
    %c0_3 = arith.constant 0 : index
    %c0_4 = arith.constant 0 : index
    %3 = vector.load %arg4[%c0_3, %c0_4] : memref<1x32xf32, #tpu.memory_space<vmem>>, vector<1x32xf32>
    %4 = vector.broadcast %3 : vector<1x32xf32> to vector<8x32xf32>
    %5 = arith.addf %2, %4 : vector<8x32xf32>
    %6 = arith.truncf %5 : vector<8x32xf32> to vector<8x32xbf16>
    %c0_5 = arith.constant 0 : index
    %c0_6 = arith.constant 0 : index
    %7 = vector.load %arg10[%c0_5, %c0_6] : memref<8x32xbf16, #tpu.memory_space<vmem>>, vector<8x32xbf16>
    tpu.vector_store %arg10[%c0_5, %c0_6], %6 {strides = array<i32>} : memref<8x32xbf16, #tpu.memory_space<vmem>>, vector<8x32xbf16>,
    %c0_7 = arith.constant 0 : index
    %c0_8 = arith.constant 0 : index
    %8 = vector.load %arg2[%c0_7, %c0_8] : memref<16x32xbf16, #tpu.memory_space<vmem>>, vector<16x32xbf16>
    %c0_9 = arith.constant 0 : index
    %c0_10 = arith.constant 0 : index
    %9 = vector.load %arg5[%c0_9, %c0_10] : memref<32x64xbf16, #tpu.memory_space<vmem>>, vector<32x64xbf16>
    %cst_11 = arith.constant dense<0.000000e+00> : vector<16x64xf32>
    %10 = tpu.matmul %8, %9, %cst_11 {dimension_numbers = #tpu.dot_dimension_numbers<[1], [0], [0], [1], [0, 0, 1, 1], [], []>} : vector<16x32xbf16>, vector<32x64xbf16>, vector<16x64xf32> -> vector<16x64xf32>
    %c0_12 = arith.constant 0 : index
    %c0_13 = arith.constant 0 : index
    %11 = vector.load %arg6[%c0_12, %c0_13] : memref<1x64xf32, #tpu.memory_space<vmem>>, vector<1x64xf32>
    %12 = vector.broadcast %11 : vector<1x64xf32> to vector<16x64xf32>
    %13 = arith.addf %10, %12 : vector<16x64xf32>
    %14 = arith.truncf %13 : vector<16x64xf32> to vector<16x64xbf16>
    %c0_14 = arith.constant 0 : index
    %c0_15 = arith.constant 0 : index
    %15 = vector.load %arg11[%c0_14, %c0_15] : memref<16x64xbf16, #tpu.memory_space<vmem>>, vector<16x64xbf16>
    tpu.vector_store %arg11[%c0_14, %c0_15], %14 {strides = array<i32>} : memref<16x64xbf16, #tpu.memory_space<vmem>>, vector<16x64xbf16>,
    %cst_16 = arith.constant 0.000000e+00 : f32
    %16 = vector.broadcast %cst_16 : f32 to vector<8x32xf32>
    %c0_17 = arith.constant 0 : index
    %c0_18 = arith.constant 0 : index
    %17 = vector.load %arg12[%c0_17, %c0_18] : memref<8x32xf32, #tpu.memory_space<vmem>>, vector<8x32xf32>
    tpu.vector_store %arg12[%c0_17, %c0_18], %16 {strides = array<i32>} : memref<8x32xf32, #tpu.memory_space<vmem>>, vector<8x32xf32>,
    %c0_19 = arith.constant 0 : index
    %c0_20 = arith.constant 0 : index
    %18 = vector.load %arg10[%c0_19, %c0_20] : memref<8x32xbf16, #tpu.memory_space<vmem>>, vector<8x8xbf16>
    %c0_21 = arith.constant 0 : index
    %c0_22 = arith.constant 0 : index
    %19 = vector.load %arg11[%c0_21, %c0_22] : memref<16x64xbf16, #tpu.memory_space<vmem>>, vector<16x8xbf16>
    %c0_23 = arith.constant 0 : index
    %c32 = arith.constant 32 : index
    %20 = vector.load %arg11[%c0_23, %c32] : memref<16x64xbf16, #tpu.memory_space<vmem>>, vector<16x8xbf16>
    %cst_24 = arith.constant dense<0.000000e+00> : vector<8x16xf32>
    %21 = tpu.matmul %18, %19, %cst_24 {dimension_numbers = #tpu.dot_dimension_numbers<[1], [1], [0], [0], [0, 0, 1, 0], [], []>} : vector<8x8xbf16>, vector<16x8xbf16>, vector<8x16xf32> -> vector<8x16xf32>
    %cst_25 = arith.constant dense<0xFF800000> : vector<8xf32>
    %22 = vector.multi_reduction <maximumf>, %21, %cst_25 [1] : vector<8x16xf32> to vector<8xf32>
    %23 = vector.shape_cast %22 : vector<8xf32> to vector<8x1xf32>
    %24 = vector.broadcast %23 : vector<8x1xf32> to vector<8x16xf32>
    %25 = arith.subf %21, %24 : vector<8x16xf32>
    %26 = math.exp %25 : vector<8x16xf32>
    %cst_26 = arith.constant dense<0.000000e+00> : vector<8xf32>
    %27 = vector.multi_reduction <add>, %26, %cst_26 [1] : vector<8x16xf32> to vector<8xf32>
    %28 = vector.shape_cast %27 : vector<8xf32> to vector<8x1xf32>
    %29 = arith.truncf %26 : vector<8x16xf32> to vector<8x16xbf16>
    %cst_27 = arith.constant dense<0.000000e+00> : vector<8x8xf32>
    %30 = tpu.matmul %29, %20, %cst_27 {dimension_numbers = #tpu.dot_dimension_numbers<[1], [0], [0], [1], [0, 0, 1, 1], [], []>} : vector<8x16xbf16>, vector<16x8xbf16>, vector<8x8xf32> -> vector<8x8xf32>
    %31 = tpu.reciprocal %28 {approx = true} : vector<8x1xf32> -> vector<8x1xf32>
    %32 = vector.broadcast %31 : vector<8x1xf32> to vector<8x8xf32>
    %33 = arith.mulf %30, %32 : vector<8x8xf32>
    %c0_28 = arith.constant 0 : index
    %c0_29 = arith.constant 0 : index
    %34 = vector.load %arg7[%c0_28, %c0_29] : memref<32x32xbf16, #tpu.memory_space<vmem>>, vector<8x32xbf16>
    %c0_30 = arith.constant 0 : index
    %c0_31 = arith.constant 0 : index
    %35 = vector.load %arg12[%c0_30, %c0_31] : memref<8x32xf32, #tpu.memory_space<vmem>>, vector<8x32xf32>
    %36 = arith.truncf %33 : vector<8x8xf32> to vector<8x8xbf16>
    %cst_32 = arith.constant dense<0.000000e+00> : vector<8x32xf32>
    %37 = tpu.matmul %36, %34, %cst_32 {dimension_numbers = #tpu.dot_dimension_numbers<[1], [0], [0], [1], [0, 0, 1, 1], [], []>} : vector<8x8xbf16>, vector<8x32xbf16>, vector<8x32xf32> -> vector<8x32xf32>
    %38 = arith.addf %35, %37 : vector<8x32xf32>
    %c0_33 = arith.constant 0 : index
    %c0_34 = arith.constant 0 : index
    %39 = vector.load %arg12[%c0_33, %c0_34] : memref<8x32xf32, #tpu.memory_space<vmem>>, vector<8x32xf32>
    tpu.vector_store %arg12[%c0_33, %c0_34], %38 {strides = array<i32>} : memref<8x32xf32, #tpu.memory_space<vmem>>, vector<8x32xf32>,
    %c0_35 = arith.constant 0 : index
    %c8 = arith.constant 8 : index
    %40 = vector.load %arg10[%c0_35, %c8] : memref<8x32xbf16, #tpu.memory_space<vmem>>, vector<8x8xbf16>
    %c0_36 = arith.constant 0 : index
    %c8_37 = arith.constant 8 : index
    %41 = vector.load %arg11[%c0_36, %c8_37] : memref<16x64xbf16, #tpu.memory_space<vmem>>, vector<16x8xbf16>
    %c0_38 = arith.constant 0 : index
    %c40 = arith.constant 40 : index
    %42 = vector.load %arg11[%c0_38, %c40] : memref<16x64xbf16, #tpu.memory_space<vmem>>, vector<16x8xbf16>
    %cst_39 = arith.constant dense<0.000000e+00> : vector<8x16xf32>
    %43 = tpu.matmul %40, %41, %cst_39 {dimension_numbers = #tpu.dot_dimension_numbers<[1], [1], [0], [0], [0, 0, 1, 0], [], []>} : vector<8x8xbf16>, vector<16x8xbf16>, vector<8x16xf32> -> vector<8x16xf32>
    %cst_40 = arith.constant dense<0xFF800000> : vector<8xf32>
    %44 = vector.multi_reduction <maximumf>, %43, %cst_40 [1] : vector<8x16xf32> to vector<8xf32>
    %45 = vector.shape_cast %44 : vector<8xf32> to vector<8x1xf32>
    %46 = vector.broadcast %45 : vector<8x1xf32> to vector<8x16xf32>
    %47 = arith.subf %43, %46 : vector<8x16xf32>
    %48 = math.exp %47 : vector<8x16xf32>
    %cst_41 = arith.constant dense<0.000000e+00> : vector<8xf32>
    %49 = vector.multi_reduction <add>, %48, %cst_41 [1] : vector<8x16xf32> to vector<8xf32>
    %50 = vector.shape_cast %49 : vector<8xf32> to vector<8x1xf32>
    %51 = arith.truncf %48 : vector<8x16xf32> to vector<8x16xbf16>
    %cst_42 = arith.constant dense<0.000000e+00> : vector<8x8xf32>
    %52 = tpu.matmul %51, %42, %cst_42 {dimension_numbers = #tpu.dot_dimension_numbers<[1], [0], [0], [1], [0, 0, 1, 1], [], []>} : vector<8x16xbf16>, vector<16x8xbf16>, vector<8x8xf32> -> vector<8x8xf32>
    %53 = tpu.reciprocal %50 {approx = true} : vector<8x1xf32> -> vector<8x1xf32>
    %54 = vector.broadcast %53 : vector<8x1xf32> to vector<8x8xf32>
    %55 = arith.mulf %52, %54 : vector<8x8xf32>
    %c8_43 = arith.constant 8 : index
    %c0_44 = arith.constant 0 : index
    %56 = vector.load %arg7[%c8_43, %c0_44] : memref<32x32xbf16, #tpu.memory_space<vmem>>, vector<8x32xbf16>
    %c0_45 = arith.constant 0 : index
    %c0_46 = arith.constant 0 : index
    %57 = vector.load %arg12[%c0_45, %c0_46] : memref<8x32xf32, #tpu.memory_space<vmem>>, vector<8x32xf32>
    %58 = arith.truncf %55 : vector<8x8xf32> to vector<8x8xbf16>
    %cst_47 = arith.constant dense<0.000000e+00> : vector<8x32xf32>
    %59 = tpu.matmul %58, %56, %cst_47 {dimension_numbers = #tpu.dot_dimension_numbers<[1], [0], [0], [1], [0, 0, 1, 1], [], []>} : vector<8x8xbf16>, vector<8x32xbf16>, vector<8x32xf32> -> vector<8x32xf32>
    %60 = arith.addf %57, %59 : vector<8x32xf32>
    %c0_48 = arith.constant 0 : index
    %c0_49 = arith.constant 0 : index
    %61 = vector.load %arg12[%c0_48, %c0_49] : memref<8x32xf32, #tpu.memory_space<vmem>>, vector<8x32xf32>
    tpu.vector_store %arg12[%c0_48, %c0_49], %60 {strides = array<i32>} : memref<8x32xf32, #tpu.memory_space<vmem>>, vector<8x32xf32>,
    %c0_50 = arith.constant 0 : index
    %c16 = arith.constant 16 : index
    %62 = vector.load %arg10[%c0_50, %c16] : memref<8x32xbf16, #tpu.memory_space<vmem>>, vector<8x8xbf16>
    %c0_51 = arith.constant 0 : index
    %c16_52 = arith.constant 16 : index
    %63 = vector.load %arg11[%c0_51, %c16_52] : memref<16x64xbf16, #tpu.memory_space<vmem>>, vector<16x8xbf16>
    %c0_53 = arith.constant 0 : index
    %c48 = arith.constant 48 : index
    %64 = vector.load %arg11[%c0_53, %c48] : memref<16x64xbf16, #tpu.memory_space<vmem>>, vector<16x8xbf16>
    %cst_54 = arith.constant dense<0.000000e+00> : vector<8x16xf32>
    %65 = tpu.matmul %62, %63, %cst_54 {dimension_numbers = #tpu.dot_dimension_numbers<[1], [1], [0], [0], [0, 0, 1, 0], [], []>} : vector<8x8xbf16>, vector<16x8xbf16>, vector<8x16xf32> -> vector<8x16xf32>
    %cst_55 = arith.constant dense<0xFF800000> : vector<8xf32>
    %66 = vector.multi_reduction <maximumf>, %65, %cst_55 [1] : vector<8x16xf32> to vector<8xf32>
    %67 = vector.shape_cast %66 : vector<8xf32> to vector<8x1xf32>
    %68 = vector.broadcast %67 : vector<8x1xf32> to vector<8x16xf32>
    %69 = arith.subf %65, %68 : vector<8x16xf32>
    %70 = math.exp %69 : vector<8x16xf32>
    %cst_56 = arith.constant dense<0.000000e+00> : vector<8xf32>
    %71 = vector.multi_reduction <add>, %70, %cst_56 [1] : vector<8x16xf32> to vector<8xf32>
    %72 = vector.shape_cast %71 : vector<8xf32> to vector<8x1xf32>
    %73 = arith.truncf %70 : vector<8x16xf32> to vector<8x16xbf16>
    %cst_57 = arith.constant dense<0.000000e+00> : vector<8x8xf32>
    %74 = tpu.matmul %73, %64, %cst_57 {dimension_numbers = #tpu.dot_dimension_numbers<[1], [0], [0], [1], [0, 0, 1, 1], [], []>} : vector<8x16xbf16>, vector<16x8xbf16>, vector<8x8xf32> -> vector<8x8xf32>
    %75 = tpu.reciprocal %72 {approx = true} : vector<8x1xf32> -> vector<8x1xf32>
    %76 = vector.broadcast %75 : vector<8x1xf32> to vector<8x8xf32>
    %77 = arith.mulf %74, %76 : vector<8x8xf32>
    %c16_58 = arith.constant 16 : index
    %c0_59 = arith.constant 0 : index
    %78 = vector.load %arg7[%c16_58, %c0_59] : memref<32x32xbf16, #tpu.memory_space<vmem>>, vector<8x32xbf16>
    %c0_60 = arith.constant 0 : index
    %c0_61 = arith.constant 0 : index
    %79 = vector.load %arg12[%c0_60, %c0_61] : memref<8x32xf32, #tpu.memory_space<vmem>>, vector<8x32xf32>
    %80 = arith.truncf %77 : vector<8x8xf32> to vector<8x8xbf16>
    %cst_62 = arith.constant dense<0.000000e+00> : vector<8x32xf32>
    %81 = tpu.matmul %80, %78, %cst_62 {dimension_numbers = #tpu.dot_dimension_numbers<[1], [0], [0], [1], [0, 0, 1, 1], [], []>} : vector<8x8xbf16>, vector<8x32xbf16>, vector<8x32xf32> -> vector<8x32xf32>
    %82 = arith.addf %79, %81 : vector<8x32xf32>
    %c0_63 = arith.constant 0 : index
    %c0_64 = arith.constant 0 : index
    %83 = vector.load %arg12[%c0_63, %c0_64] : memref<8x32xf32, #tpu.memory_space<vmem>>, vector<8x32xf32>
    tpu.vector_store %arg12[%c0_63, %c0_64], %82 {strides = array<i32>} : memref<8x32xf32, #tpu.memory_space<vmem>>, vector<8x32xf32>,
    %c0_65 = arith.constant 0 : index
    %c24 = arith.constant 24 : index
    %84 = vector.load %arg10[%c0_65, %c24] : memref<8x32xbf16, #tpu.memory_space<vmem>>, vector<8x8xbf16>
    %c0_66 = arith.constant 0 : index
    %c24_67 = arith.constant 24 : index
    %85 = vector.load %arg11[%c0_66, %c24_67] : memref<16x64xbf16, #tpu.memory_space<vmem>>, vector<16x8xbf16>
    %c0_68 = arith.constant 0 : index
    %c56 = arith.constant 56 : index
    %86 = vector.load %arg11[%c0_68, %c56] : memref<16x64xbf16, #tpu.memory_space<vmem>>, vector<16x8xbf16>
    %cst_69 = arith.constant dense<0.000000e+00> : vector<8x16xf32>
    %87 = tpu.matmul %84, %85, %cst_69 {dimension_numbers = #tpu.dot_dimension_numbers<[1], [1], [0], [0], [0, 0, 1, 0], [], []>} : vector<8x8xbf16>, vector<16x8xbf16>, vector<8x16xf32> -> vector<8x16xf32>
    %cst_70 = arith.constant dense<0xFF800000> : vector<8xf32>
    %88 = vector.multi_reduction <maximumf>, %87, %cst_70 [1] : vector<8x16xf32> to vector<8xf32>
    %89 = vector.shape_cast %88 : vector<8xf32> to vector<8x1xf32>
    %90 = vector.broadcast %89 : vector<8x1xf32> to vector<8x16xf32>
    %91 = arith.subf %87, %90 : vector<8x16xf32>
    %92 = math.exp %91 : vector<8x16xf32>
    %cst_71 = arith.constant dense<0.000000e+00> : vector<8xf32>
    %93 = vector.multi_reduction <add>, %92, %cst_71 [1] : vector<8x16xf32> to vector<8xf32>
    %94 = vector.shape_cast %93 : vector<8xf32> to vector<8x1xf32>
    %95 = arith.truncf %92 : vector<8x16xf32> to vector<8x16xbf16>
    %cst_72 = arith.constant dense<0.000000e+00> : vector<8x8xf32>
    %96 = tpu.matmul %95, %86, %cst_72 {dimension_numbers = #tpu.dot_dimension_numbers<[1], [0], [0], [1], [0, 0, 1, 1], [], []>} : vector<8x16xbf16>, vector<16x8xbf16>, vector<8x8xf32> -> vector<8x8xf32>
    %97 = tpu.reciprocal %94 {approx = true} : vector<8x1xf32> -> vector<8x1xf32>
    %98 = vector.broadcast %97 : vector<8x1xf32> to vector<8x8xf32>
    %99 = arith.mulf %96, %98 : vector<8x8xf32>
    %c24_73 = arith.constant 24 : index
    %c0_74 = arith.constant 0 : index
    %100 = vector.load %arg7[%c24_73, %c0_74] : memref<32x32xbf16, #tpu.memory_space<vmem>>, vector<8x32xbf16>
    %c0_75 = arith.constant 0 : index
    %c0_76 = arith.constant 0 : index
    %101 = vector.load %arg12[%c0_75, %c0_76] : memref<8x32xf32, #tpu.memory_space<vmem>>, vector<8x32xf32>
    %102 = arith.truncf %99 : vector<8x8xf32> to vector<8x8xbf16>
    %cst_77 = arith.constant dense<0.000000e+00> : vector<8x32xf32>
    %103 = tpu.matmul %102, %100, %cst_77 {dimension_numbers = #tpu.dot_dimension_numbers<[1], [0], [0], [1], [0, 0, 1, 1], [], []>} : vector<8x8xbf16>, vector<8x32xbf16>, vector<8x32xf32> -> vector<8x32xf32>
    %104 = arith.addf %101, %103 : vector<8x32xf32>
    %c0_78 = arith.constant 0 : index
    %c0_79 = arith.constant 0 : index
    %105 = vector.load %arg12[%c0_78, %c0_79] : memref<8x32xf32, #tpu.memory_space<vmem>>, vector<8x32xf32>
    tpu.vector_store %arg12[%c0_78, %c0_79], %104 {strides = array<i32>} : memref<8x32xf32, #tpu.memory_space<vmem>>, vector<8x32xf32>,
    %c0_80 = arith.constant 0 : index
    %c0_81 = arith.constant 0 : index
    %106 = vector.load %arg12[%c0_80, %c0_81] : memref<8x32xf32, #tpu.memory_space<vmem>>, vector<8x32xf32>
    %c0_82 = arith.constant 0 : index
    %c0_83 = arith.constant 0 : index
    %107 = vector.load %arg8[%c0_82, %c0_83] : memref<1x32xf32, #tpu.memory_space<vmem>>, vector<1x32xf32>
    %108 = vector.broadcast %107 : vector<1x32xf32> to vector<8x32xf32>
    %109 = arith.addf %106, %108 : vector<8x32xf32>
    %c0_84 = arith.constant 0 : index
    %c0_85 = arith.constant 0 : index
    %110 = vector.load %arg9[%c0_84, %c0_85] : memref<8x32xf32, #tpu.memory_space<vmem>>, vector<8x32xf32>
    tpu.vector_store %arg9[%c0_84, %c0_85], %109 {strides = array<i32>} : memref<8x32xf32, #tpu.memory_space<vmem>>, vector<8x32xf32>,
    return
  }
  func.func @transform_0(%arg0: i32) -> (i32, i32) {
    %c0_i32 = arith.constant 0 : i32
    %c0_i32_0 = arith.constant 0 : i32
    return %arg0, %c0_i32 : i32, i32
  }
  func.func @transform_1(%arg0: i32) -> (i32, i32) {
    %c0_i32 = arith.constant 0 : i32
    %c0_i32_0 = arith.constant 0 : i32
    return %arg0, %c0_i32 : i32, i32
  }
  func.func @transform_2(%arg0: i32) -> (i32, i32) {
    %c0_i32 = arith.constant 0 : i32
    %c0_i32_0 = arith.constant 0 : i32
    %c0_i32_1 = arith.constant 0 : i32
    return %c0_i32, %c0_i32_0 : i32, i32
  }
  func.func @transform_3(%arg0: i32) -> (i32, i32) {
    %c0_i32 = arith.constant 0 : i32
    %c0_i32_0 = arith.constant 0 : i32
    %c0_i32_1 = arith.constant 0 : i32
    return %c0_i32, %c0_i32_0 : i32, i32
  }
  func.func @transform_4(%arg0: i32) -> (i32, i32) {
    %c0_i32 = arith.constant 0 : i32
    %c0_i32_0 = arith.constant 0 : i32
    %c0_i32_1 = arith.constant 0 : i32
    return %c0_i32, %c0_i32_0 : i32, i32
  }
  func.func @transform_5(%arg0: i32) -> (i32, i32) {
    %c0_i32 = arith.constant 0 : i32
    %c0_i32_0 = arith.constant 0 : i32
    %c0_i32_1 = arith.constant 0 : i32
    return %c0_i32, %c0_i32_0 : i32, i32
  }
  func.func @transform_6(%arg0: i32) -> (i32, i32) {
    %c0_i32 = arith.constant 0 : i32
    %c0_i32_0 = arith.constant 0 : i32
    %c0_i32_1 = arith.constant 0 : i32
    return %c0_i32, %c0_i32_0 : i32, i32
  }
  func.func @transform_7(%arg0: i32) -> (i32, i32) {
    %c0_i32 = arith.constant 0 : i32
    %c0_i32_0 = arith.constant 0 : i32
    %c0_i32_1 = arith.constant 0 : i32
    return %c0_i32, %c0_i32_0 : i32, i32
  }
  func.func @transform_8(%arg0: i32) -> (i32, i32) {
    %c0_i32 = arith.constant 0 : i32
    %c0_i32_0 = arith.constant 0 : i32
    return %arg0, %c0_i32 : i32, i32
  }
}

</mosaic_0001>

<llo_original>
// kernel: tpu_custom_call.1
$region0: #{tpu_custom_call.1}
  #allocation0 [shape = 'u32[]', space=smem, size = 0x4, offset = 0x4, fixed_abs, tag = 'smem constant byte address 0x4 - core index']
  #allocation1 [shape = 'u32[144,128]{1,0:T(1,128)}', space=vmem, size = 0x12000, scoped, tag = 'internal scratch']
  #allocation2 [shape = 'bf16[8,32]{1,0:T(8,128)(2,1)}', space=vmem, size = 0x800, scoped, tag = 'scratch operand']
  #allocation3 [shape = 'bf16[16,64]{1,0:T(8,128)(2,1)}', space=vmem, size = 0x1000, scoped, tag = 'scratch operand']
  #allocation4 [shape = 'f32[8,32]{1,0:T(8,128)}', space=vmem, size = 0x1000, scoped, tag = 'scratch operand']
  %s0 = inlined_call_operand.hbm [shape: bf16[16,32], index: 0, kind: input, shape index: {}]
  %s1 = inlined_call_operand.hbm [shape: bf16[32,32], index: 1, kind: input, shape index: {}]
  %s2 = inlined_call_operand.hbm [shape: bf16[32,32], index: 2, kind: input, shape index: {}]
  %s3 = inlined_call_operand.vmem [shape: f32[1,32], index: 3, kind: input, shape index: {}]
  %s4 = inlined_call_operand.hbm [shape: bf16[32,64], index: 4, kind: input, shape index: {}]
  %s5 = inlined_call_operand.vmem [shape: f32[1,64], index: 5, kind: input, shape index: {}]
  %s6 = inlined_call_operand.hbm [shape: bf16[32,32], index: 6, kind: input, shape index: {}]
  %s7 = inlined_call_operand.vmem [shape: f32[1,32], index: 7, kind: input, shape index: {}]
  %s8 = inlined_call_operand.hbm [shape: f32[16,32], index: 8, kind: output, shape index: {}]
  %s9 = sld [smem:[#allocation0]]
  $region85: #{tpu_custom_call.1} parent=0
    _
  %s11 = ssub.s32 1, %s9
  %s12 = scalar_select 0, %s11, %s9
  $region1: #{tpu_custom_call.1} parent=0
    #allocation5 [shape = 'u8[4096]{0}', space=vmem, size = 0x1000, scoped, tag = 'input window, operand 0']
    #allocation6 [shape = 's32[2]{0}', space=sflag, size = 0x8, scoped, tag = 'scoped memory for tpu_custom_call.1']
    #allocation7 [shape = 's32[2]{0}', space=sflag, size = 0x8, scoped, tag = 'scoped memory for tpu_custom_call.1']
    #allocation8 [shape = 'u8[8192]{0}', space=vmem, size = 0x2000, scoped, tag = 'input window, operand 1']
    #allocation9 [shape = 's32[2]{0}', space=sflag, size = 0x8, scoped, tag = 'scoped memory for tpu_custom_call.1']
    #allocation10 [shape = 'u8[8192]{0}', space=vmem, size = 0x2000, scoped, tag = 'input window, operand 2, single buffered']
    #allocation11 [shape = 'u8[8192]{0}', space=vmem, size = 0x2000, scoped, tag = 'input window, operand 4, single buffered']
    #allocation12 [shape = 's32[1]{0}', space=sflag, size = 0x4, scoped, tag = 'scoped memory for tpu_custom_call.1']
    #allocation13 [shape = 'u8[8192]{0}', space=vmem, size = 0x2000, scoped, tag = 'input window, operand 6, single buffered']
    #allocation14 [shape = 'u8[8192]{0}', space=vmem, size = 0x2000, scoped, tag = 'output window, operand 0']
    %13 = vsyncpa [#allocation6], 0
    %s14 = scalar_lea.sflag [#allocation6], 1
    %15 = vsyncpa %s14, 0
    %16 = vsyncpa [#allocation9], 0
    %s17 = scalar_lea.sflag [#allocation9], 1
    %18 = vsyncpa %s17, 0
    %19 = vsyncpa [#allocation12], 0
    %20 = vsyncpa [#allocation7], 0
    %s21 = scalar_lea.sflag [#allocation7], 1
    %22 = vsyncpa %s21, 0
    loop: start=0, step=1, limit=4
    $region2: #{tpu_custom_call.1} parent=1 // loop_pre_header
      _
    $region3: #{tpu_custom_call.1} parent=1 // loop_header
      %s24 = sphi 0, %s28
      %p25 = scmp.ge.s32.totalorder %s24, 4
      %s34 = sphi 0, %s36
      %s37 = sphi 0, %s34
      %s38 = sphi 0, %s37
      %s54 = sphi 0, %s38
      %s60 = sphi 0, %s62
      %s63 = sphi 0, %s60
      %s64 = sphi 0, %s63
      %s80 = sphi 0, %s64
      %s84 = sphi 0, %s84
      %s86 = sphi 0, %s84
      %s87 = sphi 0, %s86
      %s101 = sphi 0, %s87
      %s105 = sphi 0, %s105
      %s107 = sphi 0, %s105
      %s108 = sphi 0, %s107
      %s122 = sphi 0, %s108
      %s126 = sphi 0, %s126
      %s128 = sphi 0, %s126
      %s129 = sphi 0, %s128
      %s143 = sphi 0, %s129
      %s147 = sphi 0, %s147
      %s149 = sphi 0, %s147
      %s150 = sphi 0, %s149
      %s164 = sphi 0, %s150
      %s168 = sphi 0, %s168
      %s170 = sphi 0, %s168
      %s171 = sphi 0, %s170
      %s185 = sphi 0, %s171
      %s189 = sphi 0, %s189
      %s191 = sphi 0, %s189
      %s192 = sphi 0, %s191
      %s206 = sphi 0, %s192
      %s212 = sphi 0, %s214
      %s215 = sphi 0, %s212
      %s216 = sphi 0, %s215
      %s232 = sphi 0, %s216
    $region4: #{tpu_custom_call.1} parent=1 // loop_header_branch
      %27 = sbr.rel (%p25) target = $region8
    $region5: #{tpu_custom_call.1} parent=1 // loop_body
      %s29 = ssub.s32 %s24, 1
      %s30 = ssub.s32 %s24, 2
      %s31 = sadd.s32 %s24, 1
      %s32 = ssub.s32 %s24, %s31
      %p33 = scmp.eq.s32.totalorder %s32, 0
      %s35 = sadd.s32 %s34, 1
      %s36 = scalar_select %p33, %s34, %s35
      %p39 = pneg %p33
      %p40 = scmp.eq.s32.totalorder %s24, 1
      %p41 = por %p39, %p40
      %p42 = scmp.ne.s32.totalorder %s34, %s37
      %p43 = scmp.eq.s32.totalorder %s24, 0
      %p44 = por %p42, %p43
      %p45 = scmp.ne.s32.totalorder %s34, %s37
      %p46 = scmp.eq.s32.totalorder %s29, 1
      %p47 = por %p45, %p46
      %p48 = scmp.ne.s32.totalorder %s37, %s38
      %p49 = scmp.eq.s32.totalorder %s29, 0
      %p50 = por %p48, %p49
      %p51 = scmp.ne.s32.totalorder %s37, %s38
      %p52 = scmp.eq.s32.totalorder %s30, 1
      %p53 = por %p51, %p52
      %p55 = scmp.ne.s32.totalorder %s38, %s54
      %p56 = scmp.eq.s32.totalorder %s30, 0
      %p57 = por %p55, %p56
      %s58 = ssub.s32 %s24, %s31
      %p59 = scmp.eq.s32.totalorder %s58, 0
      %s61 = sadd.s32 %s60, 1
      %s62 = scalar_select %p59, %s60, %s61
      %p65 = pneg %p59
      %p66 = scmp.eq.s32.totalorder %s24, 1
      %p67 = por %p65, %p66
      %p68 = scmp.ne.s32.totalorder %s60, %s63
      %p69 = scmp.eq.s32.totalorder %s24, 0
      %p70 = por %p68, %p69
      %p71 = scmp.ne.s32.totalorder %s60, %s63
      %p72 = scmp.eq.s32.totalorder %s29, 1
      %p73 = por %p71, %p72
      %p74 = scmp.ne.s32.totalorder %s63, %s64
      %p75 = scmp.eq.s32.totalorder %s29, 0
      %p76 = por %p74, %p75
      %p77 = scmp.ne.s32.totalorder %s63, %s64
      %p78 = scmp.eq.s32.totalorder %s30, 1
      %p79 = por %p77, %p78
      %p81 = scmp.ne.s32.totalorder %s64, %s80
      %p82 = scmp.eq.s32.totalorder %s30, 0
      %p83 = por %p81, %p82
      %s85 = sadd.s32 %s84, 1
      %p88 = scmp.eq.s32.totalorder %s24, 1
      %p89 = scmp.ne.s32.totalorder %s84, %s86
      %p90 = scmp.eq.s32.totalorder %s24, 0
      %p91 = por %p89, %p90
      %p92 = scmp.ne.s32.totalorder %s84, %s86
      %p93 = scmp.eq.s32.totalorder %s29, 1
      %p94 = por %p92, %p93
      %p95 = scmp.ne.s32.totalorder %s86, %s87
      %p96 = scmp.eq.s32.totalorder %s29, 0
      %p97 = por %p95, %p96
      %p98 = scmp.ne.s32.totalorder %s86, %s87
      %p99 = scmp.eq.s32.totalorder %s30, 1
      %p100 = por %p98, %p99
      %p102 = scmp.ne.s32.totalorder %s87, %s101
      %p103 = scmp.eq.s32.totalorder %s30, 0
      %p104 = por %p102, %p103
      %s106 = sadd.s32 %s105, 1
      %p109 = scmp.eq.s32.totalorder %s24, 1
      %p110 = scmp.ne.s32.totalorder %s105, %s107
      %p111 = scmp.eq.s32.totalorder %s24, 0
      %p112 = por %p110, %p111
      %p113 = scmp.ne.s32.totalorder %s105, %s107
      %p114 = scmp.eq.s32.totalorder %s29, 1
      %p115 = por %p113, %p114
      %p116 = scmp.ne.s32.totalorder %s107, %s108
      %p117 = scmp.eq.s32.totalorder %s29, 0
      %p118 = por %p116, %p117
      %p119 = scmp.ne.s32.totalorder %s107, %s108
      %p120 = scmp.eq.s32.totalorder %s30, 1
      %p121 = por %p119, %p120
      %p123 = scmp.ne.s32.totalorder %s108, %s122
      %p124 = scmp.eq.s32.totalorder %s30, 0
      %p125 = por %p123, %p124
      %s127 = sadd.s32 %s126, 1
      %p130 = scmp.eq.s32.totalorder %s24, 1
      %p131 = scmp.ne.s32.totalorder %s126, %s128
      %p132 = scmp.eq.s32.totalorder %s24, 0
      %p133 = por %p131, %p132
      %p134 = scmp.ne.s32.totalorder %s126, %s128
      %p135 = scmp.eq.s32.totalorder %s29, 1
      %p136 = por %p134, %p135
      %p137 = scmp.ne.s32.totalorder %s128, %s129
      %p138 = scmp.eq.s32.totalorder %s29, 0
      %p139 = por %p137, %p138
      %p140 = scmp.ne.s32.totalorder %s128, %s129
      %p141 = scmp.eq.s32.totalorder %s30, 1
      %p142 = por %p140, %p141
      %p144 = scmp.ne.s32.totalorder %s129, %s143
      %p145 = scmp.eq.s32.totalorder %s30, 0
      %p146 = por %p144, %p145
      %s148 = sadd.s32 %s147, 1
      %p151 = scmp.eq.s32.totalorder %s24, 1
      %p152 = scmp.ne.s32.totalorder %s147, %s149
      %p153 = scmp.eq.s32.totalorder %s24, 0
      %p154 = por %p152, %p153
      %p155 = scmp.ne.s32.totalorder %s147, %s149
      %p156 = scmp.eq.s32.totalorder %s29, 1
      %p157 = por %p155, %p156
      %p158 = scmp.ne.s32.totalorder %s149, %s150
      %p159 = scmp.eq.s32.totalorder %s29, 0
      %p160 = por %p158, %p159
      %p161 = scmp.ne.s32.totalorder %s149, %s150
      %p162 = scmp.eq.s32.totalorder %s30, 1
      %p163 = por %p161, %p162
      %p165 = scmp.ne.s32.totalorder %s150, %s164
      %p166 = scmp.eq.s32.totalorder %s30, 0
      %p167 = por %p165, %p166
      %s169 = sadd.s32 %s168, 1
      %p172 = scmp.eq.s32.totalorder %s24, 1
      %p173 = scmp.ne.s32.totalorder %s168, %s170
      %p174 = scmp.eq.s32.totalorder %s24, 0
      %p175 = por %p173, %p174
      %p176 = scmp.ne.s32.totalorder %s168, %s170
      %p177 = scmp.eq.s32.totalorder %s29, 1
      %p178 = por %p176, %p177
      %p179 = scmp.ne.s32.totalorder %s170, %s171
      %p180 = scmp.eq.s32.totalorder %s29, 0
      %p181 = por %p179, %p180
      %p182 = scmp.ne.s32.totalorder %s170, %s171
      %p183 = scmp.eq.s32.totalorder %s30, 1
      %p184 = por %p182, %p183
      %p186 = scmp.ne.s32.totalorder %s171, %s185
      %p187 = scmp.eq.s32.totalorder %s30, 0
      %p188 = por %p186, %p187
      %s190 = sadd.s32 %s189, 1
      %p193 = scmp.eq.s32.totalorder %s24, 1
      %p194 = scmp.ne.s32.totalorder %s189, %s191
      %p195 = scmp.eq.s32.totalorder %s24, 0
      %p196 = por %p194, %p195
      %p197 = scmp.ne.s32.totalorder %s189, %s191
      %p198 = scmp.eq.s32.totalorder %s29, 1
      %p199 = por %p197, %p198
      %p200 = scmp.ne.s32.totalorder %s191, %s192
      %p201 = scmp.eq.s32.totalorder %s29, 0
      %p202 = por %p200, %p201
      %p203 = scmp.ne.s32.totalorder %s191, %s192
      %p204 = scmp.eq.s32.totalorder %s30, 1
      %p205 = por %p203, %p204
      %p207 = scmp.ne.s32.totalorder %s192, %s206
      %p208 = scmp.eq.s32.totalorder %s30, 0
      %p209 = por %p207, %p208
      %s210 = ssub.s32 %s24, %s31
      %p211 = scmp.eq.s32.totalorder %s210, 0
      %s213 = sadd.s32 %s212, 1
      %s214 = scalar_select %p211, %s212, %s213
      %p217 = pneg %p211
      %p218 = scmp.eq.s32.totalorder %s24, 1
      %p219 = por %p217, %p218
      %p220 = scmp.ne.s32.totalorder %s212, %s215
      %p221 = scmp.eq.s32.totalorder %s24, 0
      %p222 = por %p220, %p221
      %p223 = scmp.ne.s32.totalorder %s212, %s215
      %p224 = scmp.eq.s32.totalorder %s29, 1
      %p225 = por %p223, %p224
      %p226 = scmp.ne.s32.totalorder %s215, %s216
      %p227 = scmp.eq.s32.totalorder %s29, 0
      %p228 = por %p226, %p227
      %p229 = scmp.ne.s32.totalorder %s215, %s216
      %p230 = scmp.eq.s32.totalorder %s30, 1
      %p231 = por %p229, %p230
      %p233 = scmp.ne.s32.totalorder %s216, %s232
      %p234 = scmp.eq.s32.totalorder %s30, 0
      %p235 = por %p233, %p234
      %p236 = scmp.le.s32.totalorder 1, %s24
      %p237 = scmp.lt.s32.totalorder %s24, 3
      %p238 = pnand %p236, %p237
      %p239 = pneg %p238
      // Predicated region
      $region9: #{tpu_custom_call.1} parent=5 // pred_check
        _
      $region10: #{tpu_custom_call.1} parent=5 // pred_check_branch
        %241 = sbr.rel (%p238) target = $region12
      $region11: #{tpu_custom_call.1} parent=5 // pred_region
        %s242 = ssub.s32 %s24, 1
        // Predicated region
        $region13: #{tpu_custom_call.1} parent=11 // pred_check
          %p243 = pneg %p97
        $region14: #{tpu_custom_call.1} parent=11 // pred_check_branch
          %245 = sbr.rel (%p243) target = $region16
        $region15: #{tpu_custom_call.1} parent=11 // pred_region
          %s247 = ssub.s32 256, 256
          %248 = vsyncadd [#allocation9], %s247
          %s249 = sshll.u32 [#allocation10], 4
          %s250 = int_to_ptr.vmem [resolvable:$true] %s249
          %255 = dma.hbm_to_vmem [thread:$0]  %s2, 256, %s250, [#allocation9], 64, 64, 4
        $region16: #{tpu_custom_call.1} parent=11 // pred_fallthru
          _
        // Predicated region
        $region17: #{tpu_custom_call.1} parent=11 // pred_check
          %p256 = pneg %p118
        $region18: #{tpu_custom_call.1} parent=11 // pred_check_branch
          %258 = sbr.rel (%p256) target = $region20
        $region19: #{tpu_custom_call.1} parent=11 // pred_region
          _
        $region20: #{tpu_custom_call.1} parent=11 // pred_fallthru
          _
        // Predicated region
        $region21: #{tpu_custom_call.1} parent=11 // pred_check
          %p259 = pneg %p139
        $region22: #{tpu_custom_call.1} parent=11 // pred_check_branch
          %261 = sbr.rel (%p259) target = $region24
        $region23: #{tpu_custom_call.1} parent=11 // pred_region
          %s263 = ssub.s32 256, 256
          %264 = vsyncadd [#allocation12], %s263
          %s265 = sshll.u32 [#allocation11], 4
          %s266 = int_to_ptr.vmem [resolvable:$true] %s265
          %271 = dma.hbm_to_vmem [thread:$0]  %s4, 256, %s266, [#allocation12], 64, 64, 4
        $region24: #{tpu_custom_call.1} parent=11 // pred_fallthru
          _
        // Predicated region
        $region25: #{tpu_custom_call.1} parent=11 // pred_check
          %p272 = pneg %p160
        $region26: #{tpu_custom_call.1} parent=11 // pred_check_branch
          %274 = sbr.rel (%p272) target = $region28
        $region27: #{tpu_custom_call.1} parent=11 // pred_region
          _
        $region28: #{tpu_custom_call.1} parent=11 // pred_fallthru
          _
        // Predicated region
        $region29: #{tpu_custom_call.1} parent=11 // pred_check
          %p275 = pneg %p181
        $region30: #{tpu_custom_call.1} parent=11 // pred_check_branch
          %277 = sbr.rel (%p275) target = $region32
        $region31: #{tpu_custom_call.1} parent=11 // pred_region
          %s279 = ssub.s32 256, 256
          %280 = vsyncadd [#allocation12], %s279
          %s281 = sshll.u32 [#allocation13], 4
          %s282 = int_to_ptr.vmem [resolvable:$true] %s281
          %287 = dma.hbm_to_vmem [thread:$0]  %s6, 256, %s282, [#allocation12], 64, 64, 4
        $region32: #{tpu_custom_call.1} parent=11 // pred_fallthru
          _
        // Predicated region
        $region33: #{tpu_custom_call.1} parent=11 // pred_check
          %p288 = pneg %p202
        $region34: #{tpu_custom_call.1} parent=11 // pred_check_branch
          %290 = sbr.rel (%p288) target = $region36
        $region35: #{tpu_custom_call.1} parent=11 // pred_region
          _
        $region36: #{tpu_custom_call.1} parent=11 // pred_fallthru
          _
      $region12: #{tpu_custom_call.1} parent=5 // pred_fallthru
        _
      %p291 = scmp.lt.s32.totalorder %s24, 2
      // Predicated region
      $region37: #{tpu_custom_call.1} parent=5 // pred_check
        %p292 = pneg %p291
      $region38: #{tpu_custom_call.1} parent=5 // pred_check_branch
        %294 = sbr.rel (%p292) target = $region40
      $region39: #{tpu_custom_call.1} parent=5 // pred_region
        // Predicated region
        $region41: #{tpu_custom_call.1} parent=39 // pred_check
          %p295 = pneg %p44
        $region42: #{tpu_custom_call.1} parent=39 // pred_check_branch
          %297 = sbr.rel (%p295) target = $region44
        $region43: #{tpu_custom_call.1} parent=39 // pred_region
          %s298 = sand.u32 %s34, 1
          %s299 = scalar_lea.sflag [#allocation6], %s298
          %s300 = sand.u32 %s34, 1
          %s301 = smul.addr %s300, 4
          %s302 = scalar_lea.vmem [#allocation5], %s301
          %s304 = ssub.s32 64, 64
          %305 = vsyncadd %s299, %s304
          %s306 = smul.addr %s24, 64
          %s307 = scalar_lea.hbm %s0, %s306
          %s309 = sshll.u32 %s302, 4
          %s310 = int_to_ptr.vmem [resolvable:$true] %s309
          %312 = dma.hbm_to_vmem [thread:$0]  %s307, 64, %s310, %s299
        $region44: #{tpu_custom_call.1} parent=39 // pred_fallthru
          _
        // Predicated region
        $region45: #{tpu_custom_call.1} parent=39 // pred_check
          %p313 = pneg %p70
        $region46: #{tpu_custom_call.1} parent=39 // pred_check_branch
          %315 = sbr.rel (%p313) target = $region48
        $region47: #{tpu_custom_call.1} parent=39 // pred_region
          %s316 = sand.u32 %s24, 1
          %s317 = scalar_lea.sflag [#allocation9], %s316
          %s318 = sand.u32 %s60, 1
          %s319 = smul.addr %s318, 8
          %s320 = scalar_lea.vmem [#allocation8], %s319
          %s321 = smul.u32 2, %s24
          %s323 = ssub.s32 128, 128
          %324 = vsyncadd %s317, %s323
          %s325 = smul.addr %s321, 64
          %s326 = scalar_lea.hbm %s1, %s325
          %s327 = sshll.u32 %s320, 4
          %s328 = int_to_ptr.vmem [resolvable:$true] %s327
          %333 = dma.hbm_to_vmem [thread:$0]  %s326, 128, %s328, %s317, 64, 64, 4
        $region48: #{tpu_custom_call.1} parent=39 // pred_fallthru
          _
      $region40: #{tpu_custom_call.1} parent=5 // pred_fallthru
        _
      %p334 = scmp.le.s32.totalorder 1, %s24
      %p335 = scmp.lt.s32.totalorder %s24, 3
      %p336 = pnand %p334, %p335
      %p337 = pneg %p336
      // Predicated region
      $region49: #{tpu_custom_call.1} parent=5 // pred_check
        _
      $region50: #{tpu_custom_call.1} parent=5 // pred_check_branch
        %339 = sbr.rel (%p336) target = $region52
      $region51: #{tpu_custom_call.1} parent=5 // pred_region
        %s340 = ssub.s32 %s24, 1
        %s341 = sand.u32 %s37, 1
        %s342 = scalar_lea.sflag [#allocation6], %s341
        %s343 = sand.u32 %s37, 1
        %s344 = smul.addr %s343, 4
        %s345 = scalar_lea.vmem [#allocation5], %s344
        // Predicated region
        $region53: #{tpu_custom_call.1} parent=51 // pred_check
          %p346 = pneg %p50
        $region54: #{tpu_custom_call.1} parent=51 // pred_check_branch
          %348 = sbr.rel (%p346) target = $region56
        $region55: #{tpu_custom_call.1} parent=51 // pred_region
          %349 = dma.done %s342, 64
        $region56: #{tpu_custom_call.1} parent=51 // pred_fallthru
          _
        %s350 = sand.u32 %s29, 1
        %s351 = scalar_lea.sflag [#allocation9], %s350
        %s352 = sand.u32 %s63, 1
        %s353 = smul.addr %s352, 8
        %s354 = scalar_lea.vmem [#allocation8], %s353
        // Predicated region
        $region57: #{tpu_custom_call.1} parent=51 // pred_check
          %p355 = pneg %p76
        $region58: #{tpu_custom_call.1} parent=51 // pred_check_branch
          %357 = sbr.rel (%p355) target = $region60
        $region59: #{tpu_custom_call.1} parent=51 // pred_region
          %358 = dma.done %s351, 128
        $region60: #{tpu_custom_call.1} parent=51 // pred_fallthru
          _
        // Predicated region
        $region61: #{tpu_custom_call.1} parent=51 // pred_check
          %p359 = pneg %p97
        $region62: #{tpu_custom_call.1} parent=51 // pred_check_branch
          %361 = sbr.rel (%p359) target = $region64
        $region63: #{tpu_custom_call.1} parent=51 // pred_region
          %362 = dma.done [#allocation9], 256
        $region64: #{tpu_custom_call.1} parent=51 // pred_fallthru
          _
        // Predicated region
        $region65: #{tpu_custom_call.1} parent=51 // pred_check
          %p363 = pneg %p139
        $region66: #{tpu_custom_call.1} parent=51 // pred_check_branch
          %365 = sbr.rel (%p363) target = $region68
        $region67: #{tpu_custom_call.1} parent=51 // pred_region
          %366 = dma.done [#allocation12], 256
        $region68: #{tpu_custom_call.1} parent=51 // pred_fallthru
          _
        // Predicated region
        $region69: #{tpu_custom_call.1} parent=51 // pred_check
          %p367 = pneg %p181
        $region70: #{tpu_custom_call.1} parent=51 // pred_check_branch
          %369 = sbr.rel (%p367) target = $region72
        $region71: #{tpu_custom_call.1} parent=51 // pred_region
          %370 = dma.done [#allocation12], 256
        $region72: #{tpu_custom_call.1} parent=51 // pred_fallthru
          _
        %s371 = sand.u32 %s37, 1
        %s372 = scalar_lea.sflag [#allocation6], %s371
        %s373 = sand.u32 %s37, 1
        %s374 = smul.addr %s373, 4
        %s375 = scalar_lea.vmem [#allocation5], %s374
        %p376 = pneg %p50
        %p377 = pneg %p47
        %s378 = sand.u32 %s29, 1
        %s379 = scalar_lea.sflag [#allocation9], %s378
        %s380 = sand.u32 %s63, 1
        %s381 = smul.addr %s380, 8
        %s382 = scalar_lea.vmem [#allocation8], %s381
        %p383 = pneg %p76
        %p384 = pneg %p73
        %p385 = pneg %p97
        %p386 = pneg %p94
        %p387 = pneg %p118
        %p388 = pneg %p115
        %p389 = pneg %p139
        %p390 = pneg %p136
        %p391 = pneg %p160
        %p392 = pneg %p157
        %p393 = pneg %p181
        %p394 = pneg %p178
        %p395 = pneg %p202
        %p396 = pneg %p199
        %p397 = pneg %p228
        %p398 = pneg %p225
        %s399 = sand.u32 %s215, 1
        %s400 = scalar_lea.sflag [#allocation7], %s399
        %s401 = sand.u32 %s215, 1
        %s402 = smul.addr %s401, 8
        %s403 = scalar_lea.vmem [#allocation14], %s402
        %s404 = smul.u32 2, %s29
        %v406 = vld [vmem:[%s345] sm:$0xf]
        %v407 = vld [vmem:[#allocation10] sm:$0xf]
        %v408 = vld [vmem:[#allocation10 + $0x4] sm:$0xf]
        %v409 = vld [vmem:[#allocation10 + $0x8] sm:$0xf]
        %v410 = vld [vmem:[#allocation10 + $0xc] sm:$0xf]
        %v411 = vld [vmem:[%s3] sm:$0x1]
        %v413 = vlaneseq
        %v414 = vshrl.u32 %v413, 7
        %v415 = vsub.s32 0, %v414
        %v416 = vrot.slane %v411, %v415
        %v422 = vunpack.c.l.b16 %v407
        %v423 = vunpack.c.l.b16 %v408
        %v424 = vunpack.c.l.b16 %v409
        %v425 = vunpack.c.l.b16 %v410
        %v426 = vpack.c.b16 %v423, %v422
        %v427 = vpack.c.b16 %v425, %v424
        %vm430 = vcmask 261120
        %v432 = vsel %vm430, %v406, 0
        %434 = vmatprep.subr.bf16.mxu0 0
        %435 = vmatpush1.bf16.msra.mxu0 0
        %436 = vmatprep.subr.bf16.mxu0 0
        %437 = vmatpush1.bf16.msra.mxu0 0
        %438 = vmatprep.subr.bf16.mxu0 0
        %439 = vmatpush1.bf16.msra.mxu0 0
        %440 = vmatprep.subr.bf16.mxu0 0
        %441 = vmatpush1.bf16.msra.mxu0 0
        %442 = vmatprep.subr.bf16.mxu0 0
        %443 = vmatpush1.bf16.msra.mxu0 0
        %444 = vmatprep.subr.bf16.mxu0 0
        %445 = vmatpush1.bf16.msra.mxu0 0
        %446 = vmatprep.subr.bf16.mxu0 0
        %447 = vmatpush1.bf16.msra.mxu0 %v427
        %448 = vmatprep.subr.bf16.mxu0 0
        %449 = vmatpush1.bf16.msra.mxu0 %v426
        %450 = vmatprep.subr.bf16.mxu0 0
        %451 = vmatpush2.bf16.msra.mxu0 0
        %452 = vmatprep.subr.bf16.mxu0 0
        %453 = vmatpush2.bf16.msra.mxu0 0
        %454 = vmatprep.subr.bf16.mxu0 0
        %455 = vmatpush2.bf16.msra.mxu0 0
        %456 = vmatprep.subr.bf16.mxu0 0
        %457 = vmatpush2.bf16.msra.mxu0 0
        %458 = vmatprep.subr.bf16.mxu0 0
        %459 = vmatpush2.bf16.msra.mxu0 0
        %460 = vmatprep.subr.bf16.mxu0 0
        %461 = vmatpush2.bf16.msra.mxu0 0
        %462 = vmatprep.subr.bf16.mxu0 0
        %463 = vmatpush2.bf16.msra.mxu0 0
        %464 = vmatprep.subr.bf16.mxu0 0
        %465 = vmatpush2.bf16.msra.mxu0 0
        %466 = vmatprep.mubr.bf16.mxu0 0
        %467 = vmatmul.mubr.bf16.gmra.mxu0 %v432
        %v468 = vpop.f32.mrf.mxu0
        %v469 = vadd.f32 %v416, %v468
        %v470 = vpop.f32.mrf.mxu0
        %v471 = vpop.f32.mrf.mxu0
        %v472 = vpop.f32.mrf.mxu0
        %473 = vdwg.mxu0
        %v474 = vpack.c.bf16 %v469, %v469
        %vm475 = vcmask 257024
        %476 = vst.msk [vmem:[#allocation2] sm:$0xf] %vm475, %v474
        %v477 = vld [vmem:[%s354] sm:$0xf]
        %v478 = vld [vmem:[%s354 + $0x4] sm:$0xf]
        %v479 = vld [vmem:[#allocation11] sm:$0xf]
        %v480 = vld [vmem:[#allocation11 + $0x4] sm:$0xf]
        %v481 = vld [vmem:[#allocation11 + $0x8] sm:$0xf]
        %v482 = vld [vmem:[#allocation11 + $0xc] sm:$0xf]
        %v483 = vld [vmem:[%s5] sm:$0x1]
        %v485 = vlaneseq
        %v486 = vshrl.u32 %v485, 7
        %v487 = vsub.s32 0, %v486
        %v488 = vrot.slane %v483, %v487
        %v492 = vunpack.c.l.b16 %v477
        %v493 = vunpack.c.l.b16 %v478
        %v494 = vpack.c.b16 %v493, %v492
        %v499 = vunpack.c.l.b16 %v479
        %v500 = vunpack.c.l.b16 %v480
        %v501 = vunpack.c.l.b16 %v481
        %v502 = vunpack.c.l.b16 %v482
        %v503 = vpack.c.b16 %v500, %v499
        %v504 = vpack.c.b16 %v502, %v501
        %v508 = vsel %vm430, %v494, 0
        %510 = vmatprep.subr.bf16.mxu0 0
        %511 = vmatpush1.bf16.msra.mxu0 0
        %512 = vmatprep.subr.bf16.mxu0 0
        %513 = vmatpush1.bf16.msra.mxu0 0
        %514 = vmatprep.subr.bf16.mxu0 0
        %515 = vmatpush1.bf16.msra.mxu0 0
        %516 = vmatprep.subr.bf16.mxu0 0
        %517 = vmatpush1.bf16.msra.mxu0 0
        %518 = vmatprep.subr.bf16.mxu0 0
        %519 = vmatpush1.bf16.msra.mxu0 0
        %520 = vmatprep.subr.bf16.mxu0 0
        %521 = vmatpush1.bf16.msra.mxu0 0
        %522 = vmatprep.subr.bf16.mxu0 0
        %523 = vmatpush1.bf16.msra.mxu0 %v504
        %524 = vmatprep.subr.bf16.mxu0 0
        %525 = vmatpush1.bf16.msra.mxu0 %v503
        %526 = vmatprep.subr.bf16.mxu0 0
        %527 = vmatpush2.bf16.msra.mxu0 0
        %528 = vmatprep.subr.bf16.mxu0 0
        %529 = vmatpush2.bf16.msra.mxu0 0
        %530 = vmatprep.subr.bf16.mxu0 0
        %531 = vmatpush2.bf16.msra.mxu0 0
        %532 = vmatprep.subr.bf16.mxu0 0
        %533 = vmatpush2.bf16.msra.mxu0 0
        %534 = vmatprep.subr.bf16.mxu0 0
        %535 = vmatpush2.bf16.msra.mxu0 0
        %536 = vmatprep.subr.bf16.mxu0 0
        %537 = vmatpush2.bf16.msra.mxu0 0
        %538 = vmatprep.subr.bf16.mxu0 0
        %539 = vmatpush2.bf16.msra.mxu0 0
        %540 = vmatprep.subr.bf16.mxu0 0
        %541 = vmatpush2.bf16.msra.mxu0 0
        %542 = vmatprep.mubr.bf16.mxu0 0
        %543 = vmatmul.mubr.bf16.gmra.mxu0 %v508
        %v544 = vpop.f32.mrf.mxu0
        %v545 = vadd.f32 %v488, %v544
        %v546 = vpop.f32.mrf.mxu0
        %v547 = vpop.f32.mrf.mxu0
        %v548 = vadd.f32 %v488, %v547
        %v549 = vpop.f32.mrf.mxu0
        %550 = vdwg.mxu0
        %v551 = vpack.c.bf16 %v548, %v545
        %v553 = vunpack.c.l.b16 %v551
        %v554 = vunpack.c.h.b16 %v551
        %v555 = vpack.c.b16 %v553, %v553
        %v556 = vpack.c.b16 %v554, %v554
        %vm559 = vcmask 519168
        %560 = vst.msk [vmem:[#allocation3] sm:$0xf] %vm559, %v555
        %561 = vst.msk [vmem:[#allocation3 + $0x4] sm:$0xf] %vm559, %v556
        %562 = vst.msk [vmem:[#allocation4] sm:$0xff] %vm430, 0.0
        %v563 = vld [vmem:[#allocation2] sm:$0xf]
        %v564 = vld [vmem:[#allocation3] sm:$0xf]
        %v565 = vld [vmem:[#allocation3 + $0x4] sm:$0xf]
        %v568 = vunpack.c.l.b16 %v564
        %v569 = vunpack.c.l.b16 %v565
        %v570 = vpack.c.b16 %v569, %v568
        %vm571 = vcmask 64512
        %v573 = vsel %vm571, %v563, 0
        %v576 = vsel %vm571, %v570, 0
        %578 = vmatprep.subr.bf16.mxu0 0
        %579 = vmatpush1.bf16.xpose.msra.mxu0 0
        %580 = vmatprep.subr.bf16.mxu0 0
        %581 = vmatpush1.bf16.xpose.msra.mxu0 0
        %582 = vmatprep.subr.bf16.mxu0 0
        %583 = vmatpush1.bf16.xpose.msra.mxu0 0
        %584 = vmatprep.subr.bf16.mxu0 0
        %585 = vmatpush1.bf16.xpose.msra.mxu0 0
        %586 = vmatprep.subr.bf16.mxu0 0
        %587 = vmatpush1.bf16.xpose.msra.mxu0 0
        %588 = vmatprep.subr.bf16.mxu0 0
        %589 = vmatpush1.bf16.xpose.msra.mxu0 0
        %590 = vmatprep.subr.bf16.mxu0 0
        %591 = vmatpush1.bf16.xpose.msra.mxu0 0
        %592 = vmatprep.subr.bf16.mxu0 0
        %593 = vmatpush1.bf16.xpose.msra.mxu0 %v576
        %594 = vmatprep.subr.bf16.mxu0 0
        %595 = vmatpush2.bf16.xpose.msra.mxu0 0
        %596 = vmatprep.subr.bf16.mxu0 0
        %597 = vmatpush2.bf16.xpose.msra.mxu0 0
        %598 = vmatprep.subr.bf16.mxu0 0
        %599 = vmatpush2.bf16.xpose.msra.mxu0 0
        %600 = vmatprep.subr.bf16.mxu0 0
        %601 = vmatpush2.bf16.xpose.msra.mxu0 0
        %602 = vmatprep.subr.bf16.mxu0 0
        %603 = vmatpush2.bf16.xpose.msra.mxu0 0
        %604 = vmatprep.subr.bf16.mxu0 0
        %605 = vmatpush2.bf16.xpose.msra.mxu0 0
        %606 = vmatprep.subr.bf16.mxu0 0
        %607 = vmatpush2.bf16.xpose.msra.mxu0 0
        %608 = vmatprep.subr.bf16.mxu0 0
        %609 = vmatpush2.bf16.xpose.msra.mxu0 0
        %610 = vmatprep.mubr.bf16.mxu0 0
        %611 = vmatmul.mubr.bf16.gmra.mxu0 %v573
        %v612 = vpop.f32.mrf.mxu0
        %v613 = vadd.f32 0.0, %v612
        %v614 = vpop.f32.mrf.mxu0
        %v615 = vpop.f32.mrf.mxu0
        %v616 = vpop.f32.mrf.mxu0
        %617 = vdwg.mxu0
        %vm618 = vcmask 130048
        %v619 = vsel %vm618, %v613, -inf
        %620 = vmax.xlane.f32.xlu0 %v619
        %v621 = vpop.xlane.xlu0 %620
        %v622 = vsub.f32 %v613, %v621
        %v623 = vmul.f32 %v622, 1.442695
        %v624 = vpow.pop %v623
        %v625 = vsel %vm618, %v624, 0.0
        %626 = vadd.xlane.f32.xlu0 %v625
        %v627 = vpop.xlane.xlu0 %626
        %v628 = vpack.c.bf16 %v624, %v624
        %629 = vrot.lane.b32.xlu0 %v570, 96
        %v630 = vpop.permute.xlu0 %629
        %v633 = vsel %vm618, %v628, 0
        %635 = vmatprep.subr.bf16.mxu0 0
        %636 = vmatpush1.bf16.msra.mxu0 0
        %637 = vmatprep.subr.bf16.mxu0 0
        %638 = vmatpush1.bf16.msra.mxu0 0
        %639 = vmatprep.subr.bf16.mxu0 0
        %640 = vmatpush1.bf16.msra.mxu0 0
        %641 = vmatprep.subr.bf16.mxu0 0
        %642 = vmatpush1.bf16.msra.mxu0 0
        %643 = vmatprep.subr.bf16.mxu0 0
        %644 = vmatpush1.bf16.msra.mxu0 0
        %645 = vmatprep.subr.bf16.mxu0 0
        %646 = vmatpush1.bf16.msra.mxu0 0
        %647 = vmatprep.subr.bf16.mxu0 0
        %648 = vmatpush1.bf16.msra.mxu0 0
        %649 = vmatprep.subr.bf16.mxu0 0
        %650 = vmatpush1.bf16.msra.mxu0 %v630
        %651 = vmatprep.subr.bf16.mxu0 0
        %652 = vmatpush2.bf16.msra.mxu0 0
        %653 = vmatprep.subr.bf16.mxu0 0
        %654 = vmatpush2.bf16.msra.mxu0 0
        %655 = vmatprep.subr.bf16.mxu0 0
        %656 = vmatpush2.bf16.msra.mxu0 0
        %657 = vmatprep.subr.bf16.mxu0 0
        %658 = vmatpush2.bf16.msra.mxu0 0
        %659 = vmatprep.subr.bf16.mxu0 0
        %660 = vmatpush2.bf16.msra.mxu0 0
        %661 = vmatprep.subr.bf16.mxu0 0
        %662 = vmatpush2.bf16.msra.mxu0 0
        %663 = vmatprep.subr.bf16.mxu0 0
        %664 = vmatpush2.bf16.msra.mxu0 0
        %665 = vmatprep.subr.bf16.mxu0 0
        %666 = vmatpush2.bf16.msra.mxu0 0
        %667 = vmatprep.mubr.bf16.mxu0 0
        %668 = vmatmul.mubr.bf16.gmra.mxu0 %v633
        %v669 = vpop.f32.mrf.mxu0
        %v670 = vadd.f32 0.0, %v669
        %v671 = vpop.f32.mrf.mxu0
        %v672 = vpop.f32.mrf.mxu0
        %v673 = vpop.f32.mrf.mxu0
        %674 = vdwg.mxu0
        %v675 = vrcp.pop %v627
        %v676 = vmul.f32 %v670, %v675
        %v677 = vld [vmem:[#allocation13] sm:$0xf]
        %v678 = vld [vmem:[#allocation4] sm:$0xff]
        %v679 = vpack.c.bf16 %v676, %v676
        %v681 = vsel %vm571, %v679, 0
        %vm683 = vcmask 1043456
        %v685 = vsel %vm683, %v677, 0
        %687 = vmatprep.subr.bf16.mxu0 0
        %688 = vmatpush1.bf16.msra.mxu0 0
        %689 = vmatprep.subr.bf16.mxu0 0
        %690 = vmatpush1.bf16.msra.mxu0 0
        %691 = vmatprep.subr.bf16.mxu0 0
        %692 = vmatpush1.bf16.msra.mxu0 0
        %693 = vmatprep.subr.bf16.mxu0 0
        %694 = vmatpush1.bf16.msra.mxu0 0
        %695 = vmatprep.subr.bf16.mxu0 0
        %696 = vmatpush1.bf16.msra.mxu0 0
        %697 = vmatprep.subr.bf16.mxu0 0
        %698 = vmatpush1.bf16.msra.mxu0 0
        %699 = vmatprep.subr.bf16.mxu0 0
        %700 = vmatpush1.bf16.msra.mxu0 0
        %701 = vmatprep.subr.bf16.mxu0 0
        %702 = vmatpush1.bf16.msra.mxu0 %v685
        %703 = vmatprep.subr.bf16.mxu0 0
        %704 = vmatpush2.bf16.msra.mxu0 0
        %705 = vmatprep.subr.bf16.mxu0 0
        %706 = vmatpush2.bf16.msra.mxu0 0
        %707 = vmatprep.subr.bf16.mxu0 0
        %708 = vmatpush2.bf16.msra.mxu0 0
        %709 = vmatprep.subr.bf16.mxu0 0
        %710 = vmatpush2.bf16.msra.mxu0 0
        %711 = vmatprep.subr.bf16.mxu0 0
        %712 = vmatpush2.bf16.msra.mxu0 0
        %713 = vmatprep.subr.bf16.mxu0 0
        %714 = vmatpush2.bf16.msra.mxu0 0
        %715 = vmatprep.subr.bf16.mxu0 0
        %716 = vmatpush2.bf16.msra.mxu0 0
        %717 = vmatprep.subr.bf16.mxu0 0
        %718 = vmatpush2.bf16.msra.mxu0 0
        %719 = vmatprep.mubr.bf16.mxu0 0
        %720 = vmatmul.mubr.bf16.gmra.mxu0 %v681
        %v721 = vpop.f32.mrf.mxu0
        %v722 = vadd.f32 0.0, %v721
        %v723 = vpop.f32.mrf.mxu0
        %v724 = vpop.f32.mrf.mxu0
        %v725 = vpop.f32.mrf.mxu0
        %726 = vdwg.mxu0
        %v727 = vadd.f32 %v678, %v722
        %728 = vst.msk [vmem:[#allocation4] sm:$0xff] %vm430, %v727
        %v729 = vld [vmem:[#allocation2] sm:$0xf]
        %v730 = vld [vmem:[#allocation3] sm:$0xf]
        %v731 = vld [vmem:[#allocation3 + $0x4] sm:$0xf]
        %v733 = vunpack.c.l.b16 %v729
        %v734 = vpack.c.b16 %v733, %v733
        %735 = vrot.lane.b32.xlu0 %v734, 120
        %v736 = vpop.permute.xlu0 %735
        %v739 = vunpack.c.l.b16 %v730
        %v740 = vunpack.c.l.b16 %v731
        %v741 = vpack.c.b16 %v740, %v739
        %742 = vrot.lane.b32.xlu0 %v741, 120
        %v743 = vpop.permute.xlu0 %742
        %v745 = vsel %vm571, %v736, 0
        %v748 = vsel %vm571, %v743, 0
        %750 = vmatprep.subr.bf16.mxu0 0
        %751 = vmatpush1.bf16.xpose.msra.mxu0 0
        %752 = vmatprep.subr.bf16.mxu0 0
        %753 = vmatpush1.bf16.xpose.msra.mxu0 0
        %754 = vmatprep.subr.bf16.mxu0 0
        %755 = vmatpush1.bf16.xpose.msra.mxu0 0
        %756 = vmatprep.subr.bf16.mxu0 0
        %757 = vmatpush1.bf16.xpose.msra.mxu0 0
        %758 = vmatprep.subr.bf16.mxu0 0
        %759 = vmatpush1.bf16.xpose.msra.mxu0 0
        %760 = vmatprep.subr.bf16.mxu0 0
        %761 = vmatpush1.bf16.xpose.msra.mxu0 0
        %762 = vmatprep.subr.bf16.mxu0 0
        %763 = vmatpush1.bf16.xpose.msra.mxu0 0
        %764 = vmatprep.subr.bf16.mxu0 0
        %765 = vmatpush1.bf16.xpose.msra.mxu0 %v748
        %766 = vmatprep.subr.bf16.mxu0 0
        %767 = vmatpush2.bf16.xpose.msra.mxu0 0
        %768 = vmatprep.subr.bf16.mxu0 0
        %769 = vmatpush2.bf16.xpose.msra.mxu0 0
        %770 = vmatprep.subr.bf16.mxu0 0
        %771 = vmatpush2.bf16.xpose.msra.mxu0 0
        %772 = vmatprep.subr.bf16.mxu0 0
        %773 = vmatpush2.bf16.xpose.msra.mxu0 0
        %774 = vmatprep.subr.bf16.mxu0 0
        %775 = vmatpush2.bf16.xpose.msra.mxu0 0
        %776 = vmatprep.subr.bf16.mxu0 0
        %777 = vmatpush2.bf16.xpose.msra.mxu0 0
        %778 = vmatprep.subr.bf16.mxu0 0
        %779 = vmatpush2.bf16.xpose.msra.mxu0 0
        %780 = vmatprep.subr.bf16.mxu0 0
        %781 = vmatpush2.bf16.xpose.msra.mxu0 0
        %782 = vmatprep.mubr.bf16.mxu0 0
        %783 = vmatmul.mubr.bf16.gmra.mxu0 %v745
        %v784 = vpop.f32.mrf.mxu0
        %v785 = vadd.f32 0.0, %v784
        %v786 = vpop.f32.mrf.mxu0
        %v787 = vpop.f32.mrf.mxu0
        %v788 = vpop.f32.mrf.mxu0
        %789 = vdwg.mxu0
        %v790 = vsel %vm618, %v785, -inf
        %791 = vmax.xlane.f32.xlu0 %v790
        %v792 = vpop.xlane.xlu0 %791
        %v793 = vsub.f32 %v785, %v792
        %v794 = vmul.f32 %v793, 1.442695
        %v795 = vpow.pop %v794
        %v796 = vsel %vm618, %v795, 0.0
        %797 = vadd.xlane.f32.xlu0 %v796
        %v798 = vpop.xlane.xlu0 %797
        %v799 = vpack.c.bf16 %v795, %v795
        %800 = vrot.lane.b32.xlu0 %v741, 88
        %v801 = vpop.permute.xlu0 %800
        %v804 = vsel %vm618, %v799, 0
        %806 = vmatprep.subr.bf16.mxu0 0
        %807 = vmatpush1.bf16.msra.mxu0 0
        %808 = vmatprep.subr.bf16.mxu0 0
        %809 = vmatpush1.bf16.msra.mxu0 0
        %810 = vmatprep.subr.bf16.mxu0 0
        %811 = vmatpush1.bf16.msra.mxu0 0
        %812 = vmatprep.subr.bf16.mxu0 0
        %813 = vmatpush1.bf16.msra.mxu0 0
        %814 = vmatprep.subr.bf16.mxu0 0
        %815 = vmatpush1.bf16.msra.mxu0 0
        %816 = vmatprep.subr.bf16.mxu0 0
        %817 = vmatpush1.bf16.msra.mxu0 0
        %818 = vmatprep.subr.bf16.mxu0 0
        %819 = vmatpush1.bf16.msra.mxu0 0
        %820 = vmatprep.subr.bf16.mxu0 0
        %821 = vmatpush1.bf16.msra.mxu0 %v801
        %822 = vmatprep.subr.bf16.mxu0 0
        %823 = vmatpush2.bf16.msra.mxu0 0
        %824 = vmatprep.subr.bf16.mxu0 0
        %825 = vmatpush2.bf16.msra.mxu0 0
        %826 = vmatprep.subr.bf16.mxu0 0
        %827 = vmatpush2.bf16.msra.mxu0 0
        %828 = vmatprep.subr.bf16.mxu0 0
        %829 = vmatpush2.bf16.msra.mxu0 0
        %830 = vmatprep.subr.bf16.mxu0 0
        %831 = vmatpush2.bf16.msra.mxu0 0
        %832 = vmatprep.subr.bf16.mxu0 0
        %833 = vmatpush2.bf16.msra.mxu0 0
        %834 = vmatprep.subr.bf16.mxu0 0
        %835 = vmatpush2.bf16.msra.mxu0 0
        %836 = vmatprep.subr.bf16.mxu0 0
        %837 = vmatpush2.bf16.msra.mxu0 0
        %838 = vmatprep.mubr.bf16.mxu0 0
        %839 = vmatmul.mubr.bf16.gmra.mxu0 %v804
        %v840 = vpop.f32.mrf.mxu0
        %v841 = vadd.f32 0.0, %v840
        %v842 = vpop.f32.mrf.mxu0
        %v843 = vpop.f32.mrf.mxu0
        %v844 = vpop.f32.mrf.mxu0
        %845 = vdwg.mxu0
        %v846 = vrcp.pop %v798
        %v847 = vmul.f32 %v841, %v846
        %v848 = vld [vmem:[#allocation13 + $0x4] sm:$0xf]
        %v849 = vld [vmem:[#allocation4] sm:$0xff]
        %v850 = vpack.c.bf16 %v847, %v847
        %v852 = vsel %vm571, %v850, 0
        %v855 = vsel %vm683, %v848, 0
        %857 = vmatprep.subr.bf16.mxu0 0
        %858 = vmatpush1.bf16.msra.mxu0 0
        %859 = vmatprep.subr.bf16.mxu0 0
        %860 = vmatpush1.bf16.msra.mxu0 0
        %861 = vmatprep.subr.bf16.mxu0 0
        %862 = vmatpush1.bf16.msra.mxu0 0
        %863 = vmatprep.subr.bf16.mxu0 0
        %864 = vmatpush1.bf16.msra.mxu0 0
        %865 = vmatprep.subr.bf16.mxu0 0
        %866 = vmatpush1.bf16.msra.mxu0 0
        %867 = vmatprep.subr.bf16.mxu0 0
        %868 = vmatpush1.bf16.msra.mxu0 0
        %869 = vmatprep.subr.bf16.mxu0 0
        %870 = vmatpush1.bf16.msra.mxu0 0
        %871 = vmatprep.subr.bf16.mxu0 0
        %872 = vmatpush1.bf16.msra.mxu0 %v855
        %873 = vmatprep.subr.bf16.mxu0 0
        %874 = vmatpush2.bf16.msra.mxu0 0
        %875 = vmatprep.subr.bf16.mxu0 0
        %876 = vmatpush2.bf16.msra.mxu0 0
        %877 = vmatprep.subr.bf16.mxu0 0
        %878 = vmatpush2.bf16.msra.mxu0 0
        %879 = vmatprep.subr.bf16.mxu0 0
        %880 = vmatpush2.bf16.msra.mxu0 0
        %881 = vmatprep.subr.bf16.mxu0 0
        %882 = vmatpush2.bf16.msra.mxu0 0
        %883 = vmatprep.subr.bf16.mxu0 0
        %884 = vmatpush2.bf16.msra.mxu0 0
        %885 = vmatprep.subr.bf16.mxu0 0
        %886 = vmatpush2.bf16.msra.mxu0 0
        %887 = vmatprep.subr.bf16.mxu0 0
        %888 = vmatpush2.bf16.msra.mxu0 0
        %889 = vmatprep.mubr.bf16.mxu0 0
        %890 = vmatmul.mubr.bf16.gmra.mxu0 %v852
        %v891 = vpop.f32.mrf.mxu0
        %v892 = vadd.f32 0.0, %v891
        %v893 = vpop.f32.mrf.mxu0
        %v894 = vpop.f32.mrf.mxu0
        %v895 = vpop.f32.mrf.mxu0
        %896 = vdwg.mxu0
        %v897 = vadd.f32 %v849, %v892
        %898 = vst.msk [vmem:[#allocation4] sm:$0xff] %vm430, %v897
        %v899 = vld [vmem:[#allocation2] sm:$0xf]
        %v900 = vld [vmem:[#allocation3] sm:$0xf]
        %v901 = vld [vmem:[#allocation3 + $0x4] sm:$0xf]
        %v903 = vunpack.c.l.b16 %v899
        %v904 = vpack.c.b16 %v903, %v903
        %905 = vrot.lane.b32.xlu0 %v904, 112
        %v906 = vpop.permute.xlu0 %905
        %v909 = vunpack.c.l.b16 %v900
        %v910 = vunpack.c.l.b16 %v901
        %v911 = vpack.c.b16 %v910, %v909
        %912 = vrot.lane.b32.xlu0 %v911, 112
        %v913 = vpop.permute.xlu0 %912
        %v915 = vsel %vm571, %v906, 0
        %v918 = vsel %vm571, %v913, 0
        %920 = vmatprep.subr.bf16.mxu0 0
        %921 = vmatpush1.bf16.xpose.msra.mxu0 0
        %922 = vmatprep.subr.bf16.mxu0 0
        %923 = vmatpush1.bf16.xpose.msra.mxu0 0
        %924 = vmatprep.subr.bf16.mxu0 0
        %925 = vmatpush1.bf16.xpose.msra.mxu0 0
        %926 = vmatprep.subr.bf16.mxu0 0
        %927 = vmatpush1.bf16.xpose.msra.mxu0 0
        %928 = vmatprep.subr.bf16.mxu0 0
        %929 = vmatpush1.bf16.xpose.msra.mxu0 0
        %930 = vmatprep.subr.bf16.mxu0 0
        %931 = vmatpush1.bf16.xpose.msra.mxu0 0
        %932 = vmatprep.subr.bf16.mxu0 0
        %933 = vmatpush1.bf16.xpose.msra.mxu0 0
        %934 = vmatprep.subr.bf16.mxu0 0
        %935 = vmatpush1.bf16.xpose.msra.mxu0 %v918
        %936 = vmatprep.subr.bf16.mxu0 0
        %937 = vmatpush2.bf16.xpose.msra.mxu0 0
        %938 = vmatprep.subr.bf16.mxu0 0
        %939 = vmatpush2.bf16.xpose.msra.mxu0 0
        %940 = vmatprep.subr.bf16.mxu0 0
        %941 = vmatpush2.bf16.xpose.msra.mxu0 0
        %942 = vmatprep.subr.bf16.mxu0 0
        %943 = vmatpush2.bf16.xpose.msra.mxu0 0
        %944 = vmatprep.subr.bf16.mxu0 0
        %945 = vmatpush2.bf16.xpose.msra.mxu0 0
        %946 = vmatprep.subr.bf16.mxu0 0
        %947 = vmatpush2.bf16.xpose.msra.mxu0 0
        %948 = vmatprep.subr.bf16.mxu0 0
        %949 = vmatpush2.bf16.xpose.msra.mxu0 0
        %950 = vmatprep.subr.bf16.mxu0 0
        %951 = vmatpush2.bf16.xpose.msra.mxu0 0
        %952 = vmatprep.mubr.bf16.mxu0 0
        %953 = vmatmul.mubr.bf16.gmra.mxu0 %v915
        %v954 = vpop.f32.mrf.mxu0
        %v955 = vadd.f32 0.0, %v954
        %v956 = vpop.f32.mrf.mxu0
        %v957 = vpop.f32.mrf.mxu0
        %v958 = vpop.f32.mrf.mxu0
        %959 = vdwg.mxu0
        %v960 = vsel %vm618, %v955, -inf
        %961 = vmax.xlane.f32.xlu0 %v960
        %v962 = vpop.xlane.xlu0 %961
        %v963 = vsub.f32 %v955, %v962
        %v964 = vmul.f32 %v963, 1.442695
        %v965 = vpow.pop %v964
        %v966 = vsel %vm618, %v965, 0.0
        %967 = vadd.xlane.f32.xlu0 %v966
        %v968 = vpop.xlane.xlu0 %967
        %v969 = vpack.c.bf16 %v965, %v965
        %970 = vrot.lane.b32.xlu0 %v911, 80
        %v971 = vpop.permute.xlu0 %970
        %v974 = vsel %vm618, %v969, 0
        %976 = vmatprep.subr.bf16.mxu0 0
        %977 = vmatpush1.bf16.msra.mxu0 0
        %978 = vmatprep.subr.bf16.mxu0 0
        %979 = vmatpush1.bf16.msra.mxu0 0
        %980 = vmatprep.subr.bf16.mxu0 0
        %981 = vmatpush1.bf16.msra.mxu0 0
        %982 = vmatprep.subr.bf16.mxu0 0
        %983 = vmatpush1.bf16.msra.mxu0 0
        %984 = vmatprep.subr.bf16.mxu0 0
        %985 = vmatpush1.bf16.msra.mxu0 0
        %986 = vmatprep.subr.bf16.mxu0 0
        %987 = vmatpush1.bf16.msra.mxu0 0
        %988 = vmatprep.subr.bf16.mxu0 0
        %989 = vmatpush1.bf16.msra.mxu0 0
        %990 = vmatprep.subr.bf16.mxu0 0
        %991 = vmatpush1.bf16.msra.mxu0 %v971
        %992 = vmatprep.subr.bf16.mxu0 0
        %993 = vmatpush2.bf16.msra.mxu0 0
        %994 = vmatprep.subr.bf16.mxu0 0
        %995 = vmatpush2.bf16.msra.mxu0 0
        %996 = vmatprep.subr.bf16.mxu0 0
        %997 = vmatpush2.bf16.msra.mxu0 0
        %998 = vmatprep.subr.bf16.mxu0 0
        %999 = vmatpush2.bf16.msra.mxu0 0
        %1000 = vmatprep.subr.bf16.mxu0 0
        %1001 = vmatpush2.bf16.msra.mxu0 0
        %1002 = vmatprep.subr.bf16.mxu0 0
        %1003 = vmatpush2.bf16.msra.mxu0 0
        %1004 = vmatprep.subr.bf16.mxu0 0
        %1005 = vmatpush2.bf16.msra.mxu0 0
        %1006 = vmatprep.subr.bf16.mxu0 0
        %1007 = vmatpush2.bf16.msra.mxu0 0
        %1008 = vmatprep.mubr.bf16.mxu0 0
        %1009 = vmatmul.mubr.bf16.gmra.mxu0 %v974
        %v1010 = vpop.f32.mrf.mxu0
        %v1011 = vadd.f32 0.0, %v1010
        %v1012 = vpop.f32.mrf.mxu0
        %v1013 = vpop.f32.mrf.mxu0
        %v1014 = vpop.f32.mrf.mxu0
        %1015 = vdwg.mxu0
        %v1016 = vrcp.pop %v968
        %v1017 = vmul.f32 %v1011, %v1016
        %v1018 = vld [vmem:[#allocation13 + $0x8] sm:$0xf]
        %v1019 = vld [vmem:[#allocation4] sm:$0xff]
        %v1020 = vpack.c.bf16 %v1017, %v1017
        %v1022 = vsel %vm571, %v1020, 0
        %v1025 = vsel %vm683, %v1018, 0
        %1027 = vmatprep.subr.bf16.mxu0 0
        %1028 = vmatpush1.bf16.msra.mxu0 0
        %1029 = vmatprep.subr.bf16.mxu0 0
        %1030 = vmatpush1.bf16.msra.mxu0 0
        %1031 = vmatprep.subr.bf16.mxu0 0
        %1032 = vmatpush1.bf16.msra.mxu0 0
        %1033 = vmatprep.subr.bf16.mxu0 0
        %1034 = vmatpush1.bf16.msra.mxu0 0
        %1035 = vmatprep.subr.bf16.mxu0 0
        %1036 = vmatpush1.bf16.msra.mxu0 0
        %1037 = vmatprep.subr.bf16.mxu0 0
        %1038 = vmatpush1.bf16.msra.mxu0 0
        %1039 = vmatprep.subr.bf16.mxu0 0
        %1040 = vmatpush1.bf16.msra.mxu0 0
        %1041 = vmatprep.subr.bf16.mxu0 0
        %1042 = vmatpush1.bf16.msra.mxu0 %v1025
        %1043 = vmatprep.subr.bf16.mxu0 0
        %1044 = vmatpush2.bf16.msra.mxu0 0
        %1045 = vmatprep.subr.bf16.mxu0 0
        %1046 = vmatpush2.bf16.msra.mxu0 0
        %1047 = vmatprep.subr.bf16.mxu0 0
        %1048 = vmatpush2.bf16.msra.mxu0 0
        %1049 = vmatprep.subr.bf16.mxu0 0
        %1050 = vmatpush2.bf16.msra.mxu0 0
        %1051 = vmatprep.subr.bf16.mxu0 0
        %1052 = vmatpush2.bf16.msra.mxu0 0
        %1053 = vmatprep.subr.bf16.mxu0 0
        %1054 = vmatpush2.bf16.msra.mxu0 0
        %1055 = vmatprep.subr.bf16.mxu0 0
        %1056 = vmatpush2.bf16.msra.mxu0 0
        %1057 = vmatprep.subr.bf16.mxu0 0
        %1058 = vmatpush2.bf16.msra.mxu0 0
        %1059 = vmatprep.mubr.bf16.mxu0 0
        %1060 = vmatmul.mubr.bf16.gmra.mxu0 %v1022
        %v1061 = vpop.f32.mrf.mxu0
        %v1062 = vadd.f32 0.0, %v1061
        %v1063 = vpop.f32.mrf.mxu0
        %v1064 = vpop.f32.mrf.mxu0
        %v1065 = vpop.f32.mrf.mxu0
        %1066 = vdwg.mxu0
        %v1067 = vadd.f32 %v1019, %v1062
        %1068 = vst.msk [vmem:[#allocation4] sm:$0xff] %vm430, %v1067
        %v1069 = vld [vmem:[#allocation2] sm:$0xf]
        %v1070 = vld [vmem:[#allocation3] sm:$0xf]
        %v1071 = vld [vmem:[#allocation3 + $0x4] sm:$0xf]
        %v1073 = vunpack.c.l.b16 %v1069
        %v1074 = vpack.c.b16 %v1073, %v1073
        %1075 = vrot.lane.b32.xlu0 %v1074, 104
        %v1076 = vpop.permute.xlu0 %1075
        %v1079 = vunpack.c.l.b16 %v1070
        %v1080 = vunpack.c.l.b16 %v1071
        %v1081 = vpack.c.b16 %v1080, %v1079
        %1082 = vrot.lane.b32.xlu0 %v1081, 104
        %v1083 = vpop.permute.xlu0 %1082
        %v1085 = vsel %vm571, %v1076, 0
        %v1088 = vsel %vm571, %v1083, 0
        %1090 = vmatprep.subr.bf16.mxu0 0
        %1091 = vmatpush1.bf16.xpose.msra.mxu0 0
        %1092 = vmatprep.subr.bf16.mxu0 0
        %1093 = vmatpush1.bf16.xpose.msra.mxu0 0
        %1094 = vmatprep.subr.bf16.mxu0 0
        %1095 = vmatpush1.bf16.xpose.msra.mxu0 0
        %1096 = vmatprep.subr.bf16.mxu0 0
        %1097 = vmatpush1.bf16.xpose.msra.mxu0 0
        %1098 = vmatprep.subr.bf16.mxu0 0
        %1099 = vmatpush1.bf16.xpose.msra.mxu0 0
        %1100 = vmatprep.subr.bf16.mxu0 0
        %1101 = vmatpush1.bf16.xpose.msra.mxu0 0
        %1102 = vmatprep.subr.bf16.mxu0 0
        %1103 = vmatpush1.bf16.xpose.msra.mxu0 0
        %1104 = vmatprep.subr.bf16.mxu0 0
        %1105 = vmatpush1.bf16.xpose.msra.mxu0 %v1088
        %1106 = vmatprep.subr.bf16.mxu0 0
        %1107 = vmatpush2.bf16.xpose.msra.mxu0 0
        %1108 = vmatprep.subr.bf16.mxu0 0
        %1109 = vmatpush2.bf16.xpose.msra.mxu0 0
        %1110 = vmatprep.subr.bf16.mxu0 0
        %1111 = vmatpush2.bf16.xpose.msra.mxu0 0
        %1112 = vmatprep.subr.bf16.mxu0 0
        %1113 = vmatpush2.bf16.xpose.msra.mxu0 0
        %1114 = vmatprep.subr.bf16.mxu0 0
        %1115 = vmatpush2.bf16.xpose.msra.mxu0 0
        %1116 = vmatprep.subr.bf16.mxu0 0
        %1117 = vmatpush2.bf16.xpose.msra.mxu0 0
        %1118 = vmatprep.subr.bf16.mxu0 0
        %1119 = vmatpush2.bf16.xpose.msra.mxu0 0
        %1120 = vmatprep.subr.bf16.mxu0 0
        %1121 = vmatpush2.bf16.xpose.msra.mxu0 0
        %1122 = vmatprep.mubr.bf16.mxu0 0
        %1123 = vmatmul.mubr.bf16.gmra.mxu0 %v1085
        %v1124 = vpop.f32.mrf.mxu0
        %v1125 = vadd.f32 0.0, %v1124
        %v1126 = vpop.f32.mrf.mxu0
        %v1127 = vpop.f32.mrf.mxu0
        %v1128 = vpop.f32.mrf.mxu0
        %1129 = vdwg.mxu0
        %v1130 = vsel %vm618, %v1125, -inf
        %1131 = vmax.xlane.f32.xlu0 %v1130
        %v1132 = vpop.xlane.xlu0 %1131
        %v1133 = vsub.f32 %v1125, %v1132
        %v1134 = vmul.f32 %v1133, 1.442695
        %v1135 = vpow.pop %v1134
        %v1136 = vsel %vm618, %v1135, 0.0
        %1137 = vadd.xlane.f32.xlu0 %v1136
        %v1138 = vpop.xlane.xlu0 %1137
        %v1139 = vpack.c.bf16 %v1135, %v1135
        %1140 = vrot.lane.b32.xlu0 %v1081, 72
        %v1141 = vpop.permute.xlu0 %1140
        %v1144 = vsel %vm618, %v1139, 0
        %1146 = vmatprep.subr.bf16.mxu0 0
        %1147 = vmatpush1.bf16.msra.mxu0 0
        %1148 = vmatprep.subr.bf16.mxu0 0
        %1149 = vmatpush1.bf16.msra.mxu0 0
        %1150 = vmatprep.subr.bf16.mxu0 0
        %1151 = vmatpush1.bf16.msra.mxu0 0
        %1152 = vmatprep.subr.bf16.mxu0 0
        %1153 = vmatpush1.bf16.msra.mxu0 0
        %1154 = vmatprep.subr.bf16.mxu0 0
        %1155 = vmatpush1.bf16.msra.mxu0 0
        %1156 = vmatprep.subr.bf16.mxu0 0
        %1157 = vmatpush1.bf16.msra.mxu0 0
        %1158 = vmatprep.subr.bf16.mxu0 0
        %1159 = vmatpush1.bf16.msra.mxu0 0
        %1160 = vmatprep.subr.bf16.mxu0 0
        %1161 = vmatpush1.bf16.msra.mxu0 %v1141
        %1162 = vmatprep.subr.bf16.mxu0 0
        %1163 = vmatpush2.bf16.msra.mxu0 0
        %1164 = vmatprep.subr.bf16.mxu0 0
        %1165 = vmatpush2.bf16.msra.mxu0 0
        %1166 = vmatprep.subr.bf16.mxu0 0
        %1167 = vmatpush2.bf16.msra.mxu0 0
        %1168 = vmatprep.subr.bf16.mxu0 0
        %1169 = vmatpush2.bf16.msra.mxu0 0
        %1170 = vmatprep.subr.bf16.mxu0 0
        %1171 = vmatpush2.bf16.msra.mxu0 0
        %1172 = vmatprep.subr.bf16.mxu0 0
        %1173 = vmatpush2.bf16.msra.mxu0 0
        %1174 = vmatprep.subr.bf16.mxu0 0
        %1175 = vmatpush2.bf16.msra.mxu0 0
        %1176 = vmatprep.subr.bf16.mxu0 0
        %1177 = vmatpush2.bf16.msra.mxu0 0
        %1178 = vmatprep.mubr.bf16.mxu0 0
        %1179 = vmatmul.mubr.bf16.gmra.mxu0 %v1144
        %v1180 = vpop.f32.mrf.mxu0
        %v1181 = vadd.f32 0.0, %v1180
        %v1182 = vpop.f32.mrf.mxu0
        %v1183 = vpop.f32.mrf.mxu0
        %v1184 = vpop.f32.mrf.mxu0
        %1185 = vdwg.mxu0
        %v1186 = vrcp.pop %v1138
        %v1187 = vmul.f32 %v1181, %v1186
        %v1188 = vld [vmem:[#allocation13 + $0xc] sm:$0xf]
        %v1189 = vld [vmem:[#allocation4] sm:$0xff]
        %v1190 = vpack.c.bf16 %v1187, %v1187
        %v1192 = vsel %vm571, %v1190, 0
        %v1195 = vsel %vm683, %v1188, 0
        %1197 = vmatprep.subr.bf16.mxu0 0
        %1198 = vmatpush1.bf16.msra.mxu0 0
        %1199 = vmatprep.subr.bf16.mxu0 0
        %1200 = vmatpush1.bf16.msra.mxu0 0
        %1201 = vmatprep.subr.bf16.mxu0 0
        %1202 = vmatpush1.bf16.msra.mxu0 0
        %1203 = vmatprep.subr.bf16.mxu0 0
        %1204 = vmatpush1.bf16.msra.mxu0 0
        %1205 = vmatprep.subr.bf16.mxu0 0
        %1206 = vmatpush1.bf16.msra.mxu0 0
        %1207 = vmatprep.subr.bf16.mxu0 0
        %1208 = vmatpush1.bf16.msra.mxu0 0
        %1209 = vmatprep.subr.bf16.mxu0 0
        %1210 = vmatpush1.bf16.msra.mxu0 0
        %1211 = vmatprep.subr.bf16.mxu0 0
        %1212 = vmatpush1.bf16.msra.mxu0 %v1195
        %1213 = vmatprep.subr.bf16.mxu0 0
        %1214 = vmatpush2.bf16.msra.mxu0 0
        %1215 = vmatprep.subr.bf16.mxu0 0
        %1216 = vmatpush2.bf16.msra.mxu0 0
        %1217 = vmatprep.subr.bf16.mxu0 0
        %1218 = vmatpush2.bf16.msra.mxu0 0
        %1219 = vmatprep.subr.bf16.mxu0 0
        %1220 = vmatpush2.bf16.msra.mxu0 0
        %1221 = vmatprep.subr.bf16.mxu0 0
        %1222 = vmatpush2.bf16.msra.mxu0 0
        %1223 = vmatprep.subr.bf16.mxu0 0
        %1224 = vmatpush2.bf16.msra.mxu0 0
        %1225 = vmatprep.subr.bf16.mxu0 0
        %1226 = vmatpush2.bf16.msra.mxu0 0
        %1227 = vmatprep.subr.bf16.mxu0 0
        %1228 = vmatpush2.bf16.msra.mxu0 0
        %1229 = vmatprep.mubr.bf16.mxu0 0
        %1230 = vmatmul.mubr.bf16.gmra.mxu0 %v1192
        %v1231 = vpop.f32.mrf.mxu0
        %v1232 = vadd.f32 0.0, %v1231
        %v1233 = vpop.f32.mrf.mxu0
        %v1234 = vpop.f32.mrf.mxu0
        %v1235 = vpop.f32.mrf.mxu0
        %1236 = vdwg.mxu0
        %v1237 = vadd.f32 %v1189, %v1232
        %1238 = vst.msk [vmem:[#allocation4] sm:$0xff] %vm430, %v1237
        %v1239 = vld [vmem:[#allocation4] sm:$0xff]
        %v1240 = vld [vmem:[%s7] sm:$0x1]
        %v1242 = vlaneseq
        %v1243 = vshrl.u32 %v1242, 7
        %v1244 = vsub.s32 0, %v1243
        %v1245 = vrot.slane %v1240, %v1244
        %v1247 = vadd.f32 %v1239, %v1245
        %1248 = vst.msk [vmem:[%s403] sm:$0xff] %vm430, %v1247
        %s1249 = sand.u32 %s215, 1
        %s1250 = scalar_lea.sflag [#allocation7], %s1249
        %s1251 = sand.u32 %s215, 1
        %s1252 = smul.addr %s1251, 8
        %s1253 = scalar_lea.vmem [#allocation14], %s1252
        // Predicated region
        $region73: #{tpu_custom_call.1} parent=51 // pred_check
          %p1254 = pneg %p225
        $region74: #{tpu_custom_call.1} parent=51 // pred_check_branch
          %1256 = sbr.rel (%p1254) target = $region76
        $region75: #{tpu_custom_call.1} parent=51 // pred_region
          %s1258 = ssub.s32 128, 128
          %1259 = vsyncadd %s1250, %s1258
          %s1260 = smul.addr %s29, 128
          %s1261 = scalar_lea.hbm %s8, %s1260
          %s1263 = sshll.u32 %s1253, 4
          %s1264 = int_to_ptr.vmem [resolvable:$true] %s1263
          %1266 = dma.vmem_to_hbm [thread:$0]  %s1264, 128, %s1261, %s1250
        $region76: #{tpu_custom_call.1} parent=51 // pred_fallthru
          _
      $region52: #{tpu_custom_call.1} parent=5 // pred_fallthru
        _
      %p1267 = scmp.le.s32.totalorder 2, %s24
      // Predicated region
      $region77: #{tpu_custom_call.1} parent=5 // pred_check
        %p1268 = pneg %p1267
      $region78: #{tpu_custom_call.1} parent=5 // pred_check_branch
        %1270 = sbr.rel (%p1268) target = $region80
      $region79: #{tpu_custom_call.1} parent=5 // pred_region
        %s1271 = ssub.s32 %s24, 2
        // Predicated region
        $region81: #{tpu_custom_call.1} parent=79 // pred_check
          %p1272 = pneg %p231
        $region82: #{tpu_custom_call.1} parent=79 // pred_check_branch
          %1274 = sbr.rel (%p1272) target = $region84
        $region83: #{tpu_custom_call.1} parent=79 // pred_region
          %s1275 = sand.u32 %s216, 1
          %s1276 = scalar_lea.sflag [#allocation7], %s1275
          %s1277 = sand.u32 %s216, 1
          %s1278 = smul.addr %s1277, 8
          %s1279 = scalar_lea.vmem [#allocation14], %s1278
          %1280 = dma.done %s1276, 128
        $region84: #{tpu_custom_call.1} parent=79 // pred_fallthru
          _
      $region80: #{tpu_custom_call.1} parent=5 // pred_fallthru
        _
    $region6: #{tpu_custom_call.1} parent=1 // loop_footer
      %s28 = sadd.s32 1, %s24
    $region7: #{tpu_custom_call.1} parent=1 // loop_footer_branch
      %23 = sbr.rel target = $region3
    $region8: #{tpu_custom_call.1} parent=1 // loop_exit
      _
    %1281 = vsyncpa [#allocation6], 1
    %s1282 = scalar_lea.sflag [#allocation6], 1
    %1283 = vsyncpa %s1282, 1
    %1284 = vsyncpa [#allocation9], 1
    %s1285 = scalar_lea.sflag [#allocation9], 1
    %1286 = vsyncpa %s1285, 1
    %1287 = vsyncpa [#allocation12], 1
    %1288 = vsyncpa [#allocation7], 1
    %s1289 = scalar_lea.sflag [#allocation7], 1
    %1290 = vsyncpa %s1289, 1

// kernel: tpu_custom_call.1
$region0: #{tpu_custom_call.1}
  #allocation0 [shape = 'u32[]', space=smem, size = 0x4, offset = 0x4, fixed_abs, tag = 'smem constant byte address 0x4 - core index']
  #allocation1 [shape = 'u32[144,128]{1,0:T(1,128)}', space=vmem, size = 0x12000, scoped, tag = 'internal scratch']
  #allocation2 [shape = 'bf16[8,32]{1,0:T(8,128)(2,1)}', space=vmem, size = 0x800, scoped, tag = 'scratch operand']
  #allocation3 [shape = 'bf16[16,64]{1,0:T(8,128)(2,1)}', space=vmem, size = 0x1000, scoped, tag = 'scratch operand']
  #allocation4 [shape = 'f32[8,32]{1,0:T(8,128)}', space=vmem, size = 0x1000, scoped, tag = 'scratch operand']
  %s0 = inlined_call_operand.hbm [shape: bf16[16,32], index: 0, kind: input, shape index: {}]
  %s1 = inlined_call_operand.hbm [shape: bf16[32,32], index: 1, kind: input, shape index: {}]
  %s2 = inlined_call_operand.hbm [shape: bf16[32,32], index: 2, kind: input, shape index: {}]
  %s3 = inlined_call_operand.vmem [shape: f32[1,32], index: 3, kind: input, shape index: {}]
  %s4 = inlined_call_operand.hbm [shape: bf16[32,64], index: 4, kind: input, shape index: {}]
  %s5 = inlined_call_operand.vmem [shape: f32[1,64], index: 5, kind: input, shape index: {}]
  %s6 = inlined_call_operand.hbm [shape: bf16[32,32], index: 6, kind: input, shape index: {}]
  %s7 = inlined_call_operand.vmem [shape: f32[1,32], index: 7, kind: input, shape index: {}]
  %s8 = inlined_call_operand.hbm [shape: f32[16,32], index: 8, kind: output, shape index: {}]
  %s9 = sld [smem:[#allocation0]]
  $region85: #{tpu_custom_call.1} parent=0
    _
  %s11 = ssub.s32 1, %s9
  %s12 = scalar_select 0, %s11, %s9
  $region1: #{tpu_custom_call.1} parent=0
    #allocation5 [shape = 'u8[4096]{0}', space=vmem, size = 0x1000, scoped, tag = 'input window, operand 0']
    #allocation6 [shape = 's32[2]{0}', space=sflag, size = 0x8, scoped, tag = 'scoped memory for tpu_custom_call.1']
    #allocation7 [shape = 's32[2]{0}', space=sflag, size = 0x8, scoped, tag = 'scoped memory for tpu_custom_call.1']
    #allocation8 [shape = 'u8[8192]{0}', space=vmem, size = 0x2000, scoped, tag = 'input window, operand 1']
    #allocation9 [shape = 's32[2]{0}', space=sflag, size = 0x8, scoped, tag = 'scoped memory for tpu_custom_call.1']
    #allocation10 [shape = 'u8[8192]{0}', space=vmem, size = 0x2000, scoped, tag = 'input window, operand 2, single buffered']
    #allocation11 [shape = 'u8[8192]{0}', space=vmem, size = 0x2000, scoped, tag = 'input window, operand 4, single buffered']
    #allocation12 [shape = 's32[1]{0}', space=sflag, size = 0x4, scoped, tag = 'scoped memory for tpu_custom_call.1']
    #allocation13 [shape = 'u8[8192]{0}', space=vmem, size = 0x2000, scoped, tag = 'input window, operand 6, single buffered']
    #allocation14 [shape = 'u8[8192]{0}', space=vmem, size = 0x2000, scoped, tag = 'output window, operand 0']
    %13 = vsyncpa [#allocation6], 0
    %s14 = scalar_lea.sflag [#allocation6], 1
    %15 = vsyncpa %s14, 0
    %16 = vsyncpa [#allocation9], 0
    %s17 = scalar_lea.sflag [#allocation9], 1
    %18 = vsyncpa %s17, 0
    %19 = vsyncpa [#allocation12], 0
    %20 = vsyncpa [#allocation7], 0
    %s21 = scalar_lea.sflag [#allocation7], 1
    %22 = vsyncpa %s21, 0
    loop: start=0, step=1, limit=4
    $region2: #{tpu_custom_call.1} parent=1 // loop_pre_header
      _
    $region3: #{tpu_custom_call.1} parent=1 // loop_header
      %s24 = sphi 0, %s28
      %p25 = scmp.ge.s32.totalorder %s24, 4
      %s34 = sphi 0, %s36
      %s37 = sphi 0, %s34
      %s38 = sphi 0, %s37
      %s54 = sphi 0, %s38
      %s60 = sphi 0, %s62
      %s63 = sphi 0, %s60
      %s64 = sphi 0, %s63
      %s80 = sphi 0, %s64
      %s84 = sphi 0, %s84
      %s86 = sphi 0, %s84
      %s87 = sphi 0, %s86
      %s101 = sphi 0, %s87
      %s105 = sphi 0, %s105
      %s107 = sphi 0, %s105
      %s108 = sphi 0, %s107
      %s122 = sphi 0, %s108
      %s126 = sphi 0, %s126
      %s128 = sphi 0, %s126
      %s129 = sphi 0, %s128
      %s143 = sphi 0, %s129
      %s147 = sphi 0, %s147
      %s149 = sphi 0, %s147
      %s150 = sphi 0, %s149
      %s164 = sphi 0, %s150
      %s168 = sphi 0, %s168
      %s170 = sphi 0, %s168
      %s171 = sphi 0, %s170
      %s185 = sphi 0, %s171
      %s189 = sphi 0, %s189
      %s191 = sphi 0, %s189
      %s192 = sphi 0, %s191
      %s206 = sphi 0, %s192
      %s212 = sphi 0, %s214
      %s215 = sphi 0, %s212
      %s216 = sphi 0, %s215
      %s232 = sphi 0, %s216
    $region4: #{tpu_custom_call.1} parent=1 // loop_header_branch
      %27 = sbr.rel (%p25) target = $region8
    $region5: #{tpu_custom_call.1} parent=1 // loop_body
      %s29 = ssub.s32 %s24, 1
      %s30 = ssub.s32 %s24, 2
      %s31 = sadd.s32 %s24, 1
      %s32 = ssub.s32 %s24, %s31
      %p33 = scmp.eq.s32.totalorder %s32, 0
      %s35 = sadd.s32 %s34, 1
      %s36 = scalar_select %p33, %s34, %s35
      %p39 = pneg %p33
      %p40 = scmp.eq.s32.totalorder %s24, 1
      %p41 = por %p39, %p40
      %p42 = scmp.ne.s32.totalorder %s34, %s37
      %p43 = scmp.eq.s32.totalorder %s24, 0
      %p44 = por %p42, %p43
      %p45 = scmp.ne.s32.totalorder %s34, %s37
      %p46 = scmp.eq.s32.totalorder %s29, 1
      %p47 = por %p45, %p46
      %p48 = scmp.ne.s32.totalorder %s37, %s38
      %p49 = scmp.eq.s32.totalorder %s29, 0
      %p50 = por %p48, %p49
      %p51 = scmp.ne.s32.totalorder %s37, %s38
      %p52 = scmp.eq.s32.totalorder %s30, 1
      %p53 = por %p51, %p52
      %p55 = scmp.ne.s32.totalorder %s38, %s54
      %p56 = scmp.eq.s32.totalorder %s30, 0
      %p57 = por %p55, %p56
      %s58 = ssub.s32 %s24, %s31
      %p59 = scmp.eq.s32.totalorder %s58, 0
      %s61 = sadd.s32 %s60, 1
      %s62 = scalar_select %p59, %s60, %s61
      %p65 = pneg %p59
      %p66 = scmp.eq.s32.totalorder %s24, 1
      %p67 = por %p65, %p66
      %p68 = scmp.ne.s32.totalorder %s60, %s63
      %p69 = scmp.eq.s32.totalorder %s24, 0
      %p70 = por %p68, %p69
      %p71 = scmp.ne.s32.totalorder %s60, %s63
      %p72 = scmp.eq.s32.totalorder %s29, 1
      %p73 = por %p71, %p72
      %p74 = scmp.ne.s32.totalorder %s63, %s64
      %p75 = scmp.eq.s32.totalorder %s29, 0
      %p76 = por %p74, %p75
      %p77 = scmp.ne.s32.totalorder %s63, %s64
      %p78 = scmp.eq.s32.totalorder %s30, 1
      %p79 = por %p77, %p78
      %p81 = scmp.ne.s32.totalorder %s64, %s80
      %p82 = scmp.eq.s32.totalorder %s30, 0
      %p83 = por %p81, %p82
      %s85 = sadd.s32 %s84, 1
      %p88 = scmp.eq.s32.totalorder %s24, 1
      %p89 = scmp.ne.s32.totalorder %s84, %s86
      %p90 = scmp.eq.s32.totalorder %s24, 0
      %p91 = por %p89, %p90
      %p92 = scmp.ne.s32.totalorder %s84, %s86
      %p93 = scmp.eq.s32.totalorder %s29, 1
      %p94 = por %p92, %p93
      %p95 = scmp.ne.s32.totalorder %s86, %s87
      %p96 = scmp.eq.s32.totalorder %s29, 0
      %p97 = por %p95, %p96
      %p98 = scmp.ne.s32.totalorder %s86, %s87
      %p99 = scmp.eq.s32.totalorder %s30, 1
      %p100 = por %p98, %p99
      %p102 = scmp.ne.s32.totalorder %s87, %s101
      %p103 = scmp.eq.s32.totalorder %s30, 0
      %p104 = por %p102, %p103
      %s106 = sadd.s32 %s105, 1
      %p109 = scmp.eq.s32.totalorder %s24, 1
      %p110 = scmp.ne.s32.totalorder %s105, %s107
      %p111 = scmp.eq.s32.totalorder %s24, 0
      %p112 = por %p110, %p111
      %p113 = scmp.ne.s32.totalorder %s105, %s107
      %p114 = scmp.eq.s32.totalorder %s29, 1
      %p115 = por %p113, %p114
      %p116 = scmp.ne.s32.totalorder %s107, %s108
      %p117 = scmp.eq.s32.totalorder %s29, 0
      %p118 = por %p116, %p117
      %p119 = scmp.ne.s32.totalorder %s107, %s108
      %p120 = scmp.eq.s32.totalorder %s30, 1
      %p121 = por %p119, %p120
      %p123 = scmp.ne.s32.totalorder %s108, %s122
      %p124 = scmp.eq.s32.totalorder %s30, 0
      %p125 = por %p123, %p124
      %s127 = sadd.s32 %s126, 1
      %p130 = scmp.eq.s32.totalorder %s24, 1
      %p131 = scmp.ne.s32.totalorder %s126, %s128
      %p132 = scmp.eq.s32.totalorder %s24, 0
      %p133 = por %p131, %p132
      %p134 = scmp.ne.s32.totalorder %s126, %s128
      %p135 = scmp.eq.s32.totalorder %s29, 1
      %p136 = por %p134, %p135
      %p137 = scmp.ne.s32.totalorder %s128, %s129
      %p138 = scmp.eq.s32.totalorder %s29, 0
      %p139 = por %p137, %p138
      %p140 = scmp.ne.s32.totalorder %s128, %s129
      %p141 = scmp.eq.s32.totalorder %s30, 1
      %p142 = por %p140, %p141
      %p144 = scmp.ne.s32.totalorder %s129, %s143
      %p145 = scmp.eq.s32.totalorder %s30, 0
      %p146 = por %p144, %p145
      %s148 = sadd.s32 %s147, 1
      %p151 = scmp.eq.s32.totalorder %s24, 1
      %p152 = scmp.ne.s32.totalorder %s147, %s149
      %p153 = scmp.eq.s32.totalorder %s24, 0
      %p154 = por %p152, %p153
      %p155 = scmp.ne.s32.totalorder %s147, %s149
      %p156 = scmp.eq.s32.totalorder %s29, 1
      %p157 = por %p155, %p156
      %p158 = scmp.ne.s32.totalorder %s149, %s150
      %p159 = scmp.eq.s32.totalorder %s29, 0
      %p160 = por %p158, %p159
      %p161 = scmp.ne.s32.totalorder %s149, %s150
      %p162 = scmp.eq.s32.totalorder %s30, 1
      %p163 = por %p161, %p162
      %p165 = scmp.ne.s32.totalorder %s150, %s164
      %p166 = scmp.eq.s32.totalorder %s30, 0
      %p167 = por %p165, %p166
      %s169 = sadd.s32 %s168, 1
      %p172 = scmp.eq.s32.totalorder %s24, 1
      %p173 = scmp.ne.s32.totalorder %s168, %s170
      %p174 = scmp.eq.s32.totalorder %s24, 0
      %p175 = por %p173, %p174
      %p176 = scmp.ne.s32.totalorder %s168, %s170
      %p177 = scmp.eq.s32.totalorder %s29, 1
      %p178 = por %p176, %p177
      %p179 = scmp.ne.s32.totalorder %s170, %s171
      %p180 = scmp.eq.s32.totalorder %s29, 0
      %p181 = por %p179, %p180
      %p182 = scmp.ne.s32.totalorder %s170, %s171
      %p183 = scmp.eq.s32.totalorder %s30, 1
      %p184 = por %p182, %p183
      %p186 = scmp.ne.s32.totalorder %s171, %s185
      %p187 = scmp.eq.s32.totalorder %s30, 0
      %p188 = por %p186, %p187
      %s190 = sadd.s32 %s189, 1
      %p193 = scmp.eq.s32.totalorder %s24, 1
      %p194 = scmp.ne.s32.totalorder %s189, %s191
      %p195 = scmp.eq.s32.totalorder %s24, 0
      %p196 = por %p194, %p195
      %p197 = scmp.ne.s32.totalorder %s189, %s191
      %p198 = scmp.eq.s32.totalorder %s29, 1
      %p199 = por %p197, %p198
      %p200 = scmp.ne.s32.totalorder %s191, %s192
      %p201 = scmp.eq.s32.totalorder %s29, 0
      %p202 = por %p200, %p201
      %p203 = scmp.ne.s32.totalorder %s191, %s192
      %p204 = scmp.eq.s32.totalorder %s30, 1
      %p205 = por %p203, %p204
      %p207 = scmp.ne.s32.totalorder %s192, %s206
      %p208 = scmp.eq.s32.totalorder %s30, 0
      %p209 = por %p207, %p208
      %s210 = ssub.s32 %s24, %s31
      %p211 = scmp.eq.s32.totalorder %s210, 0
      %s213 = sadd.s32 %s212, 1
      %s214 = scalar_select %p211, %s212, %s213
      %p217 = pneg %p211
      %p218 = scmp.eq.s32.totalorder %s24, 1
      %p219 = por %p217, %p218
      %p220 = scmp.ne.s32.totalorder %s212, %s215
      %p221 = scmp.eq.s32.totalorder %s24, 0
      %p222 = por %p220, %p221
      %p223 = scmp.ne.s32.totalorder %s212, %s215
      %p224 = scmp.eq.s32.totalorder %s29, 1
      %p225 = por %p223, %p224
      %p226 = scmp.ne.s32.totalorder %s215, %s216
      %p227 = scmp.eq.s32.totalorder %s29, 0
      %p228 = por %p226, %p227
      %p229 = scmp.ne.s32.totalorder %s215, %s216
      %p230 = scmp.eq.s32.totalorder %s30, 1
      %p231 = por %p229, %p230
      %p233 = scmp.ne.s32.totalorder %s216, %s232
      %p234 = scmp.eq.s32.totalorder %s30, 0
      %p235 = por %p233, %p234
      %p236 = scmp.le.s32.totalorder 1, %s24
      %p237 = scmp.lt.s32.totalorder %s24, 3
      %p238 = pnand %p236, %p237
      %p239 = pneg %p238
      // Predicated region
      $region9: #{tpu_custom_call.1} parent=5 // pred_check
        _
      $region10: #{tpu_custom_call.1} parent=5 // pred_check_branch
        %241 = sbr.rel (%p238) target = $region12
      $region11: #{tpu_custom_call.1} parent=5 // pred_region
        %s242 = ssub.s32 %s24, 1
        // Predicated region
        $region13: #{tpu_custom_call.1} parent=11 // pred_check
          %p243 = pneg %p97
        $region14: #{tpu_custom_call.1} parent=11 // pred_check_branch
          %245 = sbr.rel (%p243) target = $region16
        $region15: #{tpu_custom_call.1} parent=11 // pred_region
          %s247 = ssub.s32 256, 256
          %248 = vsyncadd [#allocation9], %s247
          %s249 = sshll.u32 [#allocation10], 4
          %s250 = int_to_ptr.vmem [resolvable:$true] %s249
          %255 = dma.hbm_to_vmem [thread:$0]  %s2, 256, %s250, [#allocation9], 64, 64, 4
        $region16: #{tpu_custom_call.1} parent=11 // pred_fallthru
          _
        // Predicated region
        $region17: #{tpu_custom_call.1} parent=11 // pred_check
          %p256 = pneg %p118
        $region18: #{tpu_custom_call.1} parent=11 // pred_check_branch
          %258 = sbr.rel (%p256) target = $region20
        $region19: #{tpu_custom_call.1} parent=11 // pred_region
          _
        $region20: #{tpu_custom_call.1} parent=11 // pred_fallthru
          _
        // Predicated region
        $region21: #{tpu_custom_call.1} parent=11 // pred_check
          %p259 = pneg %p139
        $region22: #{tpu_custom_call.1} parent=11 // pred_check_branch
          %261 = sbr.rel (%p259) target = $region24
        $region23: #{tpu_custom_call.1} parent=11 // pred_region
          %s263 = ssub.s32 256, 256
          %264 = vsyncadd [#allocation12], %s263
          %s265 = sshll.u32 [#allocation11], 4
          %s266 = int_to_ptr.vmem [resolvable:$true] %s265
          %271 = dma.hbm_to_vmem [thread:$0]  %s4, 256, %s266, [#allocation12], 64, 64, 4
        $region24: #{tpu_custom_call.1} parent=11 // pred_fallthru
          _
        // Predicated region
        $region25: #{tpu_custom_call.1} parent=11 // pred_check
          %p272 = pneg %p160
        $region26: #{tpu_custom_call.1} parent=11 // pred_check_branch
          %274 = sbr.rel (%p272) target = $region28
        $region27: #{tpu_custom_call.1} parent=11 // pred_region
          _
        $region28: #{tpu_custom_call.1} parent=11 // pred_fallthru
          _
        // Predicated region
        $region29: #{tpu_custom_call.1} parent=11 // pred_check
          %p275 = pneg %p181
        $region30: #{tpu_custom_call.1} parent=11 // pred_check_branch
          %277 = sbr.rel (%p275) target = $region32
        $region31: #{tpu_custom_call.1} parent=11 // pred_region
          %s279 = ssub.s32 256, 256
          %280 = vsyncadd [#allocation12], %s279
          %s281 = sshll.u32 [#allocation13], 4
          %s282 = int_to_ptr.vmem [resolvable:$true] %s281
          %287 = dma.hbm_to_vmem [thread:$0]  %s6, 256, %s282, [#allocation12], 64, 64, 4
        $region32: #{tpu_custom_call.1} parent=11 // pred_fallthru
          _
        // Predicated region
        $region33: #{tpu_custom_call.1} parent=11 // pred_check
          %p288 = pneg %p202
        $region34: #{tpu_custom_call.1} parent=11 // pred_check_branch
          %290 = sbr.rel (%p288) target = $region36
        $region35: #{tpu_custom_call.1} parent=11 // pred_region
          _
        $region36: #{tpu_custom_call.1} parent=11 // pred_fallthru
          _
      $region12: #{tpu_custom_call.1} parent=5 // pred_fallthru
        _
      %p291 = scmp.lt.s32.totalorder %s24, 2
      // Predicated region
      $region37: #{tpu_custom_call.1} parent=5 // pred_check
        %p292 = pneg %p291
      $region38: #{tpu_custom_call.1} parent=5 // pred_check_branch
        %294 = sbr.rel (%p292) target = $region40
      $region39: #{tpu_custom_call.1} parent=5 // pred_region
        // Predicated region
        $region41: #{tpu_custom_call.1} parent=39 // pred_check
          %p295 = pneg %p44
        $region42: #{tpu_custom_call.1} parent=39 // pred_check_branch
          %297 = sbr.rel (%p295) target = $region44
        $region43: #{tpu_custom_call.1} parent=39 // pred_region
          %s298 = sand.u32 %s34, 1
          %s299 = scalar_lea.sflag [#allocation6], %s298
          %s300 = sand.u32 %s34, 1
          %s301 = smul.addr %s300, 4
          %s302 = scalar_lea.vmem [#allocation5], %s301
          %s304 = ssub.s32 64, 64
          %305 = vsyncadd %s299, %s304
          %s306 = smul.addr %s24, 64
          %s307 = scalar_lea.hbm %s0, %s306
          %s309 = sshll.u32 %s302, 4
          %s310 = int_to_ptr.vmem [resolvable:$true] %s309
          %312 = dma.hbm_to_vmem [thread:$0]  %s307, 64, %s310, %s299
        $region44: #{tpu_custom_call.1} parent=39 // pred_fallthru
          _
        // Predicated region
        $region45: #{tpu_custom_call.1} parent=39 // pred_check
          %p313 = pneg %p70
        $region46: #{tpu_custom_call.1} parent=39 // pred_check_branch
          %315 = sbr.rel (%p313) target = $region48
        $region47: #{tpu_custom_call.1} parent=39 // pred_region
          %s316 = sand.u32 %s24, 1
          %s317 = scalar_lea.sflag [#allocation9], %s316
          %s318 = sand.u32 %s60, 1
          %s319 = smul.addr %s318, 8
          %s320 = scalar_lea.vmem [#allocation8], %s319
          %s321 = smul.u32 2, %s24
          %s323 = ssub.s32 128, 128
          %324 = vsyncadd %s317, %s323
          %s325 = smul.addr %s321, 64
          %s326 = scalar_lea.hbm %s1, %s325
          %s327 = sshll.u32 %s320, 4
          %s328 = int_to_ptr.vmem [resolvable:$true] %s327
          %333 = dma.hbm_to_vmem [thread:$0]  %s326, 128, %s328, %s317, 64, 64, 4
        $region48: #{tpu_custom_call.1} parent=39 // pred_fallthru
          _
      $region40: #{tpu_custom_call.1} parent=5 // pred_fallthru
        _
      %p334 = scmp.le.s32.totalorder 1, %s24
      %p335 = scmp.lt.s32.totalorder %s24, 3
      %p336 = pnand %p334, %p335
      %p337 = pneg %p336
      // Predicated region
      $region49: #{tpu_custom_call.1} parent=5 // pred_check
        _
      $region50: #{tpu_custom_call.1} parent=5 // pred_check_branch
        %339 = sbr.rel (%p336) target = $region52
      $region51: #{tpu_custom_call.1} parent=5 // pred_region
        %s340 = ssub.s32 %s24, 1
        %s341 = sand.u32 %s37, 1
        %s342 = scalar_lea.sflag [#allocation6], %s341
        %s343 = sand.u32 %s37, 1
        %s344 = smul.addr %s343, 4
        %s345 = scalar_lea.vmem [#allocation5], %s344
        // Predicated region
        $region53: #{tpu_custom_call.1} parent=51 // pred_check
          %p346 = pneg %p50
        $region54: #{tpu_custom_call.1} parent=51 // pred_check_branch
          %348 = sbr.rel (%p346) target = $region56
        $region55: #{tpu_custom_call.1} parent=51 // pred_region
          %349 = dma.done %s342, 64
        $region56: #{tpu_custom_call.1} parent=51 // pred_fallthru
          _
        %s350 = sand.u32 %s29, 1
        %s351 = scalar_lea.sflag [#allocation9], %s350
        %s352 = sand.u32 %s63, 1
        %s353 = smul.addr %s352, 8
        %s354 = scalar_lea.vmem [#allocation8], %s353
        // Predicated region
        $region57: #{tpu_custom_call.1} parent=51 // pred_check
          %p355 = pneg %p76
        $region58: #{tpu_custom_call.1} parent=51 // pred_check_branch
          %357 = sbr.rel (%p355) target = $region60
        $region59: #{tpu_custom_call.1} parent=51 // pred_region
          %358 = dma.done %s351, 128
        $region60: #{tpu_custom_call.1} parent=51 // pred_fallthru
          _
        // Predicated region
        $region61: #{tpu_custom_call.1} parent=51 // pred_check
          %p359 = pneg %p97
        $region62: #{tpu_custom_call.1} parent=51 // pred_check_branch
          %361 = sbr.rel (%p359) target = $region64
        $region63: #{tpu_custom_call.1} parent=51 // pred_region
          %362 = dma.done [#allocation9], 256
        $region64: #{tpu_custom_call.1} parent=51 // pred_fallthru
          _
        // Predicated region
        $region65: #{tpu_custom_call.1} parent=51 // pred_check
          %p363 = pneg %p139
        $region66: #{tpu_custom_call.1} parent=51 // pred_check_branch
          %365 = sbr.rel (%p363) target = $region68
        $region67: #{tpu_custom_call.1} parent=51 // pred_region
          %366 = dma.done [#allocation12], 256
        $region68: #{tpu_custom_call.1} parent=51 // pred_fallthru
          _
        // Predicated region
        $region69: #{tpu_custom_call.1} parent=51 // pred_check
          %p367 = pneg %p181
        $region70: #{tpu_custom_call.1} parent=51 // pred_check_branch
          %369 = sbr.rel (%p367) target = $region72
        $region71: #{tpu_custom_call.1} parent=51 // pred_region
          %370 = dma.done [#allocation12], 256
        $region72: #{tpu_custom_call.1} parent=51 // pred_fallthru
          _
        %s371 = sand.u32 %s37, 1
        %s372 = scalar_lea.sflag [#allocation6], %s371
        %s373 = sand.u32 %s37, 1
        %s374 = smul.addr %s373, 4
        %s375 = scalar_lea.vmem [#allocation5], %s374
        %p376 = pneg %p50
        %p377 = pneg %p47
        %s378 = sand.u32 %s29, 1
        %s379 = scalar_lea.sflag [#allocation9], %s378
        %s380 = sand.u32 %s63, 1
        %s381 = smul.addr %s380, 8
        %s382 = scalar_lea.vmem [#allocation8], %s381
        %p383 = pneg %p76
        %p384 = pneg %p73
        %p385 = pneg %p97
        %p386 = pneg %p94
        %p387 = pneg %p118
        %p388 = pneg %p115
        %p389 = pneg %p139
        %p390 = pneg %p136
        %p391 = pneg %p160
        %p392 = pneg %p157
        %p393 = pneg %p181
        %p394 = pneg %p178
        %p395 = pneg %p202
        %p396 = pneg %p199
        %p397 = pneg %p228
        %p398 = pneg %p225
        %s399 = sand.u32 %s215, 1
        %s400 = scalar_lea.sflag [#allocation7], %s399
        %s401 = sand.u32 %s215, 1
        %s402 = smul.addr %s401, 8
        %s403 = scalar_lea.vmem [#allocation14], %s402
        %s404 = smul.u32 2, %s29
        %v406 = vld [vmem:[%s345] sm:$0xf]
        %v407 = vld [vmem:[#allocation10] sm:$0xf]
        %v408 = vld [vmem:[#allocation10 + $0x4] sm:$0xf]
        %v409 = vld [vmem:[#allocation10 + $0x8] sm:$0xf]
        %v410 = vld [vmem:[#allocation10 + $0xc] sm:$0xf]
        %v411 = vld [vmem:[%s3] sm:$0x1]
        %v413 = vlaneseq
        %v414 = vshrl.u32 %v413, 7
        %v415 = vsub.s32 0, %v414
        %v416 = vrot.slane %v411, %v415
        %v422 = vunpack.c.l.b16 %v407
        %v423 = vunpack.c.l.b16 %v408
        %v424 = vunpack.c.l.b16 %v409
        %v425 = vunpack.c.l.b16 %v410
        %v426 = vpack.c.b16 %v423, %v422
        %v427 = vpack.c.b16 %v425, %v424
        %vm430 = vcmask 261120
        %v432 = vsel %vm430, %v406, 0
        %434 = vmatprep.subr.bf16.mxu0 0
        %435 = vmatpush1.bf16.msra.mxu0 0
        %436 = vmatprep.subr.bf16.mxu0 0
        %437 = vmatpush1.bf16.msra.mxu0 0
        %438 = vmatprep.subr.bf16.mxu0 0
        %439 = vmatpush1.bf16.msra.mxu0 0
        %440 = vmatprep.subr.bf16.mxu0 0
        %441 = vmatpush1.bf16.msra.mxu0 0
        %442 = vmatprep.subr.bf16.mxu0 0
        %443 = vmatpush1.bf16.msra.mxu0 0
        %444 = vmatprep.subr.bf16.mxu0 0
        %445 = vmatpush1.bf16.msra.mxu0 0
        %446 = vmatprep.subr.bf16.mxu0 0
        %447 = vmatpush1.bf16.msra.mxu0 %v427
        %448 = vmatprep.subr.bf16.mxu0 0
        %449 = vmatpush1.bf16.msra.mxu0 %v426
        %450 = vmatprep.subr.bf16.mxu0 0
        %451 = vmatpush2.bf16.msra.mxu0 0
        %452 = vmatprep.subr.bf16.mxu0 0
        %453 = vmatpush2.bf16.msra.mxu0 0
        %454 = vmatprep.subr.bf16.mxu0 0
        %455 = vmatpush2.bf16.msra.mxu0 0
        %456 = vmatprep.subr.bf16.mxu0 0
        %457 = vmatpush2.bf16.msra.mxu0 0
        %458 = vmatprep.subr.bf16.mxu0 0
        %459 = vmatpush2.bf16.msra.mxu0 0
        %460 = vmatprep.subr.bf16.mxu0 0
        %461 = vmatpush2.bf16.msra.mxu0 0
        %462 = vmatprep.subr.bf16.mxu0 0
        %463 = vmatpush2.bf16.msra.mxu0 0
        %464 = vmatprep.subr.bf16.mxu0 0
        %465 = vmatpush2.bf16.msra.mxu0 0
        %466 = vmatprep.mubr.bf16.mxu0 0
        %467 = vmatmul.mubr.bf16.gmra.mxu0 %v432
        %v468 = vpop.f32.mrf.mxu0
        %v469 = vadd.f32 %v416, %v468
        %v470 = vpop.f32.mrf.mxu0
        %v471 = vpop.f32.mrf.mxu0
        %v472 = vpop.f32.mrf.mxu0
        %473 = vdwg.mxu0
        %v474 = vpack.c.bf16 %v469, %v469
        %vm475 = vcmask 257024
        %476 = vst.msk [vmem:[#allocation2] sm:$0xf] %vm475, %v474
        %v477 = vld [vmem:[%s354] sm:$0xf]
        %v478 = vld [vmem:[%s354 + $0x4] sm:$0xf]
        %v479 = vld [vmem:[#allocation11] sm:$0xf]
        %v480 = vld [vmem:[#allocation11 + $0x4] sm:$0xf]
        %v481 = vld [vmem:[#allocation11 + $0x8] sm:$0xf]
        %v482 = vld [vmem:[#allocation11 + $0xc] sm:$0xf]
        %v483 = vld [vmem:[%s5] sm:$0x1]
        %v485 = vlaneseq
        %v486 = vshrl.u32 %v485, 7
        %v487 = vsub.s32 0, %v486
        %v488 = vrot.slane %v483, %v487
        %v492 = vunpack.c.l.b16 %v477
        %v493 = vunpack.c.l.b16 %v478
        %v494 = vpack.c.b16 %v493, %v492
        %v499 = vunpack.c.l.b16 %v479
        %v500 = vunpack.c.l.b16 %v480
        %v501 = vunpack.c.l.b16 %v481
        %v502 = vunpack.c.l.b16 %v482
        %v503 = vpack.c.b16 %v500, %v499
        %v504 = vpack.c.b16 %v502, %v501
        %v508 = vsel %vm430, %v494, 0
        %510 = vmatprep.subr.bf16.mxu0 0
        %511 = vmatpush1.bf16.msra.mxu0 0
        %512 = vmatprep.subr.bf16.mxu0 0
        %513 = vmatpush1.bf16.msra.mxu0 0
        %514 = vmatprep.subr.bf16.mxu0 0
        %515 = vmatpush1.bf16.msra.mxu0 0
        %516 = vmatprep.subr.bf16.mxu0 0
        %517 = vmatpush1.bf16.msra.mxu0 0
        %518 = vmatprep.subr.bf16.mxu0 0
        %519 = vmatpush1.bf16.msra.mxu0 0
        %520 = vmatprep.subr.bf16.mxu0 0
        %521 = vmatpush1.bf16.msra.mxu0 0
        %522 = vmatprep.subr.bf16.mxu0 0
        %523 = vmatpush1.bf16.msra.mxu0 %v504
        %524 = vmatprep.subr.bf16.mxu0 0
        %525 = vmatpush1.bf16.msra.mxu0 %v503
        %526 = vmatprep.subr.bf16.mxu0 0
        %527 = vmatpush2.bf16.msra.mxu0 0
        %528 = vmatprep.subr.bf16.mxu0 0
        %529 = vmatpush2.bf16.msra.mxu0 0
        %530 = vmatprep.subr.bf16.mxu0 0
        %531 = vmatpush2.bf16.msra.mxu0 0
        %532 = vmatprep.subr.bf16.mxu0 0
        %533 = vmatpush2.bf16.msra.mxu0 0
        %534 = vmatprep.subr.bf16.mxu0 0
        %535 = vmatpush2.bf16.msra.mxu0 0
        %536 = vmatprep.subr.bf16.mxu0 0
        %537 = vmatpush2.bf16.msra.mxu0 0
        %538 = vmatprep.subr.bf16.mxu0 0
        %539 = vmatpush2.bf16.msra.mxu0 0
        %540 = vmatprep.subr.bf16.mxu0 0
        %541 = vmatpush2.bf16.msra.mxu0 0
        %542 = vmatprep.mubr.bf16.mxu0 0
        %543 = vmatmul.mubr.bf16.gmra.mxu0 %v508
        %v544 = vpop.f32.mrf.mxu0
        %v545 = vadd.f32 %v488, %v544
        %v546 = vpop.f32.mrf.mxu0
        %v547 = vpop.f32.mrf.mxu0
        %v548 = vadd.f32 %v488, %v547
        %v549 = vpop.f32.mrf.mxu0
        %550 = vdwg.mxu0
        %v551 = vpack.c.bf16 %v548, %v545
        %v553 = vunpack.c.l.b16 %v551
        %v554 = vunpack.c.h.b16 %v551
        %v555 = vpack.c.b16 %v553, %v553
        %v556 = vpack.c.b16 %v554, %v554
        %vm559 = vcmask 519168
        %560 = vst.msk [vmem:[#allocation3] sm:$0xf] %vm559, %v555
        %561 = vst.msk [vmem:[#allocation3 + $0x4] sm:$0xf] %vm559, %v556
        %562 = vst.msk [vmem:[#allocation4] sm:$0xff] %vm430, 0.0
        %v563 = vld [vmem:[#allocation2] sm:$0xf]
        %v564 = vld [vmem:[#allocation3] sm:$0xf]
        %v565 = vld [vmem:[#allocation3 + $0x4] sm:$0xf]
        %v568 = vunpack.c.l.b16 %v564
        %v569 = vunpack.c.l.b16 %v565
        %v570 = vpack.c.b16 %v569, %v568
        %vm571 = vcmask 64512
        %v573 = vsel %vm571, %v563, 0
        %v576 = vsel %vm571, %v570, 0
        %578 = vmatprep.subr.bf16.mxu0 0
        %579 = vmatpush1.bf16.xpose.msra.mxu0 0
        %580 = vmatprep.subr.bf16.mxu0 0
        %581 = vmatpush1.bf16.xpose.msra.mxu0 0
        %582 = vmatprep.subr.bf16.mxu0 0
        %583 = vmatpush1.bf16.xpose.msra.mxu0 0
        %584 = vmatprep.subr.bf16.mxu0 0
        %585 = vmatpush1.bf16.xpose.msra.mxu0 0
        %586 = vmatprep.subr.bf16.mxu0 0
        %587 = vmatpush1.bf16.xpose.msra.mxu0 0
        %588 = vmatprep.subr.bf16.mxu0 0
        %589 = vmatpush1.bf16.xpose.msra.mxu0 0
        %590 = vmatprep.subr.bf16.mxu0 0
        %591 = vmatpush1.bf16.xpose.msra.mxu0 0
        %592 = vmatprep.subr.bf16.mxu0 0
        %593 = vmatpush1.bf16.xpose.msra.mxu0 %v576
        %594 = vmatprep.subr.bf16.mxu0 0
        %595 = vmatpush2.bf16.xpose.msra.mxu0 0
        %596 = vmatprep.subr.bf16.mxu0 0
        %597 = vmatpush2.bf16.xpose.msra.mxu0 0
        %598 = vmatprep.subr.bf16.mxu0 0
        %599 = vmatpush2.bf16.xpose.msra.mxu0 0
        %600 = vmatprep.subr.bf16.mxu0 0
        %601 = vmatpush2.bf16.xpose.msra.mxu0 0
        %602 = vmatprep.subr.bf16.mxu0 0
        %603 = vmatpush2.bf16.xpose.msra.mxu0 0
        %604 = vmatprep.subr.bf16.mxu0 0
        %605 = vmatpush2.bf16.xpose.msra.mxu0 0
        %606 = vmatprep.subr.bf16.mxu0 0
        %607 = vmatpush2.bf16.xpose.msra.mxu0 0
        %608 = vmatprep.subr.bf16.mxu0 0
        %609 = vmatpush2.bf16.xpose.msra.mxu0 0
        %610 = vmatprep.mubr.bf16.mxu0 0
        %611 = vmatmul.mubr.bf16.gmra.mxu0 %v573
        %v612 = vpop.f32.mrf.mxu0
        %v613 = vadd.f32 0.0, %v612
        %v614 = vpop.f32.mrf.mxu0
        %v615 = vpop.f32.mrf.mxu0
        %v616 = vpop.f32.mrf.mxu0
        %617 = vdwg.mxu0
        %vm618 = vcmask 130048
        %v619 = vsel %vm618, %v613, -inf
        %620 = vmax.xlane.f32.xlu0 %v619
        %v621 = vpop.xlane.xlu0 %620
        %v622 = vsub.f32 %v613, %v621
        %v623 = vmul.f32 %v622, 1.442695
        %v624 = vpow.pop %v623
        %v625 = vsel %vm618, %v624, 0.0
        %626 = vadd.xlane.f32.xlu0 %v625
        %v627 = vpop.xlane.xlu0 %626
        %v628 = vpack.c.bf16 %v624, %v624
        %629 = vrot.lane.b32.xlu0 %v570, 96
        %v630 = vpop.permute.xlu0 %629
        %v633 = vsel %vm618, %v628, 0
        %635 = vmatprep.subr.bf16.mxu0 0
        %636 = vmatpush1.bf16.msra.mxu0 0
        %637 = vmatprep.subr.bf16.mxu0 0
        %638 = vmatpush1.bf16.msra.mxu0 0
        %639 = vmatprep.subr.bf16.mxu0 0
        %640 = vmatpush1.bf16.msra.mxu0 0
        %641 = vmatprep.subr.bf16.mxu0 0
        %642 = vmatpush1.bf16.msra.mxu0 0
        %643 = vmatprep.subr.bf16.mxu0 0
        %644 = vmatpush1.bf16.msra.mxu0 0
        %645 = vmatprep.subr.bf16.mxu0 0
        %646 = vmatpush1.bf16.msra.mxu0 0
        %647 = vmatprep.subr.bf16.mxu0 0
        %648 = vmatpush1.bf16.msra.mxu0 0
        %649 = vmatprep.subr.bf16.mxu0 0
        %650 = vmatpush1.bf16.msra.mxu0 %v630
        %651 = vmatprep.subr.bf16.mxu0 0
        %652 = vmatpush2.bf16.msra.mxu0 0
        %653 = vmatprep.subr.bf16.mxu0 0
        %654 = vmatpush2.bf16.msra.mxu0 0
        %655 = vmatprep.subr.bf16.mxu0 0
        %656 = vmatpush2.bf16.msra.mxu0 0
        %657 = vmatprep.subr.bf16.mxu0 0
        %658 = vmatpush2.bf16.msra.mxu0 0
        %659 = vmatprep.subr.bf16.mxu0 0
        %660 = vmatpush2.bf16.msra.mxu0 0
        %661 = vmatprep.subr.bf16.mxu0 0
        %662 = vmatpush2.bf16.msra.mxu0 0
        %663 = vmatprep.subr.bf16.mxu0 0
        %664 = vmatpush2.bf16.msra.mxu0 0
        %665 = vmatprep.subr.bf16.mxu0 0
        %666 = vmatpush2.bf16.msra.mxu0 0
        %667 = vmatprep.mubr.bf16.mxu0 0
        %668 = vmatmul.mubr.bf16.gmra.mxu0 %v633
        %v669 = vpop.f32.mrf.mxu0
        %v670 = vadd.f32 0.0, %v669
        %v671 = vpop.f32.mrf.mxu0
        %v672 = vpop.f32.mrf.mxu0
        %v673 = vpop.f32.mrf.mxu0
        %674 = vdwg.mxu0
        %v675 = vrcp.pop %v627
        %v676 = vmul.f32 %v670, %v675
        %v677 = vld [vmem:[#allocation13] sm:$0xf]
        %v678 = vld [vmem:[#allocation4] sm:$0xff]
        %v679 = vpack.c.bf16 %v676, %v676
        %v681 = vsel %vm571, %v679, 0
        %vm683 = vcmask 1043456
        %v685 = vsel %vm683, %v677, 0
        %687 = vmatprep.subr.bf16.mxu0 0
        %688 = vmatpush1.bf16.msra.mxu0 0
        %689 = vmatprep.subr.bf16.mxu0 0
        %690 = vmatpush1.bf16.msra.mxu0 0
        %691 = vmatprep.subr.bf16.mxu0 0
        %692 = vmatpush1.bf16.msra.mxu0 0
        %693 = vmatprep.subr.bf16.mxu0 0
        %694 = vmatpush1.bf16.msra.mxu0 0
        %695 = vmatprep.subr.bf16.mxu0 0
        %696 = vmatpush1.bf16.msra.mxu0 0
        %697 = vmatprep.subr.bf16.mxu0 0
        %698 = vmatpush1.bf16.msra.mxu0 0
        %699 = vmatprep.subr.bf16.mxu0 0
        %700 = vmatpush1.bf16.msra.mxu0 0
        %701 = vmatprep.subr.bf16.mxu0 0
        %702 = vmatpush1.bf16.msra.mxu0 %v685
        %703 = vmatprep.subr.bf16.mxu0 0
        %704 = vmatpush2.bf16.msra.mxu0 0
        %705 = vmatprep.subr.bf16.mxu0 0
        %706 = vmatpush2.bf16.msra.mxu0 0
        %707 = vmatprep.subr.bf16.mxu0 0
        %708 = vmatpush2.bf16.msra.mxu0 0
        %709 = vmatprep.subr.bf16.mxu0 0
        %710 = vmatpush2.bf16.msra.mxu0 0
        %711 = vmatprep.subr.bf16.mxu0 0
        %712 = vmatpush2.bf16.msra.mxu0 0
        %713 = vmatprep.subr.bf16.mxu0 0
        %714 = vmatpush2.bf16.msra.mxu0 0
        %715 = vmatprep.subr.bf16.mxu0 0
        %716 = vmatpush2.bf16.msra.mxu0 0
        %717 = vmatprep.subr.bf16.mxu0 0
        %718 = vmatpush2.bf16.msra.mxu0 0
        %719 = vmatprep.mubr.bf16.mxu0 0
        %720 = vmatmul.mubr.bf16.gmra.mxu0 %v681
        %v721 = vpop.f32.mrf.mxu0
        %v722 = vadd.f32 0.0, %v721
        %v723 = vpop.f32.mrf.mxu0
        %v724 = vpop.f32.mrf.mxu0
        %v725 = vpop.f32.mrf.mxu0
        %726 = vdwg.mxu0
        %v727 = vadd.f32 %v678, %v722
        %728 = vst.msk [vmem:[#allocation4] sm:$0xff] %vm430, %v727
        %v729 = vld [vmem:[#allocation2] sm:$0xf]
        %v730 = vld [vmem:[#allocation3] sm:$0xf]
        %v731 = vld [vmem:[#allocation3 + $0x4] sm:$0xf]
        %v733 = vunpack.c.l.b16 %v729
        %v734 = vpack.c.b16 %v733, %v733
        %735 = vrot.lane.b32.xlu0 %v734, 120
        %v736 = vpop.permute.xlu0 %735
        %v739 = vunpack.c.l.b16 %v730
        %v740 = vunpack.c.l.b16 %v731
        %v741 = vpack.c.b16 %v740, %v739
        %742 = vrot.lane.b32.xlu0 %v741, 120
        %v743 = vpop.permute.xlu0 %742
        %v745 = vsel %vm571, %v736, 0
        %v748 = vsel %vm571, %v743, 0
        %750 = vmatprep.subr.bf16.mxu0 0
        %751 = vmatpush1.bf16.xpose.msra.mxu0 0
        %752 = vmatprep.subr.bf16.mxu0 0
        %753 = vmatpush1.bf16.xpose.msra.mxu0 0
        %754 = vmatprep.subr.bf16.mxu0 0
        %755 = vmatpush1.bf16.xpose.msra.mxu0 0
        %756 = vmatprep.subr.bf16.mxu0 0
        %757 = vmatpush1.bf16.xpose.msra.mxu0 0
        %758 = vmatprep.subr.bf16.mxu0 0
        %759 = vmatpush1.bf16.xpose.msra.mxu0 0
        %760 = vmatprep.subr.bf16.mxu0 0
        %761 = vmatpush1.bf16.xpose.msra.mxu0 0
        %762 = vmatprep.subr.bf16.mxu0 0
        %763 = vmatpush1.bf16.xpose.msra.mxu0 0
        %764 = vmatprep.subr.bf16.mxu0 0
        %765 = vmatpush1.bf16.xpose.msra.mxu0 %v748
        %766 = vmatprep.subr.bf16.mxu0 0
        %767 = vmatpush2.bf16.xpose.msra.mxu0 0
        %768 = vmatprep.subr.bf16.mxu0 0
        %769 = vmatpush2.bf16.xpose.msra.mxu0 0
        %770 = vmatprep.subr.bf16.mxu0 0
        %771 = vmatpush2.bf16.xpose.msra.mxu0 0
        %772 = vmatprep.subr.bf16.mxu0 0
        %773 = vmatpush2.bf16.xpose.msra.mxu0 0
        %774 = vmatprep.subr.bf16.mxu0 0
        %775 = vmatpush2.bf16.xpose.msra.mxu0 0
        %776 = vmatprep.subr.bf16.mxu0 0
        %777 = vmatpush2.bf16.xpose.msra.mxu0 0
        %778 = vmatprep.subr.bf16.mxu0 0
        %779 = vmatpush2.bf16.xpose.msra.mxu0 0
        %780 = vmatprep.subr.bf16.mxu0 0
        %781 = vmatpush2.bf16.xpose.msra.mxu0 0
        %782 = vmatprep.mubr.bf16.mxu0 0
        %783 = vmatmul.mubr.bf16.gmra.mxu0 %v745
        %v784 = vpop.f32.mrf.mxu0
        %v785 = vadd.f32 0.0, %v784
        %v786 = vpop.f32.mrf.mxu0
        %v787 = vpop.f32.mrf.mxu0
        %v788 = vpop.f32.mrf.mxu0
        %789 = vdwg.mxu0
        %v790 = vsel %vm618, %v785, -inf
        %791 = vmax.xlane.f32.xlu0 %v790
        %v792 = vpop.xlane.xlu0 %791
        %v793 = vsub.f32 %v785, %v792
        %v794 = vmul.f32 %v793, 1.442695
        %v795 = vpow.pop %v794
        %v796 = vsel %vm618, %v795, 0.0
        %797 = vadd.xlane.f32.xlu0 %v796
        %v798 = vpop.xlane.xlu0 %797
        %v799 = vpack.c.bf16 %v795, %v795
        %800 = vrot.lane.b32.xlu0 %v741, 88
        %v801 = vpop.permute.xlu0 %800
        %v804 = vsel %vm618, %v799, 0
        %806 = vmatprep.subr.bf16.mxu0 0
        %807 = vmatpush1.bf16.msra.mxu0 0
        %808 = vmatprep.subr.bf16.mxu0 0
        %809 = vmatpush1.bf16.msra.mxu0 0
        %810 = vmatprep.subr.bf16.mxu0 0
        %811 = vmatpush1.bf16.msra.mxu0 0
        %812 = vmatprep.subr.bf16.mxu0 0
        %813 = vmatpush1.bf16.msra.mxu0 0
        %814 = vmatprep.subr.bf16.mxu0 0
        %815 = vmatpush1.bf16.msra.mxu0 0
        %816 = vmatprep.subr.bf16.mxu0 0
        %817 = vmatpush1.bf16.msra.mxu0 0
        %818 = vmatprep.subr.bf16.mxu0 0
        %819 = vmatpush1.bf16.msra.mxu0 0
        %820 = vmatprep.subr.bf16.mxu0 0
        %821 = vmatpush1.bf16.msra.mxu0 %v801
        %822 = vmatprep.subr.bf16.mxu0 0
        %823 = vmatpush2.bf16.msra.mxu0 0
        %824 = vmatprep.subr.bf16.mxu0 0
        %825 = vmatpush2.bf16.msra.mxu0 0
        %826 = vmatprep.subr.bf16.mxu0 0
        %827 = vmatpush2.bf16.msra.mxu0 0
        %828 = vmatprep.subr.bf16.mxu0 0
        %829 = vmatpush2.bf16.msra.mxu0 0
        %830 = vmatprep.subr.bf16.mxu0 0
        %831 = vmatpush2.bf16.msra.mxu0 0
        %832 = vmatprep.subr.bf16.mxu0 0
        %833 = vmatpush2.bf16.msra.mxu0 0
        %834 = vmatprep.subr.bf16.mxu0 0
        %835 = vmatpush2.bf16.msra.mxu0 0
        %836 = vmatprep.subr.bf16.mxu0 0
        %837 = vmatpush2.bf16.msra.mxu0 0
        %838 = vmatprep.mubr.bf16.mxu0 0
        %839 = vmatmul.mubr.bf16.gmra.mxu0 %v804
        %v840 = vpop.f32.mrf.mxu0
        %v841 = vadd.f32 0.0, %v840
        %v842 = vpop.f32.mrf.mxu0
        %v843 = vpop.f32.mrf.mxu0
        %v844 = vpop.f32.mrf.mxu0
        %845 = vdwg.mxu0
        %v846 = vrcp.pop %v798
        %v847 = vmul.f32 %v841, %v846
        %v848 = vld [vmem:[#allocation13 + $0x4] sm:$0xf]
        %v849 = vld [vmem:[#allocation4] sm:$0xff]
        %v850 = vpack.c.bf16 %v847, %v847
        %v852 = vsel %vm571, %v850, 0
        %v855 = vsel %vm683, %v848, 0
        %857 = vmatprep.subr.bf16.mxu0 0
        %858 = vmatpush1.bf16.msra.mxu0 0
        %859 = vmatprep.subr.bf16.mxu0 0
        %860 = vmatpush1.bf16.msra.mxu0 0
        %861 = vmatprep.subr.bf16.mxu0 0
        %862 = vmatpush1.bf16.msra.mxu0 0
        %863 = vmatprep.subr.bf16.mxu0 0
        %864 = vmatpush1.bf16.msra.mxu0 0
        %865 = vmatprep.subr.bf16.mxu0 0
        %866 = vmatpush1.bf16.msra.mxu0 0
        %867 = vmatprep.subr.bf16.mxu0 0
        %868 = vmatpush1.bf16.msra.mxu0 0
        %869 = vmatprep.subr.bf16.mxu0 0
        %870 = vmatpush1.bf16.msra.mxu0 0
        %871 = vmatprep.subr.bf16.mxu0 0
        %872 = vmatpush1.bf16.msra.mxu0 %v855
        %873 = vmatprep.subr.bf16.mxu0 0
        %874 = vmatpush2.bf16.msra.mxu0 0
        %875 = vmatprep.subr.bf16.mxu0 0
        %876 = vmatpush2.bf16.msra.mxu0 0
        %877 = vmatprep.subr.bf16.mxu0 0
        %878 = vmatpush2.bf16.msra.mxu0 0
        %879 = vmatprep.subr.bf16.mxu0 0
        %880 = vmatpush2.bf16.msra.mxu0 0
        %881 = vmatprep.subr.bf16.mxu0 0
        %882 = vmatpush2.bf16.msra.mxu0 0
        %883 = vmatprep.subr.bf16.mxu0 0
        %884 = vmatpush2.bf16.msra.mxu0 0
        %885 = vmatprep.subr.bf16.mxu0 0
        %886 = vmatpush2.bf16.msra.mxu0 0
        %887 = vmatprep.subr.bf16.mxu0 0
        %888 = vmatpush2.bf16.msra.mxu0 0
        %889 = vmatprep.mubr.bf16.mxu0 0
        %890 = vmatmul.mubr.bf16.gmra.mxu0 %v852
        %v891 = vpop.f32.mrf.mxu0
        %v892 = vadd.f32 0.0, %v891
        %v893 = vpop.f32.mrf.mxu0
        %v894 = vpop.f32.mrf.mxu0
        %v895 = vpop.f32.mrf.mxu0
        %896 = vdwg.mxu0
        %v897 = vadd.f32 %v849, %v892
        %898 = vst.msk [vmem:[#allocation4] sm:$0xff] %vm430, %v897
        %v899 = vld [vmem:[#allocation2] sm:$0xf]
        %v900 = vld [vmem:[#allocation3] sm:$0xf]
        %v901 = vld [vmem:[#allocation3 + $0x4] sm:$0xf]
        %v903 = vunpack.c.l.b16 %v899
        %v904 = vpack.c.b16 %v903, %v903
        %905 = vrot.lane.b32.xlu0 %v904, 112
        %v906 = vpop.permute.xlu0 %905
        %v909 = vunpack.c.l.b16 %v900
        %v910 = vunpack.c.l.b16 %v901
        %v911 = vpack.c.b16 %v910, %v909
        %912 = vrot.lane.b32.xlu0 %v911, 112
        %v913 = vpop.permute.xlu0 %912
        %v915 = vsel %vm571, %v906, 0
        %v918 = vsel %vm571, %v913, 0
        %920 = vmatprep.subr.bf16.mxu0 0
        %921 = vmatpush1.bf16.xpose.msra.mxu0 0
        %922 = vmatprep.subr.bf16.mxu0 0
        %923 = vmatpush1.bf16.xpose.msra.mxu0 0
        %924 = vmatprep.subr.bf16.mxu0 0
        %925 = vmatpush1.bf16.xpose.msra.mxu0 0
        %926 = vmatprep.subr.bf16.mxu0 0
        %927 = vmatpush1.bf16.xpose.msra.mxu0 0
        %928 = vmatprep.subr.bf16.mxu0 0
        %929 = vmatpush1.bf16.xpose.msra.mxu0 0
        %930 = vmatprep.subr.bf16.mxu0 0
        %931 = vmatpush1.bf16.xpose.msra.mxu0 0
        %932 = vmatprep.subr.bf16.mxu0 0
        %933 = vmatpush1.bf16.xpose.msra.mxu0 0
        %934 = vmatprep.subr.bf16.mxu0 0
        %935 = vmatpush1.bf16.xpose.msra.mxu0 %v918
        %936 = vmatprep.subr.bf16.mxu0 0
        %937 = vmatpush2.bf16.xpose.msra.mxu0 0
        %938 = vmatprep.subr.bf16.mxu0 0
        %939 = vmatpush2.bf16.xpose.msra.mxu0 0
        %940 = vmatprep.subr.bf16.mxu0 0
        %941 = vmatpush2.bf16.xpose.msra.mxu0 0
        %942 = vmatprep.subr.bf16.mxu0 0
        %943 = vmatpush2.bf16.xpose.msra.mxu0 0
        %944 = vmatprep.subr.bf16.mxu0 0
        %945 = vmatpush2.bf16.xpose.msra.mxu0 0
        %946 = vmatprep.subr.bf16.mxu0 0
        %947 = vmatpush2.bf16.xpose.msra.mxu0 0
        %948 = vmatprep.subr.bf16.mxu0 0
        %949 = vmatpush2.bf16.xpose.msra.mxu0 0
        %950 = vmatprep.subr.bf16.mxu0 0
        %951 = vmatpush2.bf16.xpose.msra.mxu0 0
        %952 = vmatprep.mubr.bf16.mxu0 0
        %953 = vmatmul.mubr.bf16.gmra.mxu0 %v915
        %v954 = vpop.f32.mrf.mxu0
        %v955 = vadd.f32 0.0, %v954
        %v956 = vpop.f32.mrf.mxu0
        %v957 = vpop.f32.mrf.mxu0
        %v958 = vpop.f32.mrf.mxu0
        %959 = vdwg.mxu0
        %v960 = vsel %vm618, %v955, -inf
        %961 = vmax.xlane.f32.xlu0 %v960
        %v962 = vpop.xlane.xlu0 %961
        %v963 = vsub.f32 %v955, %v962
        %v964 = vmul.f32 %v963, 1.442695
        %v965 = vpow.pop %v964
        %v966 = vsel %vm618, %v965, 0.0
        %967 = vadd.xlane.f32.xlu0 %v966
        %v968 = vpop.xlane.xlu0 %967
        %v969 = vpack.c.bf16 %v965, %v965
        %970 = vrot.lane.b32.xlu0 %v911, 80
        %v971 = vpop.permute.xlu0 %970
        %v974 = vsel %vm618, %v969, 0
        %976 = vmatprep.subr.bf16.mxu0 0
        %977 = vmatpush1.bf16.msra.mxu0 0
        %978 = vmatprep.subr.bf16.mxu0 0
        %979 = vmatpush1.bf16.msra.mxu0 0
        %980 = vmatprep.subr.bf16.mxu0 0
        %981 = vmatpush1.bf16.msra.mxu0 0
        %982 = vmatprep.subr.bf16.mxu0 0
        %983 = vmatpush1.bf16.msra.mxu0 0
        %984 = vmatprep.subr.bf16.mxu0 0
        %985 = vmatpush1.bf16.msra.mxu0 0
        %986 = vmatprep.subr.bf16.mxu0 0
        %987 = vmatpush1.bf16.msra.mxu0 0
        %988 = vmatprep.subr.bf16.mxu0 0
        %989 = vmatpush1.bf16.msra.mxu0 0
        %990 = vmatprep.subr.bf16.mxu0 0
        %991 = vmatpush1.bf16.msra.mxu0 %v971
        %992 = vmatprep.subr.bf16.mxu0 0
        %993 = vmatpush2.bf16.msra.mxu0 0
        %994 = vmatprep.subr.bf16.mxu0 0
        %995 = vmatpush2.bf16.msra.mxu0 0
        %996 = vmatprep.subr.bf16.mxu0 0
        %997 = vmatpush2.bf16.msra.mxu0 0
        %998 = vmatprep.subr.bf16.mxu0 0
        %999 = vmatpush2.bf16.msra.mxu0 0
        %1000 = vmatprep.subr.bf16.mxu0 0
        %1001 = vmatpush2.bf16.msra.mxu0 0
        %1002 = vmatprep.subr.bf16.mxu0 0
        %1003 = vmatpush2.bf16.msra.mxu0 0
        %1004 = vmatprep.subr.bf16.mxu0 0
        %1005 = vmatpush2.bf16.msra.mxu0 0
        %1006 = vmatprep.subr.bf16.mxu0 0
        %1007 = vmatpush2.bf16.msra.mxu0 0
        %1008 = vmatprep.mubr.bf16.mxu0 0
        %1009 = vmatmul.mubr.bf16.gmra.mxu0 %v974
        %v1010 = vpop.f32.mrf.mxu0
        %v1011 = vadd.f32 0.0, %v1010
        %v1012 = vpop.f32.mrf.mxu0
        %v1013 = vpop.f32.mrf.mxu0
        %v1014 = vpop.f32.mrf.mxu0
        %1015 = vdwg.mxu0
        %v1016 = vrcp.pop %v968
        %v1017 = vmul.f32 %v1011, %v1016
        %v1018 = vld [vmem:[#allocation13 + $0x8] sm:$0xf]
        %v1019 = vld [vmem:[#allocation4] sm:$0xff]
        %v1020 = vpack.c.bf16 %v1017, %v1017
        %v1022 = vsel %vm571, %v1020, 0
        %v1025 = vsel %vm683, %v1018, 0
        %1027 = vmatprep.subr.bf16.mxu0 0
        %1028 = vmatpush1.bf16.msra.mxu0 0
        %1029 = vmatprep.subr.bf16.mxu0 0
        %1030 = vmatpush1.bf16.msra.mxu0 0
        %1031 = vmatprep.subr.bf16.mxu0 0
        %1032 = vmatpush1.bf16.msra.mxu0 0
        %1033 = vmatprep.subr.bf16.mxu0 0
        %1034 = vmatpush1.bf16.msra.mxu0 0
        %1035 = vmatprep.subr.bf16.mxu0 0
        %1036 = vmatpush1.bf16.msra.mxu0 0
        %1037 = vmatprep.subr.bf16.mxu0 0
        %1038 = vmatpush1.bf16.msra.mxu0 0
        %1039 = vmatprep.subr.bf16.mxu0 0
        %1040 = vmatpush1.bf16.msra.mxu0 0
        %1041 = vmatprep.subr.bf16.mxu0 0
        %1042 = vmatpush1.bf16.msra.mxu0 %v1025
        %1043 = vmatprep.subr.bf16.mxu0 0
        %1044 = vmatpush2.bf16.msra.mxu0 0
        %1045 = vmatprep.subr.bf16.mxu0 0
        %1046 = vmatpush2.bf16.msra.mxu0 0
        %1047 = vmatprep.subr.bf16.mxu0 0
        %1048 = vmatpush2.bf16.msra.mxu0 0
        %1049 = vmatprep.subr.bf16.mxu0 0
        %1050 = vmatpush2.bf16.msra.mxu0 0
        %1051 = vmatprep.subr.bf16.mxu0 0
        %1052 = vmatpush2.bf16.msra.mxu0 0
        %1053 = vmatprep.subr.bf16.mxu0 0
        %1054 = vmatpush2.bf16.msra.mxu0 0
        %1055 = vmatprep.subr.bf16.mxu0 0
        %1056 = vmatpush2.bf16.msra.mxu0 0
        %1057 = vmatprep.subr.bf16.mxu0 0
        %1058 = vmatpush2.bf16.msra.mxu0 0
        %1059 = vmatprep.mubr.bf16.mxu0 0
        %1060 = vmatmul.mubr.bf16.gmra.mxu0 %v1022
        %v1061 = vpop.f32.mrf.mxu0
        %v1062 = vadd.f32 0.0, %v1061
        %v1063 = vpop.f32.mrf.mxu0
        %v1064 = vpop.f32.mrf.mxu0
        %v1065 = vpop.f32.mrf.mxu0
        %1066 = vdwg.mxu0
        %v1067 = vadd.f32 %v1019, %v1062
        %1068 = vst.msk [vmem:[#allocation4] sm:$0xff] %vm430, %v1067
        %v1069 = vld [vmem:[#allocation2] sm:$0xf]
        %v1070 = vld [vmem:[#allocation3] sm:$0xf]
        %v1071 = vld [vmem:[#allocation3 + $0x4] sm:$0xf]
        %v1073 = vunpack.c.l.b16 %v1069
        %v1074 = vpack.c.b16 %v1073, %v1073
        %1075 = vrot.lane.b32.xlu0 %v1074, 104
        %v1076 = vpop.permute.xlu0 %1075
        %v1079 = vunpack.c.l.b16 %v1070
        %v1080 = vunpack.c.l.b16 %v1071
        %v1081 = vpack.c.b16 %v1080, %v1079
        %1082 = vrot.lane.b32.xlu0 %v1081, 104
        %v1083 = vpop.permute.xlu0 %1082
        %v1085 = vsel %vm571, %v1076, 0
        %v1088 = vsel %vm571, %v1083, 0
        %1090 = vmatprep.subr.bf16.mxu0 0
        %1091 = vmatpush1.bf16.xpose.msra.mxu0 0
        %1092 = vmatprep.subr.bf16.mxu0 0
        %1093 = vmatpush1.bf16.xpose.msra.mxu0 0
        %1094 = vmatprep.subr.bf16.mxu0 0
        %1095 = vmatpush1.bf16.xpose.msra.mxu0 0
        %1096 = vmatprep.subr.bf16.mxu0 0
        %1097 = vmatpush1.bf16.xpose.msra.mxu0 0
        %1098 = vmatprep.subr.bf16.mxu0 0
        %1099 = vmatpush1.bf16.xpose.msra.mxu0 0
        %1100 = vmatprep.subr.bf16.mxu0 0
        %1101 = vmatpush1.bf16.xpose.msra.mxu0 0
        %1102 = vmatprep.subr.bf16.mxu0 0
        %1103 = vmatpush1.bf16.xpose.msra.mxu0 0
        %1104 = vmatprep.subr.bf16.mxu0 0
        %1105 = vmatpush1.bf16.xpose.msra.mxu0 %v1088
        %1106 = vmatprep.subr.bf16.mxu0 0
        %1107 = vmatpush2.bf16.xpose.msra.mxu0 0
        %1108 = vmatprep.subr.bf16.mxu0 0
        %1109 = vmatpush2.bf16.xpose.msra.mxu0 0
        %1110 = vmatprep.subr.bf16.mxu0 0
        %1111 = vmatpush2.bf16.xpose.msra.mxu0 0
        %1112 = vmatprep.subr.bf16.mxu0 0
        %1113 = vmatpush2.bf16.xpose.msra.mxu0 0
        %1114 = vmatprep.subr.bf16.mxu0 0
        %1115 = vmatpush2.bf16.xpose.msra.mxu0 0
        %1116 = vmatprep.subr.bf16.mxu0 0
        %1117 = vmatpush2.bf16.xpose.msra.mxu0 0
        %1118 = vmatprep.subr.bf16.mxu0 0
        %1119 = vmatpush2.bf16.xpose.msra.mxu0 0
        %1120 = vmatprep.subr.bf16.mxu0 0
        %1121 = vmatpush2.bf16.xpose.msra.mxu0 0
        %1122 = vmatprep.mubr.bf16.mxu0 0
        %1123 = vmatmul.mubr.bf16.gmra.mxu0 %v1085
        %v1124 = vpop.f32.mrf.mxu0
        %v1125 = vadd.f32 0.0, %v1124
        %v1126 = vpop.f32.mrf.mxu0
        %v1127 = vpop.f32.mrf.mxu0
        %v1128 = vpop.f32.mrf.mxu0
        %1129 = vdwg.mxu0
        %v1130 = vsel %vm618, %v1125, -inf
        %1131 = vmax.xlane.f32.xlu0 %v1130
        %v1132 = vpop.xlane.xlu0 %1131
        %v1133 = vsub.f32 %v1125, %v1132
        %v1134 = vmul.f32 %v1133, 1.442695
        %v1135 = vpow.pop %v1134
        %v1136 = vsel %vm618, %v1135, 0.0
        %1137 = vadd.xlane.f32.xlu0 %v1136
        %v1138 = vpop.xlane.xlu0 %1137
        %v1139 = vpack.c.bf16 %v1135, %v1135
        %1140 = vrot.lane.b32.xlu0 %v1081, 72
        %v1141 = vpop.permute.xlu0 %1140
        %v1144 = vsel %vm618, %v1139, 0
        %1146 = vmatprep.subr.bf16.mxu0 0
        %1147 = vmatpush1.bf16.msra.mxu0 0
        %1148 = vmatprep.subr.bf16.mxu0 0
        %1149 = vmatpush1.bf16.msra.mxu0 0
        %1150 = vmatprep.subr.bf16.mxu0 0
        %1151 = vmatpush1.bf16.msra.mxu0 0
        %1152 = vmatprep.subr.bf16.mxu0 0
        %1153 = vmatpush1.bf16.msra.mxu0 0
        %1154 = vmatprep.subr.bf16.mxu0 0
        %1155 = vmatpush1.bf16.msra.mxu0 0
        %1156 = vmatprep.subr.bf16.mxu0 0
        %1157 = vmatpush1.bf16.msra.mxu0 0
        %1158 = vmatprep.subr.bf16.mxu0 0
        %1159 = vmatpush1.bf16.msra.mxu0 0
        %1160 = vmatprep.subr.bf16.mxu0 0
        %1161 = vmatpush1.bf16.msra.mxu0 %v1141
        %1162 = vmatprep.subr.bf16.mxu0 0
        %1163 = vmatpush2.bf16.msra.mxu0 0
        %1164 = vmatprep.subr.bf16.mxu0 0
        %1165 = vmatpush2.bf16.msra.mxu0 0
        %1166 = vmatprep.subr.bf16.mxu0 0
        %1167 = vmatpush2.bf16.msra.mxu0 0
        %1168 = vmatprep.subr.bf16.mxu0 0
        %1169 = vmatpush2.bf16.msra.mxu0 0
        %1170 = vmatprep.subr.bf16.mxu0 0
        %1171 = vmatpush2.bf16.msra.mxu0 0
        %1172 = vmatprep.subr.bf16.mxu0 0
        %1173 = vmatpush2.bf16.msra.mxu0 0
        %1174 = vmatprep.subr.bf16.mxu0 0
        %1175 = vmatpush2.bf16.msra.mxu0 0
        %1176 = vmatprep.subr.bf16.mxu0 0
        %1177 = vmatpush2.bf16.msra.mxu0 0
        %1178 = vmatprep.mubr.bf16.mxu0 0
        %1179 = vmatmul.mubr.bf16.gmra.mxu0 %v1144
        %v1180 = vpop.f32.mrf.mxu0
        %v1181 = vadd.f32 0.0, %v1180
        %v1182 = vpop.f32.mrf.mxu0
        %v1183 = vpop.f32.mrf.mxu0
        %v1184 = vpop.f32.mrf.mxu0
        %1185 = vdwg.mxu0
        %v1186 = vrcp.pop %v1138
        %v1187 = vmul.f32 %v1181, %v1186
        %v1188 = vld [vmem:[#allocation13 + $0xc] sm:$0xf]
        %v1189 = vld [vmem:[#allocation4] sm:$0xff]
        %v1190 = vpack.c.bf16 %v1187, %v1187
        %v1192 = vsel %vm571, %v1190, 0
        %v1195 = vsel %vm683, %v1188, 0
        %1197 = vmatprep.subr.bf16.mxu0 0
        %1198 = vmatpush1.bf16.msra.mxu0 0
        %1199 = vmatprep.subr.bf16.mxu0 0
        %1200 = vmatpush1.bf16.msra.mxu0 0
        %1201 = vmatprep.subr.bf16.mxu0 0
        %1202 = vmatpush1.bf16.msra.mxu0 0
        %1203 = vmatprep.subr.bf16.mxu0 0
        %1204 = vmatpush1.bf16.msra.mxu0 0
        %1205 = vmatprep.subr.bf16.mxu0 0
        %1206 = vmatpush1.bf16.msra.mxu0 0
        %1207 = vmatprep.subr.bf16.mxu0 0
        %1208 = vmatpush1.bf16.msra.mxu0 0
        %1209 = vmatprep.subr.bf16.mxu0 0
        %1210 = vmatpush1.bf16.msra.mxu0 0
        %1211 = vmatprep.subr.bf16.mxu0 0
        %1212 = vmatpush1.bf16.msra.mxu0 %v1195
        %1213 = vmatprep.subr.bf16.mxu0 0
        %1214 = vmatpush2.bf16.msra.mxu0 0
        %1215 = vmatprep.subr.bf16.mxu0 0
        %1216 = vmatpush2.bf16.msra.mxu0 0
        %1217 = vmatprep.subr.bf16.mxu0 0
        %1218 = vmatpush2.bf16.msra.mxu0 0
        %1219 = vmatprep.subr.bf16.mxu0 0
        %1220 = vmatpush2.bf16.msra.mxu0 0
        %1221 = vmatprep.subr.bf16.mxu0 0
        %1222 = vmatpush2.bf16.msra.mxu0 0
        %1223 = vmatprep.subr.bf16.mxu0 0
        %1224 = vmatpush2.bf16.msra.mxu0 0
        %1225 = vmatprep.subr.bf16.mxu0 0
        %1226 = vmatpush2.bf16.msra.mxu0 0
        %1227 = vmatprep.subr.bf16.mxu0 0
        %1228 = vmatpush2.bf16.msra.mxu0 0
        %1229 = vmatprep.mubr.bf16.mxu0 0
        %1230 = vmatmul.mubr.bf16.gmra.mxu0 %v1192
        %v1231 = vpop.f32.mrf.mxu0
        %v1232 = vadd.f32 0.0, %v1231
        %v1233 = vpop.f32.mrf.mxu0
        %v1234 = vpop.f32.mrf.mxu0
        %v1235 = vpop.f32.mrf.mxu0
        %1236 = vdwg.mxu0
        %v1237 = vadd.f32 %v1189, %v1232
        %1238 = vst.msk [vmem:[#allocation4] sm:$0xff] %vm430, %v1237
        %v1239 = vld [vmem:[#allocation4] sm:$0xff]
        %v1240 = vld [vmem:[%s7] sm:$0x1]
        %v1242 = vlaneseq
        %v1243 = vshrl.u32 %v1242, 7
        %v1244 = vsub.s32 0, %v1243
        %v1245 = vrot.slane %v1240, %v1244
        %v1247 = vadd.f32 %v1239, %v1245
        %1248 = vst.msk [vmem:[%s403] sm:$0xff] %vm430, %v1247
        %s1249 = sand.u32 %s215, 1
        %s1250 = scalar_lea.sflag [#allocation7], %s1249
        %s1251 = sand.u32 %s215, 1
        %s1252 = smul.addr %s1251, 8
        %s1253 = scalar_lea.vmem [#allocation14], %s1252
        // Predicated region
        $region73: #{tpu_custom_call.1} parent=51 // pred_check
          %p1254 = pneg %p225
        $region74: #{tpu_custom_call.1} parent=51 // pred_check_branch
          %1256 = sbr.rel (%p1254) target = $region76
        $region75: #{tpu_custom_call.1} parent=51 // pred_region
          %s1258 = ssub.s32 128, 128
          %1259 = vsyncadd %s1250, %s1258
          %s1260 = smul.addr %s29, 128
          %s1261 = scalar_lea.hbm %s8, %s1260
          %s1263 = sshll.u32 %s1253, 4
          %s1264 = int_to_ptr.vmem [resolvable:$true] %s1263
          %1266 = dma.vmem_to_hbm [thread:$0]  %s1264, 128, %s1261, %s1250
        $region76: #{tpu_custom_call.1} parent=51 // pred_fallthru
          _
      $region52: #{tpu_custom_call.1} parent=5 // pred_fallthru
        _
      %p1267 = scmp.le.s32.totalorder 2, %s24
      // Predicated region
      $region77: #{tpu_custom_call.1} parent=5 // pred_check
        %p1268 = pneg %p1267
      $region78: #{tpu_custom_call.1} parent=5 // pred_check_branch
        %1270 = sbr.rel (%p1268) target = $region80
      $region79: #{tpu_custom_call.1} parent=5 // pred_region
        %s1271 = ssub.s32 %s24, 2
        // Predicated region
        $region81: #{tpu_custom_call.1} parent=79 // pred_check
          %p1272 = pneg %p231
        $region82: #{tpu_custom_call.1} parent=79 // pred_check_branch
          %1274 = sbr.rel (%p1272) target = $region84
        $region83: #{tpu_custom_call.1} parent=79 // pred_region
          %s1275 = sand.u32 %s216, 1
          %s1276 = scalar_lea.sflag [#allocation7], %s1275
          %s1277 = sand.u32 %s216, 1
          %s1278 = smul.addr %s1277, 8
          %s1279 = scalar_lea.vmem [#allocation14], %s1278
          %1280 = dma.done %s1276, 128
        $region84: #{tpu_custom_call.1} parent=79 // pred_fallthru
          _
      $region80: #{tpu_custom_call.1} parent=5 // pred_fallthru
        _
    $region6: #{tpu_custom_call.1} parent=1 // loop_footer
      %s28 = sadd.s32 1, %s24
    $region7: #{tpu_custom_call.1} parent=1 // loop_footer_branch
      %23 = sbr.rel target = $region3
    $region8: #{tpu_custom_call.1} parent=1 // loop_exit
      _
    %1281 = vsyncpa [#allocation6], 1
    %s1282 = scalar_lea.sflag [#allocation6], 1
    %1283 = vsyncpa %s1282, 1
    %1284 = vsyncpa [#allocation9], 1
    %s1285 = scalar_lea.sflag [#allocation9], 1
    %1286 = vsyncpa %s1285, 1
    %1287 = vsyncpa [#allocation12], 1
    %1288 = vsyncpa [#allocation7], 1
    %s1289 = scalar_lea.sflag [#allocation7], 1
    %1290 = vsyncpa %s1289, 1

</llo_original>
